<compile_context>
chip_gen: v7x
topology: tpu7x:2x2x1
jax: 0.10.0
libtpu: 0.0.40
codegen_flags: <defaults>
</compile_context>

<pallas_src>
import jax
import jax.numpy as jnp
from jax.experimental import pallas as pl
from jax.experimental.pallas import tpu as pltpu

H1 = 1024
H2 = 512

# Batch-tile ceiling: 1024 for v6e/v7x; pass max_batch_tile=256 on v5e.
_MAX_BATCH_TILE = 1024


def _round_up(n, m):
    return ((n + m - 1) // m) * m


def _mlp_kernel(x_ref, w1_ref, b1_ref, a1_ref,
                w2_ref, b2_ref, a2_ref,
                w3_ref, b3_ref, o_ref):
    # x arrives f32 at its native feature width; cast to bf16 in-kernel (VPU op,
    # free under the MXU-dominated critical path).
    x = x_ref[...].astype(jnp.bfloat16)

    # Linear 1 + PReLU (single shared slope, read from SMEM scalar path).
    h1 = jnp.dot(x, w1_ref[...], preferred_element_type=jnp.float32) + b1_ref[...]
    h1 = jnp.where(h1 >= 0, h1, a1_ref[0] * h1)

    # Linear 2 + PReLU.
    h2 = jnp.dot(h1.astype(jnp.bfloat16), w2_ref[...],
                 preferred_element_type=jnp.float32) + b2_ref[...]
    h2 = jnp.where(h2 >= 0, h2, a2_ref[0] * h2)

    # Linear 3.
    o_ref[...] = (jnp.dot(h2.astype(jnp.bfloat16), w3_ref[...],
                          preferred_element_type=jnp.float32)
                  + b3_ref[...]).astype(o_ref.dtype)


def point_feat_mlp(x, params, *, max_batch_tile=_MAX_BATCH_TILE):
    """x: (B, 3*num_pts) float32 -> (B, 512) float32."""
    B, d0 = x.shape
    w1t, b1, a1 = params["w1t"], params["b1"], params["a1"]
    w2t, b2, a2 = params["w2t"], params["b2"], params["a2"]
    w3t, b3 = params["w3t"], params["b3"]

    d0p = w1t.shape[1]  # lane-dense (padded) layer-1 output width
    assert w1t.shape[0] == d0
    assert w2t.shape == (d0p, H1) and w3t.shape == (H1, H2)

    # --- Batch tiling.  Big tiles amortize the ~0.35us/step overhead; once there is
    # more than one 8-row tile of work, guarantee >= 2 grid steps so the "parallel"
    # axis can be split across v7x's two TensorCores.
    Bq = _round_up(B, 8)
    if Bq > 8:
        TB = min(max_batch_tile, _round_up(pl.cdiv(Bq, 2), 8))
    else:
        TB = Bq
    Bp = _round_up(Bq, TB)
    if Bp != B:
        x = jnp.pad(x, ((0, Bp - B), (0, 0)))

    grid = (Bp // TB,)

    # Weights / biases: constant block index => DMA'd once and kept VMEM-resident.
    # Single-buffered so the pipeliner doesn't allocate a useless second buffer.
    def resident(arr, single_buffer):
        nd = arr.ndim
        if single_buffer:
            return pl.BlockSpec(arr.shape, lambda i: (0,) * nd,
                                pipeline_mode=pl.Buffered(1))
        return pl.BlockSpec(arr.shape, lambda i: (0,) * nd)

    smem = pl.BlockSpec(memory_space=pltpu.MemorySpace.SMEM)

    flops = 2 * Bp * (d0 * d0p + d0p * H1 + H1 * H2)
    bytes_accessed = (
        Bp * d0 * 4                              # x (f32, streamed per tile)
        + (w1t.size + w2t.size + w3t.size) * 2   # bf16 resident weights (DMA'd once)
        + (b1.size + b2.size + b3.size) * 4
        + Bp * H2 * 4                            # f32 output
    )

    def build(single_buffer):
        return pl.pallas_call(
            _mlp_kernel,
            out_shape=jax.ShapeDtypeStruct((Bp, H2), jnp.float32),
            grid=grid,
            in_specs=[
                pl.BlockSpec((TB, d0), lambda i: (i, 0)),   # x: streamed batch tile
                resident(w1t, single_buffer), resident(b1, single_buffer), smem,
                resident(w2t, single_buffer), resident(b2, single_buffer), smem,
                resident(w3t, single_buffer), resident(b3, single_buffer),
            ],
            out_specs=pl.BlockSpec((TB, H2), lambda i: (i, 0)),
            compiler_params=pltpu.CompilerParams(
                dimension_semantics=("parallel",),
                vmem_limit_bytes=48 << 20,   # fits v7x's 64 MiB physical VMEM
            ),
            cost_estimate=pl.CostEstimate(
                flops=flops, transcendentals=0, bytes_accessed=bytes_accessed),
        )

    args = (x, w1t, b1, a1, w2t, b2, a2, w3t, b3)
    try:
        out = build(True)(*args)
    except Exception:
        # Fallback in case this JAX build rejects single-buffered (Buffered(1)) specs.
        out = build(False)(*args)

    return out[:B]


def _linear_init(key, din, dout):
    kw, kb = jax.random.split(key)
    bound = 1.0 / jnp.sqrt(jnp.float32(din))  # PyTorch Linear default init range
    w = jax.random.uniform(kw, (dout, din), jnp.float32, -bound, bound)
    b = jax.random.uniform(kb, (1, dout), jnp.float32, -bound, bound)
    return jnp.transpose(w), b                 # (in, out), (1, out)


def init_params(key, num_pts):
    """One-time prepare step (matches the PyTorch module's shapes).

    Weights are pre-transposed to (in, out), zero-padded so the layer-1 output /
    layer-2 input width is a lane-dense multiple of 128, and stored in bf16 (the
    streamed dtype).  Biases / PReLU slopes stay float32.  Doing this once here —
    not per forward call — avoids rewriting every weight array through HBM per call.
    """
    d0 = 3 * num_pts
    d0p = _round_up(d0, 128)
    k1, k2, k3 = jax.random.split(key, 3)

    w1t, b1 = _linear_init(k1, d0, d0)    # (d0, d0), (1, d0)
    w2t, b2 = _linear_init(k2, d0, H1)    # (d0, 1024)
    w3t, b3 = _linear_init(k3, H1, H2)    # (1024, 512)

    pad1 = d0p - d0
    if pad1:
        w1t = jnp.pad(w1t, ((0, 0), (0, pad1)))   # lane-dense layer-1 output cols
        b1 = jnp.pad(b1, ((0, 0), (0, pad1)))
        w2t = jnp.pad(w2t, ((0, pad1), (0, 0)))   # matching zero K rows for layer 2

    return {
        "w1t": w1t.astype(jnp.bfloat16), "b1": b1,
        "a1": jnp.full((1,), 0.25, jnp.float32),  # PReLU shared slope (PyTorch default)
        "w2t": w2t.astype(jnp.bfloat16), "b2": b2,
        "a2": jnp.full((1,), 0.25, jnp.float32),
        "w3t": w3t.astype(jnp.bfloat16), "b3": b3,
    }


def reference(x, params):
    """Pure-JAX reference using the same bf16-operand / f32-accumulate arithmetic."""
    def prelu(v, a):
        return jnp.where(v >= 0, v, a[0] * v)

    def layer(h, wt, b):
        return jnp.dot(h.astype(jnp.bfloat16), wt,
                       preferred_element_type=jnp.float32) + b

    h = prelu(layer(x, params["w1t"], params["b1"]), params["a1"])
    h = prelu(layer(h, params["w2t"], params["b2"]), params["a2"])
    return layer(h, params["w3t"], params["b3"])


if __name__ == "__main__":
    num_pts = 64          # -> input feature dim 3 * 64 = 192
    batch = 8

    key = jax.random.PRNGKey(0)
    key, kx = jax.random.split(key)
    x = jax.random.normal(kx, (batch, 3 * num_pts), jnp.float32)

    params = init_params(key, num_pts)

    out = jax.block_until_ready(point_feat_mlp(x, params))
    ref = jax.block_until_ready(reference(x, params))

    assert out.shape == (batch, H2), out.shape
    max_err = float(jnp.max(jnp.abs(out - ref)))
    assert jnp.allclose(out, ref, atol=2e-3, rtol=2e-3), max_err

    print("KERNEL_OK")
</pallas_src>

<mosaic_0001>
module attributes {stable_mosaic.version = 11 : i64} {
  func.func @_mlp_kernel(%arg0: i32, %arg1: memref<8x192xf32, #tpu.memory_space<vmem>>, %arg2: memref<192x256xbf16, #tpu.memory_space<vmem>>, %arg3: memref<1x256xf32, #tpu.memory_space<vmem>>, %arg4: memref<1xf32, #tpu.memory_space<smem>>, %arg5: memref<256x1024xbf16, #tpu.memory_space<vmem>>, %arg6: memref<1x1024xf32, #tpu.memory_space<vmem>>, %arg7: memref<1xf32, #tpu.memory_space<smem>>, %arg8: memref<1024x512xbf16, #tpu.memory_space<vmem>>, %arg9: memref<1x512xf32, #tpu.memory_space<vmem>>, %arg10: memref<8x512xf32, #tpu.memory_space<vmem>>) attributes {dimension_semantics = [#tpu.dimension_semantics<parallel>], iteration_bounds = array<i64: 1>, scalar_prefetch = 0 : i64, scratch_operands = 0 : i64, tpu.core_type = #tpu.core_type<tc>, window_params = [{transform_indices = @transform_0, window_bounds = array<i64: 8, 192>}, {pipeline_mode = #tpu.pipeline_mode<synchronous>, transform_indices = @transform_1, window_bounds = array<i64: 192, 256>}, {pipeline_mode = #tpu.pipeline_mode<synchronous>, transform_indices = @transform_2, window_bounds = array<i64: 1, 256>}, {transform_indices = @transform_3, window_bounds = array<i64: 1>}, {pipeline_mode = #tpu.pipeline_mode<synchronous>, transform_indices = @transform_4, window_bounds = array<i64: 256, 1024>}, {pipeline_mode = #tpu.pipeline_mode<synchronous>, transform_indices = @transform_5, window_bounds = array<i64: 1, 1024>}, {transform_indices = @transform_6, window_bounds = array<i64: 1>}, {pipeline_mode = #tpu.pipeline_mode<synchronous>, transform_indices = @transform_7, window_bounds = array<i64: 1024, 512>}, {pipeline_mode = #tpu.pipeline_mode<synchronous>, transform_indices = @transform_8, window_bounds = array<i64: 1, 512>}, {transform_indices = @transform_9, window_bounds = array<i64: 8, 512>}]} {
    %c0 = arith.constant 0 : index
    %c0_0 = arith.constant 0 : index
    %0 = vector.load %arg1[%c0, %c0_0] : memref<8x192xf32, #tpu.memory_space<vmem>>, vector<8x192xf32>
    %1 = arith.truncf %0 : vector<8x192xf32> to vector<8x192xbf16>
    %c0_1 = arith.constant 0 : index
    %c0_2 = arith.constant 0 : index
    %2 = vector.load %arg2[%c0_1, %c0_2] : memref<192x256xbf16, #tpu.memory_space<vmem>>, vector<192x256xbf16>
    %cst = arith.constant dense<0.000000e+00> : vector<8x256xf32>
    %3 = tpu.matmul %1, %2, %cst {dimension_numbers = #tpu.dot_dimension_numbers<[1], [0], [0], [1], [0, 0, 1, 1], [], []>} : vector<8x192xbf16>, vector<192x256xbf16>, vector<8x256xf32> -> vector<8x256xf32>
    %c0_3 = arith.constant 0 : index
    %c0_4 = arith.constant 0 : index
    %4 = vector.load %arg3[%c0_3, %c0_4] : memref<1x256xf32, #tpu.memory_space<vmem>>, vector<1x256xf32>
    %5 = vector.broadcast %4 : vector<1x256xf32> to vector<8x256xf32>
    %6 = arith.addf %3, %5 : vector<8x256xf32>
    %cst_5 = arith.constant 0.000000e+00 : f32
    %7 = vector.broadcast %cst_5 : f32 to vector<8x256xf32>
    %8 = arith.cmpf oge, %6, %7 : vector<8x256xf32>
    %c0_6 = arith.constant 0 : index
    %9 = memref.load %arg4[%c0_6] : memref<1xf32, #tpu.memory_space<smem>>
    %10 = vector.broadcast %9 : f32 to vector<8x256xf32>
    %11 = arith.mulf %10, %6 : vector<8x256xf32>
    %12 = arith.select %8, %6, %11 : vector<8x256xi1>, vector<8x256xf32>
    %13 = arith.truncf %12 : vector<8x256xf32> to vector<8x256xbf16>
    %c0_7 = arith.constant 0 : index
    %c0_8 = arith.constant 0 : index
    %14 = vector.load %arg5[%c0_7, %c0_8] : memref<256x1024xbf16, #tpu.memory_space<vmem>>, vector<256x1024xbf16>
    %cst_9 = arith.constant dense<0.000000e+00> : vector<8x1024xf32>
    %15 = tpu.matmul %13, %14, %cst_9 {dimension_numbers = #tpu.dot_dimension_numbers<[1], [0], [0], [1], [0, 0, 1, 1], [], []>} : vector<8x256xbf16>, vector<256x1024xbf16>, vector<8x1024xf32> -> vector<8x1024xf32>
    %c0_10 = arith.constant 0 : index
    %c0_11 = arith.constant 0 : index
    %16 = vector.load %arg6[%c0_10, %c0_11] : memref<1x1024xf32, #tpu.memory_space<vmem>>, vector<1x1024xf32>
    %17 = vector.broadcast %16 : vector<1x1024xf32> to vector<8x1024xf32>
    %18 = arith.addf %15, %17 : vector<8x1024xf32>
    %cst_12 = arith.constant 0.000000e+00 : f32
    %19 = vector.broadcast %cst_12 : f32 to vector<8x1024xf32>
    %20 = arith.cmpf oge, %18, %19 : vector<8x1024xf32>
    %c0_13 = arith.constant 0 : index
    %21 = memref.load %arg7[%c0_13] : memref<1xf32, #tpu.memory_space<smem>>
    %22 = vector.broadcast %21 : f32 to vector<8x1024xf32>
    %23 = arith.mulf %22, %18 : vector<8x1024xf32>
    %24 = arith.select %20, %18, %23 : vector<8x1024xi1>, vector<8x1024xf32>
    %25 = arith.truncf %24 : vector<8x1024xf32> to vector<8x1024xbf16>
    %c0_14 = arith.constant 0 : index
    %c0_15 = arith.constant 0 : index
    %26 = vector.load %arg8[%c0_14, %c0_15] : memref<1024x512xbf16, #tpu.memory_space<vmem>>, vector<1024x512xbf16>
    %cst_16 = arith.constant dense<0.000000e+00> : vector<8x512xf32>
    %27 = tpu.matmul %25, %26, %cst_16 {dimension_numbers = #tpu.dot_dimension_numbers<[1], [0], [0], [1], [0, 0, 1, 1], [], []>} : vector<8x1024xbf16>, vector<1024x512xbf16>, vector<8x512xf32> -> vector<8x512xf32>
    %c0_17 = arith.constant 0 : index
    %c0_18 = arith.constant 0 : index
    %28 = vector.load %arg9[%c0_17, %c0_18] : memref<1x512xf32, #tpu.memory_space<vmem>>, vector<1x512xf32>
    %29 = vector.broadcast %28 : vector<1x512xf32> to vector<8x512xf32>
    %30 = arith.addf %27, %29 : vector<8x512xf32>
    %c0_19 = arith.constant 0 : index
    %c0_20 = arith.constant 0 : index
    %31 = vector.load %arg10[%c0_19, %c0_20] : memref<8x512xf32, #tpu.memory_space<vmem>>, vector<8x512xf32>
    tpu.vector_store %arg10[%c0_19, %c0_20], %30 {strides = array<i32>} : memref<8x512xf32, #tpu.memory_space<vmem>>, vector<8x512xf32>,
    return
  }
  func.func @transform_0(%arg0: i32) -> (i32, i32) {
    %c0_i32 = arith.constant 0 : i32
    %c0_i32_0 = arith.constant 0 : i32
    return %arg0, %c0_i32 : i32, i32
  }
  func.func @transform_1(%arg0: i32) -> (i32, i32) {
    %c0_i32 = arith.constant 0 : i32
    %c0_i32_0 = arith.constant 0 : i32
    %c0_i32_1 = arith.constant 0 : i32
    return %c0_i32, %c0_i32_0 : i32, i32
  }
  func.func @transform_2(%arg0: i32) -> (i32, i32) {
    %c0_i32 = arith.constant 0 : i32
    %c0_i32_0 = arith.constant 0 : i32
    %c0_i32_1 = arith.constant 0 : i32
    return %c0_i32, %c0_i32_0 : i32, i32
  }
  func.func @transform_3(%arg0: i32) -> i32 {
    %c0_i32 = arith.constant 0 : i32
    %c0_i32_0 = arith.constant 0 : i32
    return %c0_i32 : i32
  }
  func.func @transform_4(%arg0: i32) -> (i32, i32) {
    %c0_i32 = arith.constant 0 : i32
    %c0_i32_0 = arith.constant 0 : i32
    %c0_i32_1 = arith.constant 0 : i32
    return %c0_i32, %c0_i32_0 : i32, i32
  }
  func.func @transform_5(%arg0: i32) -> (i32, i32) {
    %c0_i32 = arith.constant 0 : i32
    %c0_i32_0 = arith.constant 0 : i32
    %c0_i32_1 = arith.constant 0 : i32
    return %c0_i32, %c0_i32_0 : i32, i32
  }
  func.func @transform_6(%arg0: i32) -> i32 {
    %c0_i32 = arith.constant 0 : i32
    %c0_i32_0 = arith.constant 0 : i32
    return %c0_i32 : i32
  }
  func.func @transform_7(%arg0: i32) -> (i32, i32) {
    %c0_i32 = arith.constant 0 : i32
    %c0_i32_0 = arith.constant 0 : i32
    %c0_i32_1 = arith.constant 0 : i32
    return %c0_i32, %c0_i32_0 : i32, i32
  }
  func.func @transform_8(%arg0: i32) -> (i32, i32) {
    %c0_i32 = arith.constant 0 : i32
    %c0_i32_0 = arith.constant 0 : i32
    %c0_i32_1 = arith.constant 0 : i32
    return %c0_i32, %c0_i32_0 : i32, i32
  }
  func.func @transform_9(%arg0: i32) -> (i32, i32) {
    %c0_i32 = arith.constant 0 : i32
    %c0_i32_0 = arith.constant 0 : i32
    return %arg0, %c0_i32 : i32, i32
  }
}

module attributes {stable_mosaic.version = 11 : i64} {
  func.func @_mlp_kernel(%arg0: i32, %arg1: memref<8x192xf32, #tpu.memory_space<vmem>>, %arg2: memref<192x256xbf16, #tpu.memory_space<vmem>>, %arg3: memref<1x256xf32, #tpu.memory_space<vmem>>, %arg4: memref<1xf32, #tpu.memory_space<smem>>, %arg5: memref<256x1024xbf16, #tpu.memory_space<vmem>>, %arg6: memref<1x1024xf32, #tpu.memory_space<vmem>>, %arg7: memref<1xf32, #tpu.memory_space<smem>>, %arg8: memref<1024x512xbf16, #tpu.memory_space<vmem>>, %arg9: memref<1x512xf32, #tpu.memory_space<vmem>>, %arg10: memref<8x512xf32, #tpu.memory_space<vmem>>) attributes {dimension_semantics = [#tpu.dimension_semantics<parallel>], iteration_bounds = array<i64: 1>, scalar_prefetch = 0 : i64, scratch_operands = 0 : i64, tpu.core_type = #tpu.core_type<tc>, window_params = [{transform_indices = @transform_0, window_bounds = array<i64: 8, 192>}, {pipeline_mode = #tpu.pipeline_mode<synchronous>, transform_indices = @transform_1, window_bounds = array<i64: 192, 256>}, {pipeline_mode = #tpu.pipeline_mode<synchronous>, transform_indices = @transform_2, window_bounds = array<i64: 1, 256>}, {transform_indices = @transform_3, window_bounds = array<i64: 1>}, {pipeline_mode = #tpu.pipeline_mode<synchronous>, transform_indices = @transform_4, window_bounds = array<i64: 256, 1024>}, {pipeline_mode = #tpu.pipeline_mode<synchronous>, transform_indices = @transform_5, window_bounds = array<i64: 1, 1024>}, {transform_indices = @transform_6, window_bounds = array<i64: 1>}, {pipeline_mode = #tpu.pipeline_mode<synchronous>, transform_indices = @transform_7, window_bounds = array<i64: 1024, 512>}, {pipeline_mode = #tpu.pipeline_mode<synchronous>, transform_indices = @transform_8, window_bounds = array<i64: 1, 512>}, {transform_indices = @transform_9, window_bounds = array<i64: 8, 512>}]} {
    %c0 = arith.constant 0 : index
    %c0_0 = arith.constant 0 : index
    %0 = vector.load %arg1[%c0, %c0_0] : memref<8x192xf32, #tpu.memory_space<vmem>>, vector<8x192xf32>
    %1 = arith.truncf %0 : vector<8x192xf32> to vector<8x192xbf16>
    %c0_1 = arith.constant 0 : index
    %c0_2 = arith.constant 0 : index
    %2 = vector.load %arg2[%c0_1, %c0_2] : memref<192x256xbf16, #tpu.memory_space<vmem>>, vector<192x256xbf16>
    %cst = arith.constant dense<0.000000e+00> : vector<8x256xf32>
    %3 = tpu.matmul %1, %2, %cst {dimension_numbers = #tpu.dot_dimension_numbers<[1], [0], [0], [1], [0, 0, 1, 1], [], []>} : vector<8x192xbf16>, vector<192x256xbf16>, vector<8x256xf32> -> vector<8x256xf32>
    %c0_3 = arith.constant 0 : index
    %c0_4 = arith.constant 0 : index
    %4 = vector.load %arg3[%c0_3, %c0_4] : memref<1x256xf32, #tpu.memory_space<vmem>>, vector<1x256xf32>
    %5 = vector.broadcast %4 : vector<1x256xf32> to vector<8x256xf32>
    %6 = arith.addf %3, %5 : vector<8x256xf32>
    %cst_5 = arith.constant 0.000000e+00 : f32
    %7 = vector.broadcast %cst_5 : f32 to vector<8x256xf32>
    %8 = arith.cmpf oge, %6, %7 : vector<8x256xf32>
    %c0_6 = arith.constant 0 : index
    %9 = memref.load %arg4[%c0_6] : memref<1xf32, #tpu.memory_space<smem>>
    %10 = vector.broadcast %9 : f32 to vector<8x256xf32>
    %11 = arith.mulf %10, %6 : vector<8x256xf32>
    %12 = arith.select %8, %6, %11 : vector<8x256xi1>, vector<8x256xf32>
    %13 = arith.truncf %12 : vector<8x256xf32> to vector<8x256xbf16>
    %c0_7 = arith.constant 0 : index
    %c0_8 = arith.constant 0 : index
    %14 = vector.load %arg5[%c0_7, %c0_8] : memref<256x1024xbf16, #tpu.memory_space<vmem>>, vector<256x1024xbf16>
    %cst_9 = arith.constant dense<0.000000e+00> : vector<8x1024xf32>
    %15 = tpu.matmul %13, %14, %cst_9 {dimension_numbers = #tpu.dot_dimension_numbers<[1], [0], [0], [1], [0, 0, 1, 1], [], []>} : vector<8x256xbf16>, vector<256x1024xbf16>, vector<8x1024xf32> -> vector<8x1024xf32>
    %c0_10 = arith.constant 0 : index
    %c0_11 = arith.constant 0 : index
    %16 = vector.load %arg6[%c0_10, %c0_11] : memref<1x1024xf32, #tpu.memory_space<vmem>>, vector<1x1024xf32>
    %17 = vector.broadcast %16 : vector<1x1024xf32> to vector<8x1024xf32>
    %18 = arith.addf %15, %17 : vector<8x1024xf32>
    %cst_12 = arith.constant 0.000000e+00 : f32
    %19 = vector.broadcast %cst_12 : f32 to vector<8x1024xf32>
    %20 = arith.cmpf oge, %18, %19 : vector<8x1024xf32>
    %c0_13 = arith.constant 0 : index
    %21 = memref.load %arg7[%c0_13] : memref<1xf32, #tpu.memory_space<smem>>
    %22 = vector.broadcast %21 : f32 to vector<8x1024xf32>
    %23 = arith.mulf %22, %18 : vector<8x1024xf32>
    %24 = arith.select %20, %18, %23 : vector<8x1024xi1>, vector<8x1024xf32>
    %25 = arith.truncf %24 : vector<8x1024xf32> to vector<8x1024xbf16>
    %c0_14 = arith.constant 0 : index
    %c0_15 = arith.constant 0 : index
    %26 = vector.load %arg8[%c0_14, %c0_15] : memref<1024x512xbf16, #tpu.memory_space<vmem>>, vector<1024x512xbf16>
    %cst_16 = arith.constant dense<0.000000e+00> : vector<8x512xf32>
    %27 = tpu.matmul %25, %26, %cst_16 {dimension_numbers = #tpu.dot_dimension_numbers<[1], [0], [0], [1], [0, 0, 1, 1], [], []>} : vector<8x1024xbf16>, vector<1024x512xbf16>, vector<8x512xf32> -> vector<8x512xf32>
    %c0_17 = arith.constant 0 : index
    %c0_18 = arith.constant 0 : index
    %28 = vector.load %arg9[%c0_17, %c0_18] : memref<1x512xf32, #tpu.memory_space<vmem>>, vector<1x512xf32>
    %29 = vector.broadcast %28 : vector<1x512xf32> to vector<8x512xf32>
    %30 = arith.addf %27, %29 : vector<8x512xf32>
    %c0_19 = arith.constant 0 : index
    %c0_20 = arith.constant 0 : index
    %31 = vector.load %arg10[%c0_19, %c0_20] : memref<8x512xf32, #tpu.memory_space<vmem>>, vector<8x512xf32>
    tpu.vector_store %arg10[%c0_19, %c0_20], %30 {strides = array<i32>} : memref<8x512xf32, #tpu.memory_space<vmem>>, vector<8x512xf32>,
    return
  }
  func.func @transform_0(%arg0: i32) -> (i32, i32) {
    %c0_i32 = arith.constant 0 : i32
    %c0_i32_0 = arith.constant 0 : i32
    return %arg0, %c0_i32 : i32, i32
  }
  func.func @transform_1(%arg0: i32) -> (i32, i32) {
    %c0_i32 = arith.constant 0 : i32
    %c0_i32_0 = arith.constant 0 : i32
    %c0_i32_1 = arith.constant 0 : i32
    return %c0_i32, %c0_i32_0 : i32, i32
  }
  func.func @transform_2(%arg0: i32) -> (i32, i32) {
    %c0_i32 = arith.constant 0 : i32
    %c0_i32_0 = arith.constant 0 : i32
    %c0_i32_1 = arith.constant 0 : i32
    return %c0_i32, %c0_i32_0 : i32, i32
  }
  func.func @transform_3(%arg0: i32) -> i32 {
    %c0_i32 = arith.constant 0 : i32
    %c0_i32_0 = arith.constant 0 : i32
    return %c0_i32 : i32
  }
  func.func @transform_4(%arg0: i32) -> (i32, i32) {
    %c0_i32 = arith.constant 0 : i32
    %c0_i32_0 = arith.constant 0 : i32
    %c0_i32_1 = arith.constant 0 : i32
    return %c0_i32, %c0_i32_0 : i32, i32
  }
  func.func @transform_5(%arg0: i32) -> (i32, i32) {
    %c0_i32 = arith.constant 0 : i32
    %c0_i32_0 = arith.constant 0 : i32
    %c0_i32_1 = arith.constant 0 : i32
    return %c0_i32, %c0_i32_0 : i32, i32
  }
  func.func @transform_6(%arg0: i32) -> i32 {
    %c0_i32 = arith.constant 0 : i32
    %c0_i32_0 = arith.constant 0 : i32
    return %c0_i32 : i32
  }
  func.func @transform_7(%arg0: i32) -> (i32, i32) {
    %c0_i32 = arith.constant 0 : i32
    %c0_i32_0 = arith.constant 0 : i32
    %c0_i32_1 = arith.constant 0 : i32
    return %c0_i32, %c0_i32_0 : i32, i32
  }
  func.func @transform_8(%arg0: i32) -> (i32, i32) {
    %c0_i32 = arith.constant 0 : i32
    %c0_i32_0 = arith.constant 0 : i32
    %c0_i32_1 = arith.constant 0 : i32
    return %c0_i32, %c0_i32_0 : i32, i32
  }
  func.func @transform_9(%arg0: i32) -> (i32, i32) {
    %c0_i32 = arith.constant 0 : i32
    %c0_i32_0 = arith.constant 0 : i32
    return %arg0, %c0_i32 : i32, i32
  }
}

</mosaic_0001>

<llo_original>
// kernel: tpu_custom_call.1
$region0: #{tpu_custom_call.1}
  #allocation0 [shape = 'u32[]', space=smem, size = 0x4, offset = 0x4, fixed_abs, tag = 'smem constant byte address 0x4 - core index']
  #allocation1 [shape = 'u32[144,128]{1,0:T(1,128)}', space=vmem, size = 0x12000, scoped, tag = 'internal scratch']
  #allocation2 [shape = 'f32[1]{0:T(128)S(6)}', space=smem, size = 0x200, scoped, tag = 'scoped memory for tpu_custom_call.1']
  #allocation3 [shape = 'f32[1]{0:T(128)S(6)}', space=smem, size = 0x200, scoped, tag = 'scoped memory for tpu_custom_call.1']
  %s0 = inlined_call_operand.hbm [shape: f32[8,192], index: 0, kind: input, shape index: {}]
  %s1 = inlined_call_operand.hbm [shape: bf16[192,256], index: 1, kind: input, shape index: {}]
  %s2 = inlined_call_operand.vmem [shape: f32[1,256], index: 2, kind: input, shape index: {}]
  %s3 = inlined_call_operand.<no memory space> [shape: f32[1], index: 3, kind: input, shape index: {}]
  %s4 = inlined_call_operand.hbm [shape: bf16[256,1024], index: 4, kind: input, shape index: {}]
  %s5 = inlined_call_operand.vmem [shape: f32[1,1024], index: 5, kind: input, shape index: {}]
  %s6 = inlined_call_operand.<no memory space> [shape: f32[1], index: 6, kind: input, shape index: {}]
  %s7 = inlined_call_operand.hbm [shape: bf16[1024,512], index: 7, kind: input, shape index: {}]
  %s8 = inlined_call_operand.vmem [shape: f32[1,512], index: 8, kind: input, shape index: {}]
  %s9 = inlined_call_operand.hbm [shape: f32[8,512], index: 9, kind: output, shape index: {}]
  %s10 = sld [smem:[#allocation0]]
  $region62: #{tpu_custom_call.1} parent=0
    _
  %s12 = ssub.s32 1, %s10
  %s13 = scalar_select 0, %s12, %s10
  %14 = sst [smem:[#allocation2]] %s3
  %15 = sst [smem:[#allocation3]] %s6
  $region1: #{tpu_custom_call.1} parent=0
    #allocation4 [shape = 'u8[8192]{0}', space=vmem, size = 0x2000, scoped, tag = 'input window, operand 0, single buffered']
    #allocation5 [shape = 's32[1]{0}', space=sflag, size = 0x4, scoped, tag = 'scoped memory for tpu_custom_call.1']
    #allocation6 [shape = 's32[1]{0}', space=sflag, size = 0x4, scoped, tag = 'scoped memory for tpu_custom_call.1']
    #allocation7 [shape = 'u8[98304]{0}', space=vmem, size = 0x18000, scoped, tag = 'input window, operand 1, single buffered']
    #allocation8 [shape = 's32[1]{0}', space=sflag, size = 0x4, scoped, tag = 'scoped memory for tpu_custom_call.1']
    #allocation9 [shape = 'u8[524288]{0}', space=vmem, size = 0x80000, scoped, tag = 'input window, operand 4, single buffered']
    #allocation10 [shape = 'u8[1048576]{0}', space=vmem, size = 0x100000, scoped, tag = 'input window, operand 7, single buffered']
    #allocation11 [shape = 's32[1]{0}', space=sflag, size = 0x4, scoped, tag = 'scoped memory for tpu_custom_call.1']
    #allocation12 [shape = 'u8[16384]{0}', space=vmem, size = 0x4000, scoped, tag = 'output window, operand 0, single buffered']
    %16 = vsyncpa [#allocation5], 0
    %17 = vsyncpa [#allocation8], 0
    %18 = vsyncpa [#allocation11], 0
    %19 = vsyncpa [#allocation6], 0
    // Predicated region
    $region2: #{tpu_custom_call.1} parent=1 // pred_check
      _
    $region3: #{tpu_custom_call.1} parent=1 // pred_check_branch
      %21 = sbr.rel (0) target = $region5
    $region4: #{tpu_custom_call.1} parent=1 // pred_region
      %s23 = ssub.s32 256, 256
      %24 = vsyncadd [#allocation5], %s23
      %s26 = sshll.u32 [#allocation4], 4
      %s27 = int_to_ptr.vmem [resolvable:$true] %s26
      %29 = dma.hbm_to_vmem [thread:$0]  %s0, 256, %s27, [#allocation5]
    $region5: #{tpu_custom_call.1} parent=1 // pred_fallthru
      _
    // Predicated region
    $region6: #{tpu_custom_call.1} parent=1 // pred_check
      _
    $region7: #{tpu_custom_call.1} parent=1 // pred_check_branch
      %31 = sbr.rel (0) target = $region9
    $region8: #{tpu_custom_call.1} parent=1 // pred_region
      %s33 = ssub.s32 3072, 3072
      %34 = vsyncadd [#allocation8], %s33
      %s35 = sshll.u32 [#allocation7], 4
      %s36 = int_to_ptr.vmem [resolvable:$true] %s35
      %41 = dma.hbm_to_vmem [thread:$0]  %s1, 3072, %s36, [#allocation8], 128, 128, 8
    $region9: #{tpu_custom_call.1} parent=1 // pred_fallthru
      _
    // Predicated region
    $region10: #{tpu_custom_call.1} parent=1 // pred_check
      _
    $region11: #{tpu_custom_call.1} parent=1 // pred_check_branch
      %43 = sbr.rel (0) target = $region13
    $region12: #{tpu_custom_call.1} parent=1 // pred_region
      _
    $region13: #{tpu_custom_call.1} parent=1 // pred_fallthru
      _
    // Predicated region
    $region14: #{tpu_custom_call.1} parent=1 // pred_check
      _
    $region15: #{tpu_custom_call.1} parent=1 // pred_check_branch
      %45 = sbr.rel (0) target = $region17
    $region16: #{tpu_custom_call.1} parent=1 // pred_region
      _
    $region17: #{tpu_custom_call.1} parent=1 // pred_fallthru
      _
    // Predicated region
    $region18: #{tpu_custom_call.1} parent=1 // pred_check
      _
    $region19: #{tpu_custom_call.1} parent=1 // pred_check_branch
      %47 = sbr.rel (0) target = $region21
    $region20: #{tpu_custom_call.1} parent=1 // pred_region
      %s49 = ssub.s32 16384, 16384
      %50 = vsyncadd [#allocation8], %s49
      %s51 = sshll.u32 [#allocation9], 4
      %s52 = int_to_ptr.vmem [resolvable:$true] %s51
      %57 = dma.hbm_to_vmem [thread:$0]  %s4, 16384, %s52, [#allocation8], 512, 512, 32
    $region21: #{tpu_custom_call.1} parent=1 // pred_fallthru
      _
    // Predicated region
    $region22: #{tpu_custom_call.1} parent=1 // pred_check
      _
    $region23: #{tpu_custom_call.1} parent=1 // pred_check_branch
      %59 = sbr.rel (0) target = $region25
    $region24: #{tpu_custom_call.1} parent=1 // pred_region
      _
    $region25: #{tpu_custom_call.1} parent=1 // pred_fallthru
      _
    // Predicated region
    $region26: #{tpu_custom_call.1} parent=1 // pred_check
      _
    $region27: #{tpu_custom_call.1} parent=1 // pred_check_branch
      %61 = sbr.rel (0) target = $region29
    $region28: #{tpu_custom_call.1} parent=1 // pred_region
      _
    $region29: #{tpu_custom_call.1} parent=1 // pred_fallthru
      _
    // Predicated region
    $region30: #{tpu_custom_call.1} parent=1 // pred_check
      _
    $region31: #{tpu_custom_call.1} parent=1 // pred_check_branch
      %63 = sbr.rel (0) target = $region33
    $region32: #{tpu_custom_call.1} parent=1 // pred_region
      %s65 = ssub.s32 32768, 32768
      %66 = vsyncadd [#allocation11], %s65
      %s67 = sshll.u32 [#allocation10], 4
      %s68 = int_to_ptr.vmem [resolvable:$true] %s67
      %73 = dma.hbm_to_vmem [thread:$0]  %s7, 32768, %s68, [#allocation11], 256, 256, 16
    $region33: #{tpu_custom_call.1} parent=1 // pred_fallthru
      _
    // Predicated region
    $region34: #{tpu_custom_call.1} parent=1 // pred_check
      _
    $region35: #{tpu_custom_call.1} parent=1 // pred_check_branch
      %75 = sbr.rel (0) target = $region37
    $region36: #{tpu_custom_call.1} parent=1 // pred_region
      _
    $region37: #{tpu_custom_call.1} parent=1 // pred_fallthru
      _
    // Predicated region
    $region38: #{tpu_custom_call.1} parent=1 // pred_check
      _
    $region39: #{tpu_custom_call.1} parent=1 // pred_check_branch
      %77 = sbr.rel (0) target = $region41
    $region40: #{tpu_custom_call.1} parent=1 // pred_region
      %78 = dma.done [#allocation5], 256
    $region41: #{tpu_custom_call.1} parent=1 // pred_fallthru
      _
    // Predicated region
    $region42: #{tpu_custom_call.1} parent=1 // pred_check
      _
    $region43: #{tpu_custom_call.1} parent=1 // pred_check_branch
      %80 = sbr.rel (0) target = $region45
    $region44: #{tpu_custom_call.1} parent=1 // pred_region
      %81 = dma.done [#allocation8], 3072
    $region45: #{tpu_custom_call.1} parent=1 // pred_fallthru
      _
    // Predicated region
    $region46: #{tpu_custom_call.1} parent=1 // pred_check
      _
    $region47: #{tpu_custom_call.1} parent=1 // pred_check_branch
      %83 = sbr.rel (0) target = $region49
    $region48: #{tpu_custom_call.1} parent=1 // pred_region
      %84 = dma.done [#allocation8], 16384
    $region49: #{tpu_custom_call.1} parent=1 // pred_fallthru
      _
    // Predicated region
    $region50: #{tpu_custom_call.1} parent=1 // pred_check
      _
    $region51: #{tpu_custom_call.1} parent=1 // pred_check_branch
      %86 = sbr.rel (0) target = $region53
    $region52: #{tpu_custom_call.1} parent=1 // pred_region
      %87 = dma.done [#allocation11], 32768
    $region53: #{tpu_custom_call.1} parent=1 // pred_fallthru
      _
    %v89 = vld [vmem:[#allocation4] sm:$0xff]
    %v90 = vld [vmem:[#allocation4 + $0x8] sm:$0xff]
    %v91 = vpack.c.bf16 %v89, %v89
    %v92 = vpack.c.bf16 %v90, %v90
    %v93 = vld [vmem:[#allocation7] sm:$0xff]
    %v94 = vld [vmem:[#allocation7 + $0x8] sm:$0xff]
    %v95 = vld [vmem:[#allocation7 + $0x10] sm:$0xff]
    %v96 = vld [vmem:[#allocation7 + $0x18] sm:$0xff]
    %v97 = vld [vmem:[#allocation7 + $0x20] sm:$0xff]
    %v98 = vld [vmem:[#allocation7 + $0x28] sm:$0xff]
    %v99 = vld [vmem:[#allocation7 + $0x30] sm:$0xff]
    %v100 = vld [vmem:[#allocation7 + $0x38] sm:$0xff]
    %v101 = vld [vmem:[#allocation7 + $0x40] sm:$0xff]
    %v102 = vld [vmem:[#allocation7 + $0x48] sm:$0xff]
    %v103 = vld [vmem:[#allocation7 + $0x50] sm:$0xff]
    %v104 = vld [vmem:[#allocation7 + $0x58] sm:$0xff]
    %v105 = vld [vmem:[#allocation7 + $0x60] sm:$0xff]
    %v106 = vld [vmem:[#allocation7 + $0x68] sm:$0xff]
    %v107 = vld [vmem:[#allocation7 + $0x70] sm:$0xff]
    %v108 = vld [vmem:[#allocation7 + $0x78] sm:$0xff]
    %v109 = vld [vmem:[#allocation7 + $0x80] sm:$0xff]
    %v110 = vld [vmem:[#allocation7 + $0x88] sm:$0xff]
    %v111 = vld [vmem:[#allocation7 + $0x90] sm:$0xff]
    %v112 = vld [vmem:[#allocation7 + $0x98] sm:$0xff]
    %v113 = vld [vmem:[#allocation7 + $0xa0] sm:$0xff]
    %v114 = vld [vmem:[#allocation7 + $0xa8] sm:$0xff]
    %v115 = vld [vmem:[#allocation7 + $0xb0] sm:$0xff]
    %v116 = vld [vmem:[#allocation7 + $0xb8] sm:$0xff]
    %v117 = vld [vmem:[%s2] sm:$0x3]
    %v119 = vlaneseq
    %v120 = vshrl.u32 %v119, 7
    %v121 = vsub.s32 0, %v120
    %v122 = vrot.slane %v117, %v121
    %v123 = vlaneseq
    %v124 = vshrl.u32 %v123, 7
    %v125 = vsub.s32 1, %v124
    %v126 = vrot.slane %v117, %v125
    %v153 = vunpack.c.l.b16 %v93
    %v154 = vunpack.c.h.b16 %v93
    %v155 = vunpack.c.l.b16 %v94
    %v156 = vunpack.c.h.b16 %v94
    %v157 = vunpack.c.l.b16 %v95
    %v158 = vunpack.c.h.b16 %v95
    %v159 = vunpack.c.l.b16 %v96
    %v160 = vunpack.c.h.b16 %v96
    %v161 = vunpack.c.l.b16 %v97
    %v162 = vunpack.c.h.b16 %v97
    %v163 = vunpack.c.l.b16 %v98
    %v164 = vunpack.c.h.b16 %v98
    %v165 = vunpack.c.l.b16 %v99
    %v166 = vunpack.c.h.b16 %v99
    %v167 = vunpack.c.l.b16 %v100
    %v168 = vunpack.c.h.b16 %v100
    %v169 = vunpack.c.l.b16 %v101
    %v170 = vunpack.c.h.b16 %v101
    %v171 = vunpack.c.l.b16 %v102
    %v172 = vunpack.c.h.b16 %v102
    %v173 = vunpack.c.l.b16 %v103
    %v174 = vunpack.c.h.b16 %v103
    %v175 = vunpack.c.l.b16 %v104
    %v176 = vunpack.c.h.b16 %v104
    %v177 = vunpack.c.l.b16 %v105
    %v178 = vunpack.c.h.b16 %v105
    %v179 = vunpack.c.l.b16 %v106
    %v180 = vunpack.c.h.b16 %v106
    %v181 = vunpack.c.l.b16 %v107
    %v182 = vunpack.c.h.b16 %v107
    %v183 = vunpack.c.l.b16 %v108
    %v184 = vunpack.c.h.b16 %v108
    %v185 = vunpack.c.l.b16 %v109
    %v186 = vunpack.c.h.b16 %v109
    %v187 = vunpack.c.l.b16 %v110
    %v188 = vunpack.c.h.b16 %v110
    %v189 = vunpack.c.l.b16 %v111
    %v190 = vunpack.c.h.b16 %v111
    %v191 = vunpack.c.l.b16 %v112
    %v192 = vunpack.c.h.b16 %v112
    %v193 = vunpack.c.l.b16 %v113
    %v194 = vunpack.c.h.b16 %v113
    %v195 = vunpack.c.l.b16 %v114
    %v196 = vunpack.c.h.b16 %v114
    %v197 = vunpack.c.l.b16 %v115
    %v198 = vunpack.c.h.b16 %v115
    %v199 = vunpack.c.l.b16 %v116
    %v200 = vunpack.c.h.b16 %v116
    %v201 = vpack.c.b16 %v155, %v153
    %v202 = vpack.c.b16 %v156, %v154
    %v203 = vpack.c.b16 %v159, %v157
    %v204 = vpack.c.b16 %v160, %v158
    %v205 = vpack.c.b16 %v163, %v161
    %v206 = vpack.c.b16 %v164, %v162
    %v207 = vpack.c.b16 %v167, %v165
    %v208 = vpack.c.b16 %v168, %v166
    %v209 = vpack.c.b16 %v171, %v169
    %v210 = vpack.c.b16 %v172, %v170
    %v211 = vpack.c.b16 %v175, %v173
    %v212 = vpack.c.b16 %v176, %v174
    %v213 = vpack.c.b16 %v179, %v177
    %v214 = vpack.c.b16 %v180, %v178
    %v215 = vpack.c.b16 %v183, %v181
    %v216 = vpack.c.b16 %v184, %v182
    %v217 = vpack.c.b16 %v187, %v185
    %v218 = vpack.c.b16 %v188, %v186
    %v219 = vpack.c.b16 %v191, %v189
    %v220 = vpack.c.b16 %v192, %v190
    %v221 = vpack.c.b16 %v195, %v193
    %v222 = vpack.c.b16 %v196, %v194
    %v223 = vpack.c.b16 %v199, %v197
    %v224 = vpack.c.b16 %v200, %v198
    %vm249 = vcmask 523264
    %v251 = vsel %vm249, %v92, 0
    %253 = vmatprep.subr.bf16.mxu0 %v202
    %254 = vmatpush1.bf16.msra.mxu0 %v201
    %255 = vmatprep.subr.bf16.mxu0 %v204
    %256 = vmatpush1.bf16.msra.mxu0 %v203
    %257 = vmatprep.subr.bf16.mxu0 %v206
    %258 = vmatpush1.bf16.msra.mxu0 %v205
    %259 = vmatprep.subr.bf16.mxu0 %v208
    %260 = vmatpush1.bf16.msra.mxu0 %v207
    %261 = vmatprep.subr.bf16.mxu0 %v210
    %262 = vmatpush1.bf16.msra.mxu0 %v209
    %263 = vmatprep.subr.bf16.mxu0 %v212
    %264 = vmatpush1.bf16.msra.mxu0 %v211
    %265 = vmatprep.subr.bf16.mxu0 %v214
    %266 = vmatpush1.bf16.msra.mxu0 %v213
    %267 = vmatprep.subr.bf16.mxu0 %v216
    %268 = vmatpush1.bf16.msra.mxu0 %v215
    %269 = vmatprep.subr.bf16.mxu0 %v218
    %270 = vmatpush1.bf16.msra.mxu0 %v217
    %271 = vmatprep.subr.bf16.mxu0 %v220
    %272 = vmatpush1.bf16.msra.mxu0 %v219
    %273 = vmatprep.subr.bf16.mxu0 %v222
    %274 = vmatpush1.bf16.msra.mxu0 %v221
    %275 = vmatprep.subr.bf16.mxu0 %v224
    %276 = vmatpush1.bf16.msra.mxu0 %v223
    %277 = vmatprep.subr.bf16.mxu0 0
    %278 = vmatpush1.bf16.msra.mxu0 0
    %279 = vmatprep.subr.bf16.mxu0 0
    %280 = vmatpush1.bf16.msra.mxu0 0
    %281 = vmatprep.subr.bf16.mxu0 0
    %282 = vmatpush1.bf16.msra.mxu0 0
    %283 = vmatprep.subr.bf16.mxu0 0
    %284 = vmatpush1.bf16.msra.mxu0 0
    %285 = vmatprep.mubr.bf16.mxu0 %v251
    %286 = vmatmul.mubr.bf16.gmra.mrb[0].mxu0 %v91
    %v287 = vpop.f32.mrb[0].mxu0
    %v288 = vadd.f32 %v122, %v287
    %v289 = vpop.f32.mrb[0].mxu0
    %v290 = vadd.f32 %v126, %v289
    %v291 = vpop.f32.mrb[0].mxu0
    %v292 = vpop.f32.mrb[0].mxu0
    %293 = vdwg.mxu0
    %vm294 = vcmp.ge.f32.partialorder %v288, 0.0
    %vm295 = vcmp.ge.f32.partialorder %v290, 0.0
    %s296 = sld [smem:[#allocation2]]
    %v297 = vstv %s296
    %v298 = vmul.f32 %v297, %v288
    %v299 = vmul.f32 %v297, %v290
    %v300 = vsel %vm294, %v288, %v298
    %v301 = vsel %vm295, %v290, %v299
    %v302 = vpack.c.bf16 %v300, %v300
    %v303 = vpack.c.bf16 %v301, %v301
    %v304 = vld [vmem:[#allocation9] sm:$0xff]
    %v305 = vld [vmem:[#allocation9 + $0x8] sm:$0xff]
    %v306 = vld [vmem:[#allocation9 + $0x10] sm:$0xff]
    %v307 = vld [vmem:[#allocation9 + $0x18] sm:$0xff]
    %v308 = vld [vmem:[#allocation9 + $0x20] sm:$0xff]
    %v309 = vld [vmem:[#allocation9 + $0x28] sm:$0xff]
    %v310 = vld [vmem:[#allocation9 + $0x30] sm:$0xff]
    %v311 = vld [vmem:[#allocation9 + $0x38] sm:$0xff]
    %v312 = vld [vmem:[#allocation9 + $0x40] sm:$0xff]
    %v313 = vld [vmem:[#allocation9 + $0x48] sm:$0xff]
    %v314 = vld [vmem:[#allocation9 + $0x50] sm:$0xff]
    %v315 = vld [vmem:[#allocation9 + $0x58] sm:$0xff]
    %v316 = vld [vmem:[#allocation9 + $0x60] sm:$0xff]
    %v317 = vld [vmem:[#allocation9 + $0x68] sm:$0xff]
    %v318 = vld [vmem:[#allocation9 + $0x70] sm:$0xff]
    %v319 = vld [vmem:[#allocation9 + $0x78] sm:$0xff]
    %v320 = vld [vmem:[#allocation9 + $0x80] sm:$0xff]
    %v321 = vld [vmem:[#allocation9 + $0x88] sm:$0xff]
    %v322 = vld [vmem:[#allocation9 + $0x90] sm:$0xff]
    %v323 = vld [vmem:[#allocation9 + $0x98] sm:$0xff]
    %v324 = vld [vmem:[#allocation9 + $0xa0] sm:$0xff]
    %v325 = vld [vmem:[#allocation9 + $0xa8] sm:$0xff]
    %v326 = vld [vmem:[#allocation9 + $0xb0] sm:$0xff]
    %v327 = vld [vmem:[#allocation9 + $0xb8] sm:$0xff]
    %v328 = vld [vmem:[#allocation9 + $0xc0] sm:$0xff]
    %v329 = vld [vmem:[#allocation9 + $0xc8] sm:$0xff]
    %v330 = vld [vmem:[#allocation9 + $0xd0] sm:$0xff]
    %v331 = vld [vmem:[#allocation9 + $0xd8] sm:$0xff]
    %v332 = vld [vmem:[#allocation9 + $0xe0] sm:$0xff]
    %v333 = vld [vmem:[#allocation9 + $0xe8] sm:$0xff]
    %v334 = vld [vmem:[#allocation9 + $0xf0] sm:$0xff]
    %v335 = vld [vmem:[#allocation9 + $0xf8] sm:$0xff]
    %v336 = vld [vmem:[#allocation9 + $0x100] sm:$0xff]
    %v337 = vld [vmem:[#allocation9 + $0x108] sm:$0xff]
    %v338 = vld [vmem:[#allocation9 + $0x110] sm:$0xff]
    %v339 = vld [vmem:[#allocation9 + $0x118] sm:$0xff]
    %v340 = vld [vmem:[#allocation9 + $0x120] sm:$0xff]
    %v341 = vld [vmem:[#allocation9 + $0x128] sm:$0xff]
    %v342 = vld [vmem:[#allocation9 + $0x130] sm:$0xff]
    %v343 = vld [vmem:[#allocation9 + $0x138] sm:$0xff]
    %v344 = vld [vmem:[#allocation9 + $0x140] sm:$0xff]
    %v345 = vld [vmem:[#allocation9 + $0x148] sm:$0xff]
    %v346 = vld [vmem:[#allocation9 + $0x150] sm:$0xff]
    %v347 = vld [vmem:[#allocation9 + $0x158] sm:$0xff]
    %v348 = vld [vmem:[#allocation9 + $0x160] sm:$0xff]
    %v349 = vld [vmem:[#allocation9 + $0x168] sm:$0xff]
    %v350 = vld [vmem:[#allocation9 + $0x170] sm:$0xff]
    %v351 = vld [vmem:[#allocation9 + $0x178] sm:$0xff]
    %v352 = vld [vmem:[#allocation9 + $0x180] sm:$0xff]
    %v353 = vld [vmem:[#allocation9 + $0x188] sm:$0xff]
    %v354 = vld [vmem:[#allocation9 + $0x190] sm:$0xff]
    %v355 = vld [vmem:[#allocation9 + $0x198] sm:$0xff]
    %v356 = vld [vmem:[#allocation9 + $0x1a0] sm:$0xff]
    %v357 = vld [vmem:[#allocation9 + $0x1a8] sm:$0xff]
    %v358 = vld [vmem:[#allocation9 + $0x1b0] sm:$0xff]
    %v359 = vld [vmem:[#allocation9 + $0x1b8] sm:$0xff]
    %v360 = vld [vmem:[#allocation9 + $0x1c0] sm:$0xff]
    %v361 = vld [vmem:[#allocation9 + $0x1c8] sm:$0xff]
    %v362 = vld [vmem:[#allocation9 + $0x1d0] sm:$0xff]
    %v363 = vld [vmem:[#allocation9 + $0x1d8] sm:$0xff]
    %v364 = vld [vmem:[#allocation9 + $0x1e0] sm:$0xff]
    %v365 = vld [vmem:[#allocation9 + $0x1e8] sm:$0xff]
    %v366 = vld [vmem:[#allocation9 + $0x1f0] sm:$0xff]
    %v367 = vld [vmem:[#allocation9 + $0x1f8] sm:$0xff]
    %v368 = vld [vmem:[#allocation9 + $0x200] sm:$0xff]
    %v369 = vld [vmem:[#allocation9 + $0x208] sm:$0xff]
    %v370 = vld [vmem:[#allocation9 + $0x210] sm:$0xff]
    %v371 = vld [vmem:[#allocation9 + $0x218] sm:$0xff]
    %v372 = vld [vmem:[#allocation9 + $0x220] sm:$0xff]
    %v373 = vld [vmem:[#allocation9 + $0x228] sm:$0xff]
    %v374 = vld [vmem:[#allocation9 + $0x230] sm:$0xff]
    %v375 = vld [vmem:[#allocation9 + $0x238] sm:$0xff]
    %v376 = vld [vmem:[#allocation9 + $0x240] sm:$0xff]
    %v377 = vld [vmem:[#allocation9 + $0x248] sm:$0xff]
    %v378 = vld [vmem:[#allocation9 + $0x250] sm:$0xff]
    %v379 = vld [vmem:[#allocation9 + $0x258] sm:$0xff]
    %v380 = vld [vmem:[#allocation9 + $0x260] sm:$0xff]
    %v381 = vld [vmem:[#allocation9 + $0x268] sm:$0xff]
    %v382 = vld [vmem:[#allocation9 + $0x270] sm:$0xff]
    %v383 = vld [vmem:[#allocation9 + $0x278] sm:$0xff]
    %v384 = vld [vmem:[#allocation9 + $0x280] sm:$0xff]
    %v385 = vld [vmem:[#allocation9 + $0x288] sm:$0xff]
    %v386 = vld [vmem:[#allocation9 + $0x290] sm:$0xff]
    %v387 = vld [vmem:[#allocation9 + $0x298] sm:$0xff]
    %v388 = vld [vmem:[#allocation9 + $0x2a0] sm:$0xff]
    %v389 = vld [vmem:[#allocation9 + $0x2a8] sm:$0xff]
    %v390 = vld [vmem:[#allocation9 + $0x2b0] sm:$0xff]
    %v391 = vld [vmem:[#allocation9 + $0x2b8] sm:$0xff]
    %v392 = vld [vmem:[#allocation9 + $0x2c0] sm:$0xff]
    %v393 = vld [vmem:[#allocation9 + $0x2c8] sm:$0xff]
    %v394 = vld [vmem:[#allocation9 + $0x2d0] sm:$0xff]
    %v395 = vld [vmem:[#allocation9 + $0x2d8] sm:$0xff]
    %v396 = vld [vmem:[#allocation9 + $0x2e0] sm:$0xff]
    %v397 = vld [vmem:[#allocation9 + $0x2e8] sm:$0xff]
    %v398 = vld [vmem:[#allocation9 + $0x2f0] sm:$0xff]
    %v399 = vld [vmem:[#allocation9 + $0x2f8] sm:$0xff]
    %v400 = vld [vmem:[#allocation9 + $0x300] sm:$0xff]
    %v401 = vld [vmem:[#allocation9 + $0x308] sm:$0xff]
    %v402 = vld [vmem:[#allocation9 + $0x310] sm:$0xff]
    %v403 = vld [vmem:[#allocation9 + $0x318] sm:$0xff]
    %v404 = vld [vmem:[#allocation9 + $0x320] sm:$0xff]
    %v405 = vld [vmem:[#allocation9 + $0x328] sm:$0xff]
    %v406 = vld [vmem:[#allocation9 + $0x330] sm:$0xff]
    %v407 = vld [vmem:[#allocation9 + $0x338] sm:$0xff]
    %v408 = vld [vmem:[#allocation9 + $0x340] sm:$0xff]
    %v409 = vld [vmem:[#allocation9 + $0x348] sm:$0xff]
    %v410 = vld [vmem:[#allocation9 + $0x350] sm:$0xff]
    %v411 = vld [vmem:[#allocation9 + $0x358] sm:$0xff]
    %v412 = vld [vmem:[#allocation9 + $0x360] sm:$0xff]
    %v413 = vld [vmem:[#allocation9 + $0x368] sm:$0xff]
    %v414 = vld [vmem:[#allocation9 + $0x370] sm:$0xff]
    %v415 = vld [vmem:[#allocation9 + $0x378] sm:$0xff]
    %v416 = vld [vmem:[#allocation9 + $0x380] sm:$0xff]
    %v417 = vld [vmem:[#allocation9 + $0x388] sm:$0xff]
    %v418 = vld [vmem:[#allocation9 + $0x390] sm:$0xff]
    %v419 = vld [vmem:[#allocation9 + $0x398] sm:$0xff]
    %v420 = vld [vmem:[#allocation9 + $0x3a0] sm:$0xff]
    %v421 = vld [vmem:[#allocation9 + $0x3a8] sm:$0xff]
    %v422 = vld [vmem:[#allocation9 + $0x3b0] sm:$0xff]
    %v423 = vld [vmem:[#allocation9 + $0x3b8] sm:$0xff]
    %v424 = vld [vmem:[#allocation9 + $0x3c0] sm:$0xff]
    %v425 = vld [vmem:[#allocation9 + $0x3c8] sm:$0xff]
    %v426 = vld [vmem:[#allocation9 + $0x3d0] sm:$0xff]
    %v427 = vld [vmem:[#allocation9 + $0x3d8] sm:$0xff]
    %v428 = vld [vmem:[#allocation9 + $0x3e0] sm:$0xff]
    %v429 = vld [vmem:[#allocation9 + $0x3e8] sm:$0xff]
    %v430 = vld [vmem:[#allocation9 + $0x3f0] sm:$0xff]
    %v431 = vld [vmem:[#allocation9 + $0x3f8] sm:$0xff]
    %v432 = vld [vmem:[%s5] sm:$0xff]
    %v434 = vlaneseq
    %v435 = vshrl.u32 %v434, 7
    %v436 = vsub.s32 0, %v435
    %v437 = vrot.slane %v432, %v436
    %v438 = vlaneseq
    %v439 = vshrl.u32 %v438, 7
    %v440 = vsub.s32 1, %v439
    %v441 = vrot.slane %v432, %v440
    %v442 = vlaneseq
    %v443 = vshrl.u32 %v442, 7
    %v444 = vsub.s32 2, %v443
    %v445 = vrot.slane %v432, %v444
    %v446 = vlaneseq
    %v447 = vshrl.u32 %v446, 7
    %v448 = vsub.s32 3, %v447
    %v449 = vrot.slane %v432, %v448
    %v450 = vlaneseq
    %v451 = vshrl.u32 %v450, 7
    %v452 = vsub.s32 4, %v451
    %v453 = vrot.slane %v432, %v452
    %v454 = vlaneseq
    %v455 = vshrl.u32 %v454, 7
    %v456 = vsub.s32 5, %v455
    %v457 = vrot.slane %v432, %v456
    %v458 = vlaneseq
    %v459 = vshrl.u32 %v458, 7
    %v460 = vsub.s32 6, %v459
    %v461 = vrot.slane %v432, %v460
    %v462 = vlaneseq
    %v463 = vshrl.u32 %v462, 7
    %v464 = vsub.s32 7, %v463
    %v465 = vrot.slane %v432, %v464
    %v602 = vunpack.c.l.b16 %v304
    %v603 = vunpack.c.h.b16 %v304
    %v604 = vunpack.c.l.b16 %v305
    %v605 = vunpack.c.h.b16 %v305
    %v606 = vunpack.c.l.b16 %v306
    %v607 = vunpack.c.h.b16 %v306
    %v608 = vunpack.c.l.b16 %v307
    %v609 = vunpack.c.h.b16 %v307
    %v610 = vunpack.c.l.b16 %v308
    %v611 = vunpack.c.h.b16 %v308
    %v612 = vunpack.c.l.b16 %v309
    %v613 = vunpack.c.h.b16 %v309
    %v614 = vunpack.c.l.b16 %v310
    %v615 = vunpack.c.h.b16 %v310
    %v616 = vunpack.c.l.b16 %v311
    %v617 = vunpack.c.h.b16 %v311
    %v618 = vunpack.c.l.b16 %v312
    %v619 = vunpack.c.h.b16 %v312
    %v620 = vunpack.c.l.b16 %v313
    %v621 = vunpack.c.h.b16 %v313
    %v622 = vunpack.c.l.b16 %v314
    %v623 = vunpack.c.h.b16 %v314
    %v624 = vunpack.c.l.b16 %v315
    %v625 = vunpack.c.h.b16 %v315
    %v626 = vunpack.c.l.b16 %v316
    %v627 = vunpack.c.h.b16 %v316
    %v628 = vunpack.c.l.b16 %v317
    %v629 = vunpack.c.h.b16 %v317
    %v630 = vunpack.c.l.b16 %v318
    %v631 = vunpack.c.h.b16 %v318
    %v632 = vunpack.c.l.b16 %v319
    %v633 = vunpack.c.h.b16 %v319
    %v634 = vunpack.c.l.b16 %v320
    %v635 = vunpack.c.h.b16 %v320
    %v636 = vunpack.c.l.b16 %v321
    %v637 = vunpack.c.h.b16 %v321
    %v638 = vunpack.c.l.b16 %v322
    %v639 = vunpack.c.h.b16 %v322
    %v640 = vunpack.c.l.b16 %v323
    %v641 = vunpack.c.h.b16 %v323
    %v642 = vunpack.c.l.b16 %v324
    %v643 = vunpack.c.h.b16 %v324
    %v644 = vunpack.c.l.b16 %v325
    %v645 = vunpack.c.h.b16 %v325
    %v646 = vunpack.c.l.b16 %v326
    %v647 = vunpack.c.h.b16 %v326
    %v648 = vunpack.c.l.b16 %v327
    %v649 = vunpack.c.h.b16 %v327
    %v650 = vunpack.c.l.b16 %v328
    %v651 = vunpack.c.h.b16 %v328
    %v652 = vunpack.c.l.b16 %v329
    %v653 = vunpack.c.h.b16 %v329
    %v654 = vunpack.c.l.b16 %v330
    %v655 = vunpack.c.h.b16 %v330
    %v656 = vunpack.c.l.b16 %v331
    %v657 = vunpack.c.h.b16 %v331
    %v658 = vunpack.c.l.b16 %v332
    %v659 = vunpack.c.h.b16 %v332
    %v660 = vunpack.c.l.b16 %v333
    %v661 = vunpack.c.h.b16 %v333
    %v662 = vunpack.c.l.b16 %v334
    %v663 = vunpack.c.h.b16 %v334
    %v664 = vunpack.c.l.b16 %v335
    %v665 = vunpack.c.h.b16 %v335
    %v666 = vunpack.c.l.b16 %v336
    %v667 = vunpack.c.h.b16 %v336
    %v668 = vunpack.c.l.b16 %v337
    %v669 = vunpack.c.h.b16 %v337
    %v670 = vunpack.c.l.b16 %v338
    %v671 = vunpack.c.h.b16 %v338
    %v672 = vunpack.c.l.b16 %v339
    %v673 = vunpack.c.h.b16 %v339
    %v674 = vunpack.c.l.b16 %v340
    %v675 = vunpack.c.h.b16 %v340
    %v676 = vunpack.c.l.b16 %v341
    %v677 = vunpack.c.h.b16 %v341
    %v678 = vunpack.c.l.b16 %v342
    %v679 = vunpack.c.h.b16 %v342
    %v680 = vunpack.c.l.b16 %v343
    %v681 = vunpack.c.h.b16 %v343
    %v682 = vunpack.c.l.b16 %v344
    %v683 = vunpack.c.h.b16 %v344
    %v684 = vunpack.c.l.b16 %v345
    %v685 = vunpack.c.h.b16 %v345
    %v686 = vunpack.c.l.b16 %v346
    %v687 = vunpack.c.h.b16 %v346
    %v688 = vunpack.c.l.b16 %v347
    %v689 = vunpack.c.h.b16 %v347
    %v690 = vunpack.c.l.b16 %v348
    %v691 = vunpack.c.h.b16 %v348
    %v692 = vunpack.c.l.b16 %v349
    %v693 = vunpack.c.h.b16 %v349
    %v694 = vunpack.c.l.b16 %v350
    %v695 = vunpack.c.h.b16 %v350
    %v696 = vunpack.c.l.b16 %v351
    %v697 = vunpack.c.h.b16 %v351
    %v698 = vunpack.c.l.b16 %v352
    %v699 = vunpack.c.h.b16 %v352
    %v700 = vunpack.c.l.b16 %v353
    %v701 = vunpack.c.h.b16 %v353
    %v702 = vunpack.c.l.b16 %v354
    %v703 = vunpack.c.h.b16 %v354
    %v704 = vunpack.c.l.b16 %v355
    %v705 = vunpack.c.h.b16 %v355
    %v706 = vunpack.c.l.b16 %v356
    %v707 = vunpack.c.h.b16 %v356
    %v708 = vunpack.c.l.b16 %v357
    %v709 = vunpack.c.h.b16 %v357
    %v710 = vunpack.c.l.b16 %v358
    %v711 = vunpack.c.h.b16 %v358
    %v712 = vunpack.c.l.b16 %v359
    %v713 = vunpack.c.h.b16 %v359
    %v714 = vunpack.c.l.b16 %v360
    %v715 = vunpack.c.h.b16 %v360
    %v716 = vunpack.c.l.b16 %v361
    %v717 = vunpack.c.h.b16 %v361
    %v718 = vunpack.c.l.b16 %v362
    %v719 = vunpack.c.h.b16 %v362
    %v720 = vunpack.c.l.b16 %v363
    %v721 = vunpack.c.h.b16 %v363
    %v722 = vunpack.c.l.b16 %v364
    %v723 = vunpack.c.h.b16 %v364
    %v724 = vunpack.c.l.b16 %v365
    %v725 = vunpack.c.h.b16 %v365
    %v726 = vunpack.c.l.b16 %v366
    %v727 = vunpack.c.h.b16 %v366
    %v728 = vunpack.c.l.b16 %v367
    %v729 = vunpack.c.h.b16 %v367
    %v730 = vunpack.c.l.b16 %v368
    %v731 = vunpack.c.h.b16 %v368
    %v732 = vunpack.c.l.b16 %v369
    %v733 = vunpack.c.h.b16 %v369
    %v734 = vunpack.c.l.b16 %v370
    %v735 = vunpack.c.h.b16 %v370
    %v736 = vunpack.c.l.b16 %v371
    %v737 = vunpack.c.h.b16 %v371
    %v738 = vunpack.c.l.b16 %v372
    %v739 = vunpack.c.h.b16 %v372
    %v740 = vunpack.c.l.b16 %v373
    %v741 = vunpack.c.h.b16 %v373
    %v742 = vunpack.c.l.b16 %v374
    %v743 = vunpack.c.h.b16 %v374
    %v744 = vunpack.c.l.b16 %v375
    %v745 = vunpack.c.h.b16 %v375
    %v746 = vunpack.c.l.b16 %v376
    %v747 = vunpack.c.h.b16 %v376
    %v748 = vunpack.c.l.b16 %v377
    %v749 = vunpack.c.h.b16 %v377
    %v750 = vunpack.c.l.b16 %v378
    %v751 = vunpack.c.h.b16 %v378
    %v752 = vunpack.c.l.b16 %v379
    %v753 = vunpack.c.h.b16 %v379
    %v754 = vunpack.c.l.b16 %v380
    %v755 = vunpack.c.h.b16 %v380
    %v756 = vunpack.c.l.b16 %v381
    %v757 = vunpack.c.h.b16 %v381
    %v758 = vunpack.c.l.b16 %v382
    %v759 = vunpack.c.h.b16 %v382
    %v760 = vunpack.c.l.b16 %v383
    %v761 = vunpack.c.h.b16 %v383
    %v762 = vunpack.c.l.b16 %v384
    %v763 = vunpack.c.h.b16 %v384
    %v764 = vunpack.c.l.b16 %v385
    %v765 = vunpack.c.h.b16 %v385
    %v766 = vunpack.c.l.b16 %v386
    %v767 = vunpack.c.h.b16 %v386
    %v768 = vunpack.c.l.b16 %v387
    %v769 = vunpack.c.h.b16 %v387
    %v770 = vunpack.c.l.b16 %v388
    %v771 = vunpack.c.h.b16 %v388
    %v772 = vunpack.c.l.b16 %v389
    %v773 = vunpack.c.h.b16 %v389
    %v774 = vunpack.c.l.b16 %v390
    %v775 = vunpack.c.h.b16 %v390
    %v776 = vunpack.c.l.b16 %v391
    %v777 = vunpack.c.h.b16 %v391
    %v778 = vunpack.c.l.b16 %v392
    %v779 = vunpack.c.h.b16 %v392
    %v780 = vunpack.c.l.b16 %v393
    %v781 = vunpack.c.h.b16 %v393
    %v782 = vunpack.c.l.b16 %v394
    %v783 = vunpack.c.h.b16 %v394
    %v784 = vunpack.c.l.b16 %v395
    %v785 = vunpack.c.h.b16 %v395
    %v786 = vunpack.c.l.b16 %v396
    %v787 = vunpack.c.h.b16 %v396
    %v788 = vunpack.c.l.b16 %v397
    %v789 = vunpack.c.h.b16 %v397
    %v790 = vunpack.c.l.b16 %v398
    %v791 = vunpack.c.h.b16 %v398
    %v792 = vunpack.c.l.b16 %v399
    %v793 = vunpack.c.h.b16 %v399
    %v794 = vunpack.c.l.b16 %v400
    %v795 = vunpack.c.h.b16 %v400
    %v796 = vunpack.c.l.b16 %v401
    %v797 = vunpack.c.h.b16 %v401
    %v798 = vunpack.c.l.b16 %v402
    %v799 = vunpack.c.h.b16 %v402
    %v800 = vunpack.c.l.b16 %v403
    %v801 = vunpack.c.h.b16 %v403
    %v802 = vunpack.c.l.b16 %v404
    %v803 = vunpack.c.h.b16 %v404
    %v804 = vunpack.c.l.b16 %v405
    %v805 = vunpack.c.h.b16 %v405
    %v806 = vunpack.c.l.b16 %v406
    %v807 = vunpack.c.h.b16 %v406
    %v808 = vunpack.c.l.b16 %v407
    %v809 = vunpack.c.h.b16 %v407
    %v810 = vunpack.c.l.b16 %v408
    %v811 = vunpack.c.h.b16 %v408
    %v812 = vunpack.c.l.b16 %v409
    %v813 = vunpack.c.h.b16 %v409
    %v814 = vunpack.c.l.b16 %v410
    %v815 = vunpack.c.h.b16 %v410
    %v816 = vunpack.c.l.b16 %v411
    %v817 = vunpack.c.h.b16 %v411
    %v818 = vunpack.c.l.b16 %v412
    %v819 = vunpack.c.h.b16 %v412
    %v820 = vunpack.c.l.b16 %v413
    %v821 = vunpack.c.h.b16 %v413
    %v822 = vunpack.c.l.b16 %v414
    %v823 = vunpack.c.h.b16 %v414
    %v824 = vunpack.c.l.b16 %v415
    %v825 = vunpack.c.h.b16 %v415
    %v826 = vunpack.c.l.b16 %v416
    %v827 = vunpack.c.h.b16 %v416
    %v828 = vunpack.c.l.b16 %v417
    %v829 = vunpack.c.h.b16 %v417
    %v830 = vunpack.c.l.b16 %v418
    %v831 = vunpack.c.h.b16 %v418
    %v832 = vunpack.c.l.b16 %v419
    %v833 = vunpack.c.h.b16 %v419
    %v834 = vunpack.c.l.b16 %v420
    %v835 = vunpack.c.h.b16 %v420
    %v836 = vunpack.c.l.b16 %v421
    %v837 = vunpack.c.h.b16 %v421
    %v838 = vunpack.c.l.b16 %v422
    %v839 = vunpack.c.h.b16 %v422
    %v840 = vunpack.c.l.b16 %v423
    %v841 = vunpack.c.h.b16 %v423
    %v842 = vunpack.c.l.b16 %v424
    %v843 = vunpack.c.h.b16 %v424
    %v844 = vunpack.c.l.b16 %v425
    %v845 = vunpack.c.h.b16 %v425
    %v846 = vunpack.c.l.b16 %v426
    %v847 = vunpack.c.h.b16 %v426
    %v848 = vunpack.c.l.b16 %v427
    %v849 = vunpack.c.h.b16 %v427
    %v850 = vunpack.c.l.b16 %v428
    %v851 = vunpack.c.h.b16 %v428
    %v852 = vunpack.c.l.b16 %v429
    %v853 = vunpack.c.h.b16 %v429
    %v854 = vunpack.c.l.b16 %v430
    %v855 = vunpack.c.h.b16 %v430
    %v856 = vunpack.c.l.b16 %v431
    %v857 = vunpack.c.h.b16 %v431
    %v858 = vpack.c.b16 %v610, %v602
    %v859 = vpack.c.b16 %v611, %v603
    %v860 = vpack.c.b16 %v612, %v604
    %v861 = vpack.c.b16 %v613, %v605
    %v862 = vpack.c.b16 %v614, %v606
    %v863 = vpack.c.b16 %v615, %v607
    %v864 = vpack.c.b16 %v616, %v608
    %v865 = vpack.c.b16 %v617, %v609
    %v866 = vpack.c.b16 %v626, %v618
    %v867 = vpack.c.b16 %v627, %v619
    %v868 = vpack.c.b16 %v628, %v620
    %v869 = vpack.c.b16 %v629, %v621
    %v870 = vpack.c.b16 %v630, %v622
    %v871 = vpack.c.b16 %v631, %v623
    %v872 = vpack.c.b16 %v632, %v624
    %v873 = vpack.c.b16 %v633, %v625
    %v874 = vpack.c.b16 %v642, %v634
    %v875 = vpack.c.b16 %v643, %v635
    %v876 = vpack.c.b16 %v644, %v636
    %v877 = vpack.c.b16 %v645, %v637
    %v878 = vpack.c.b16 %v646, %v638
    %v879 = vpack.c.b16 %v647, %v639
    %v880 = vpack.c.b16 %v648, %v640
    %v881 = vpack.c.b16 %v649, %v641
    %v882 = vpack.c.b16 %v658, %v650
    %v883 = vpack.c.b16 %v659, %v651
    %v884 = vpack.c.b16 %v660, %v652
    %v885 = vpack.c.b16 %v661, %v653
    %v886 = vpack.c.b16 %v662, %v654
    %v887 = vpack.c.b16 %v663, %v655
    %v888 = vpack.c.b16 %v664, %v656
    %v889 = vpack.c.b16 %v665, %v657
    %v890 = vpack.c.b16 %v674, %v666
    %v891 = vpack.c.b16 %v675, %v667
    %v892 = vpack.c.b16 %v676, %v668
    %v893 = vpack.c.b16 %v677, %v669
    %v894 = vpack.c.b16 %v678, %v670
    %v895 = vpack.c.b16 %v679, %v671
    %v896 = vpack.c.b16 %v680, %v672
    %v897 = vpack.c.b16 %v681, %v673
    %v898 = vpack.c.b16 %v690, %v682
    %v899 = vpack.c.b16 %v691, %v683
    %v900 = vpack.c.b16 %v692, %v684
    %v901 = vpack.c.b16 %v693, %v685
    %v902 = vpack.c.b16 %v694, %v686
    %v903 = vpack.c.b16 %v695, %v687
    %v904 = vpack.c.b16 %v696, %v688
    %v905 = vpack.c.b16 %v697, %v689
    %v906 = vpack.c.b16 %v706, %v698
    %v907 = vpack.c.b16 %v707, %v699
    %v908 = vpack.c.b16 %v708, %v700
    %v909 = vpack.c.b16 %v709, %v701
    %v910 = vpack.c.b16 %v710, %v702
    %v911 = vpack.c.b16 %v711, %v703
    %v912 = vpack.c.b16 %v712, %v704
    %v913 = vpack.c.b16 %v713, %v705
    %v914 = vpack.c.b16 %v722, %v714
    %v915 = vpack.c.b16 %v723, %v715
    %v916 = vpack.c.b16 %v724, %v716
    %v917 = vpack.c.b16 %v725, %v717
    %v918 = vpack.c.b16 %v726, %v718
    %v919 = vpack.c.b16 %v727, %v719
    %v920 = vpack.c.b16 %v728, %v720
    %v921 = vpack.c.b16 %v729, %v721
    %v922 = vpack.c.b16 %v738, %v730
    %v923 = vpack.c.b16 %v739, %v731
    %v924 = vpack.c.b16 %v740, %v732
    %v925 = vpack.c.b16 %v741, %v733
    %v926 = vpack.c.b16 %v742, %v734
    %v927 = vpack.c.b16 %v743, %v735
    %v928 = vpack.c.b16 %v744, %v736
    %v929 = vpack.c.b16 %v745, %v737
    %v930 = vpack.c.b16 %v754, %v746
    %v931 = vpack.c.b16 %v755, %v747
    %v932 = vpack.c.b16 %v756, %v748
    %v933 = vpack.c.b16 %v757, %v749
    %v934 = vpack.c.b16 %v758, %v750
    %v935 = vpack.c.b16 %v759, %v751
    %v936 = vpack.c.b16 %v760, %v752
    %v937 = vpack.c.b16 %v761, %v753
    %v938 = vpack.c.b16 %v770, %v762
    %v939 = vpack.c.b16 %v771, %v763
    %v940 = vpack.c.b16 %v772, %v764
    %v941 = vpack.c.b16 %v773, %v765
    %v942 = vpack.c.b16 %v774, %v766
    %v943 = vpack.c.b16 %v775, %v767
    %v944 = vpack.c.b16 %v776, %v768
    %v945 = vpack.c.b16 %v777, %v769
    %v946 = vpack.c.b16 %v786, %v778
    %v947 = vpack.c.b16 %v787, %v779
    %v948 = vpack.c.b16 %v788, %v780
    %v949 = vpack.c.b16 %v789, %v781
    %v950 = vpack.c.b16 %v790, %v782
    %v951 = vpack.c.b16 %v791, %v783
    %v952 = vpack.c.b16 %v792, %v784
    %v953 = vpack.c.b16 %v793, %v785
    %v954 = vpack.c.b16 %v802, %v794
    %v955 = vpack.c.b16 %v803, %v795
    %v956 = vpack.c.b16 %v804, %v796
    %v957 = vpack.c.b16 %v805, %v797
    %v958 = vpack.c.b16 %v806, %v798
    %v959 = vpack.c.b16 %v807, %v799
    %v960 = vpack.c.b16 %v808, %v800
    %v961 = vpack.c.b16 %v809, %v801
    %v962 = vpack.c.b16 %v818, %v810
    %v963 = vpack.c.b16 %v819, %v811
    %v964 = vpack.c.b16 %v820, %v812
    %v965 = vpack.c.b16 %v821, %v813
    %v966 = vpack.c.b16 %v822, %v814
    %v967 = vpack.c.b16 %v823, %v815
    %v968 = vpack.c.b16 %v824, %v816
    %v969 = vpack.c.b16 %v825, %v817
    %v970 = vpack.c.b16 %v834, %v826
    %v971 = vpack.c.b16 %v835, %v827
    %v972 = vpack.c.b16 %v836, %v828
    %v973 = vpack.c.b16 %v837, %v829
    %v974 = vpack.c.b16 %v838, %v830
    %v975 = vpack.c.b16 %v839, %v831
    %v976 = vpack.c.b16 %v840, %v832
    %v977 = vpack.c.b16 %v841, %v833
    %v978 = vpack.c.b16 %v850, %v842
    %v979 = vpack.c.b16 %v851, %v843
    %v980 = vpack.c.b16 %v852, %v844
    %v981 = vpack.c.b16 %v853, %v845
    %v982 = vpack.c.b16 %v854, %v846
    %v983 = vpack.c.b16 %v855, %v847
    %v984 = vpack.c.b16 %v856, %v848
    %v985 = vpack.c.b16 %v857, %v849
    %1114 = vmatprep.subr.bf16.mxu0 %v859
    %1115 = vmatpush1.bf16.msra.mxu0 %v858
    %1116 = vmatprep.subr.bf16.mxu0 %v867
    %1117 = vmatpush1.bf16.msra.mxu0 %v866
    %1118 = vmatprep.subr.bf16.mxu0 %v875
    %1119 = vmatpush1.bf16.msra.mxu0 %v874
    %1120 = vmatprep.subr.bf16.mxu0 %v883
    %1121 = vmatpush1.bf16.msra.mxu0 %v882
    %1122 = vmatprep.subr.bf16.mxu0 %v891
    %1123 = vmatpush1.bf16.msra.mxu0 %v890
    %1124 = vmatprep.subr.bf16.mxu0 %v899
    %1125 = vmatpush1.bf16.msra.mxu0 %v898
    %1126 = vmatprep.subr.bf16.mxu0 %v907
    %1127 = vmatpush1.bf16.msra.mxu0 %v906
    %1128 = vmatprep.subr.bf16.mxu0 %v915
    %1129 = vmatpush1.bf16.msra.mxu0 %v914
    %1130 = vmatprep.subr.bf16.mxu0 %v923
    %1131 = vmatpush1.bf16.msra.mxu0 %v922
    %1132 = vmatprep.subr.bf16.mxu0 %v931
    %1133 = vmatpush1.bf16.msra.mxu0 %v930
    %1134 = vmatprep.subr.bf16.mxu0 %v939
    %1135 = vmatpush1.bf16.msra.mxu0 %v938
    %1136 = vmatprep.subr.bf16.mxu0 %v947
    %1137 = vmatpush1.bf16.msra.mxu0 %v946
    %1138 = vmatprep.subr.bf16.mxu0 %v955
    %1139 = vmatpush1.bf16.msra.mxu0 %v954
    %1140 = vmatprep.subr.bf16.mxu0 %v963
    %1141 = vmatpush1.bf16.msra.mxu0 %v962
    %1142 = vmatprep.subr.bf16.mxu0 %v971
    %1143 = vmatpush1.bf16.msra.mxu0 %v970
    %1144 = vmatprep.subr.bf16.mxu0 %v979
    %1145 = vmatpush1.bf16.msra.mxu0 %v978
    %1146 = vmatprep.mubr.bf16.mxu0 %v303
    %1147 = vmatmul.mubr.bf16.gmra.mrb[0].mxu0 %v302
    %v1148 = vpop.f32.mrb[0].mxu0
    %v1149 = vadd.f32 %v437, %v1148
    %v1150 = vpop.f32.mrb[0].mxu0
    %v1151 = vadd.f32 %v441, %v1150
    %v1152 = vpop.f32.mrb[0].mxu0
    %v1153 = vpop.f32.mrb[0].mxu0
    %1154 = vdwg.mxu0
    %1155 = vmatprep.subr.bf16.mxu0 %v861
    %1156 = vmatpush1.bf16.msra.mxu0 %v860
    %1157 = vmatprep.subr.bf16.mxu0 %v869
    %1158 = vmatpush1.bf16.msra.mxu0 %v868
    %1159 = vmatprep.subr.bf16.mxu0 %v877
    %1160 = vmatpush1.bf16.msra.mxu0 %v876
    %1161 = vmatprep.subr.bf16.mxu0 %v885
    %1162 = vmatpush1.bf16.msra.mxu0 %v884
    %1163 = vmatprep.subr.bf16.mxu0 %v893
    %1164 = vmatpush1.bf16.msra.mxu0 %v892
    %1165 = vmatprep.subr.bf16.mxu0 %v901
    %1166 = vmatpush1.bf16.msra.mxu0 %v900
    %1167 = vmatprep.subr.bf16.mxu0 %v909
    %1168 = vmatpush1.bf16.msra.mxu0 %v908
    %1169 = vmatprep.subr.bf16.mxu0 %v917
    %1170 = vmatpush1.bf16.msra.mxu0 %v916
    %1171 = vmatprep.subr.bf16.mxu0 %v925
    %1172 = vmatpush1.bf16.msra.mxu0 %v924
    %1173 = vmatprep.subr.bf16.mxu0 %v933
    %1174 = vmatpush1.bf16.msra.mxu0 %v932
    %1175 = vmatprep.subr.bf16.mxu0 %v941
    %1176 = vmatpush1.bf16.msra.mxu0 %v940
    %1177 = vmatprep.subr.bf16.mxu0 %v949
    %1178 = vmatpush1.bf16.msra.mxu0 %v948
    %1179 = vmatprep.subr.bf16.mxu0 %v957
    %1180 = vmatpush1.bf16.msra.mxu0 %v956
    %1181 = vmatprep.subr.bf16.mxu0 %v965
    %1182 = vmatpush1.bf16.msra.mxu0 %v964
    %1183 = vmatprep.subr.bf16.mxu0 %v973
    %1184 = vmatpush1.bf16.msra.mxu0 %v972
    %1185 = vmatprep.subr.bf16.mxu0 %v981
    %1186 = vmatpush1.bf16.msra.mxu0 %v980
    %1187 = vmatprep.mubr.bf16.mxu0 %v303
    %1188 = vmatmul.mubr.bf16.gmra.mrb[0].mxu0 %v302
    %v1189 = vpop.f32.mrb[0].mxu0
    %v1190 = vadd.f32 %v445, %v1189
    %v1191 = vpop.f32.mrb[0].mxu0
    %v1192 = vadd.f32 %v449, %v1191
    %v1193 = vpop.f32.mrb[0].mxu0
    %v1194 = vpop.f32.mrb[0].mxu0
    %1195 = vdwg.mxu0
    %1196 = vmatprep.subr.bf16.mxu0 %v863
    %1197 = vmatpush1.bf16.msra.mxu0 %v862
    %1198 = vmatprep.subr.bf16.mxu0 %v871
    %1199 = vmatpush1.bf16.msra.mxu0 %v870
    %1200 = vmatprep.subr.bf16.mxu0 %v879
    %1201 = vmatpush1.bf16.msra.mxu0 %v878
    %1202 = vmatprep.subr.bf16.mxu0 %v887
    %1203 = vmatpush1.bf16.msra.mxu0 %v886
    %1204 = vmatprep.subr.bf16.mxu0 %v895
    %1205 = vmatpush1.bf16.msra.mxu0 %v894
    %1206 = vmatprep.subr.bf16.mxu0 %v903
    %1207 = vmatpush1.bf16.msra.mxu0 %v902
    %1208 = vmatprep.subr.bf16.mxu0 %v911
    %1209 = vmatpush1.bf16.msra.mxu0 %v910
    %1210 = vmatprep.subr.bf16.mxu0 %v919
    %1211 = vmatpush1.bf16.msra.mxu0 %v918
    %1212 = vmatprep.subr.bf16.mxu0 %v927
    %1213 = vmatpush1.bf16.msra.mxu0 %v926
    %1214 = vmatprep.subr.bf16.mxu0 %v935
    %1215 = vmatpush1.bf16.msra.mxu0 %v934
    %1216 = vmatprep.subr.bf16.mxu0 %v943
    %1217 = vmatpush1.bf16.msra.mxu0 %v942
    %1218 = vmatprep.subr.bf16.mxu0 %v951
    %1219 = vmatpush1.bf16.msra.mxu0 %v950
    %1220 = vmatprep.subr.bf16.mxu0 %v959
    %1221 = vmatpush1.bf16.msra.mxu0 %v958
    %1222 = vmatprep.subr.bf16.mxu0 %v967
    %1223 = vmatpush1.bf16.msra.mxu0 %v966
    %1224 = vmatprep.subr.bf16.mxu0 %v975
    %1225 = vmatpush1.bf16.msra.mxu0 %v974
    %1226 = vmatprep.subr.bf16.mxu0 %v983
    %1227 = vmatpush1.bf16.msra.mxu0 %v982
    %1228 = vmatprep.mubr.bf16.mxu0 %v303
    %1229 = vmatmul.mubr.bf16.gmra.mrb[0].mxu0 %v302
    %v1230 = vpop.f32.mrb[0].mxu0
    %v1231 = vadd.f32 %v453, %v1230
    %v1232 = vpop.f32.mrb[0].mxu0
    %v1233 = vadd.f32 %v457, %v1232
    %v1234 = vpop.f32.mrb[0].mxu0
    %v1235 = vpop.f32.mrb[0].mxu0
    %1236 = vdwg.mxu0
    %1237 = vmatprep.subr.bf16.mxu0 %v865
    %1238 = vmatpush1.bf16.msra.mxu0 %v864
    %1239 = vmatprep.subr.bf16.mxu0 %v873
    %1240 = vmatpush1.bf16.msra.mxu0 %v872
    %1241 = vmatprep.subr.bf16.mxu0 %v881
    %1242 = vmatpush1.bf16.msra.mxu0 %v880
    %1243 = vmatprep.subr.bf16.mxu0 %v889
    %1244 = vmatpush1.bf16.msra.mxu0 %v888
    %1245 = vmatprep.subr.bf16.mxu0 %v897
    %1246 = vmatpush1.bf16.msra.mxu0 %v896
    %1247 = vmatprep.subr.bf16.mxu0 %v905
    %1248 = vmatpush1.bf16.msra.mxu0 %v904
    %1249 = vmatprep.subr.bf16.mxu0 %v913
    %1250 = vmatpush1.bf16.msra.mxu0 %v912
    %1251 = vmatprep.subr.bf16.mxu0 %v921
    %1252 = vmatpush1.bf16.msra.mxu0 %v920
    %1253 = vmatprep.subr.bf16.mxu0 %v929
    %1254 = vmatpush1.bf16.msra.mxu0 %v928
    %1255 = vmatprep.subr.bf16.mxu0 %v937
    %1256 = vmatpush1.bf16.msra.mxu0 %v936
    %1257 = vmatprep.subr.bf16.mxu0 %v945
    %1258 = vmatpush1.bf16.msra.mxu0 %v944
    %1259 = vmatprep.subr.bf16.mxu0 %v953
    %1260 = vmatpush1.bf16.msra.mxu0 %v952
    %1261 = vmatprep.subr.bf16.mxu0 %v961
    %1262 = vmatpush1.bf16.msra.mxu0 %v960
    %1263 = vmatprep.subr.bf16.mxu0 %v969
    %1264 = vmatpush1.bf16.msra.mxu0 %v968
    %1265 = vmatprep.subr.bf16.mxu0 %v977
    %1266 = vmatpush1.bf16.msra.mxu0 %v976
    %1267 = vmatprep.subr.bf16.mxu0 %v985
    %1268 = vmatpush1.bf16.msra.mxu0 %v984
    %1269 = vmatprep.mubr.bf16.mxu0 %v303
    %1270 = vmatmul.mubr.bf16.gmra.mrb[0].mxu0 %v302
    %v1271 = vpop.f32.mrb[0].mxu0
    %v1272 = vadd.f32 %v461, %v1271
    %v1273 = vpop.f32.mrb[0].mxu0
    %v1274 = vadd.f32 %v465, %v1273
    %v1275 = vpop.f32.mrb[0].mxu0
    %v1276 = vpop.f32.mrb[0].mxu0
    %1277 = vdwg.mxu0
    %vm1278 = vcmp.ge.f32.partialorder %v1149, 0.0
    %vm1279 = vcmp.ge.f32.partialorder %v1151, 0.0
    %vm1280 = vcmp.ge.f32.partialorder %v1190, 0.0
    %vm1281 = vcmp.ge.f32.partialorder %v1192, 0.0
    %vm1282 = vcmp.ge.f32.partialorder %v1231, 0.0
    %vm1283 = vcmp.ge.f32.partialorder %v1233, 0.0
    %vm1284 = vcmp.ge.f32.partialorder %v1272, 0.0
    %vm1285 = vcmp.ge.f32.partialorder %v1274, 0.0
    %s1286 = sld [smem:[#allocation3]]
    %v1287 = vstv %s1286
    %v1288 = vmul.f32 %v1287, %v1149
    %v1289 = vmul.f32 %v1287, %v1151
    %v1290 = vmul.f32 %v1287, %v1190
    %v1291 = vmul.f32 %v1287, %v1192
    %v1292 = vmul.f32 %v1287, %v1231
    %v1293 = vmul.f32 %v1287, %v1233
    %v1294 = vmul.f32 %v1287, %v1272
    %v1295 = vmul.f32 %v1287, %v1274
    %v1296 = vsel %vm1278, %v1149, %v1288
    %v1297 = vsel %vm1279, %v1151, %v1289
    %v1298 = vsel %vm1280, %v1190, %v1290
    %v1299 = vsel %vm1281, %v1192, %v1291
    %v1300 = vsel %vm1282, %v1231, %v1292
    %v1301 = vsel %vm1283, %v1233, %v1293
    %v1302 = vsel %vm1284, %v1272, %v1294
    %v1303 = vsel %vm1285, %v1274, %v1295
    %v1304 = vpack.c.bf16 %v1296, %v1296
    %v1305 = vpack.c.bf16 %v1297, %v1297
    %v1306 = vpack.c.bf16 %v1298, %v1298
    %v1307 = vpack.c.bf16 %v1299, %v1299
    %v1308 = vpack.c.bf16 %v1300, %v1300
    %v1309 = vpack.c.bf16 %v1301, %v1301
    %v1310 = vpack.c.bf16 %v1302, %v1302
    %v1311 = vpack.c.bf16 %v1303, %v1303
    %v1312 = vld [vmem:[#allocation10] sm:$0xff]
    %v1313 = vld [vmem:[#allocation10 + $0x8] sm:$0xff]
    %v1314 = vld [vmem:[#allocation10 + $0x10] sm:$0xff]
    %v1315 = vld [vmem:[#allocation10 + $0x18] sm:$0xff]
    %v1316 = vld [vmem:[#allocation10 + $0x20] sm:$0xff]
    %v1317 = vld [vmem:[#allocation10 + $0x28] sm:$0xff]
    %v1318 = vld [vmem:[#allocation10 + $0x30] sm:$0xff]
    %v1319 = vld [vmem:[#allocation10 + $0x38] sm:$0xff]
    %v1320 = vld [vmem:[#allocation10 + $0x40] sm:$0xff]
    %v1321 = vld [vmem:[#allocation10 + $0x48] sm:$0xff]
    %v1322 = vld [vmem:[#allocation10 + $0x50] sm:$0xff]
    %v1323 = vld [vmem:[#allocation10 + $0x58] sm:$0xff]
    %v1324 = vld [vmem:[#allocation10 + $0x60] sm:$0xff]
    %v1325 = vld [vmem:[#allocation10 + $0x68] sm:$0xff]
    %v1326 = vld [vmem:[#allocation10 + $0x70] sm:$0xff]
    %v1327 = vld [vmem:[#allocation10 + $0x78] sm:$0xff]
    %v1328 = vld [vmem:[#allocation10 + $0x80] sm:$0xff]
    %v1329 = vld [vmem:[#allocation10 + $0x88] sm:$0xff]
    %v1330 = vld [vmem:[#allocation10 + $0x90] sm:$0xff]
    %v1331 = vld [vmem:[#allocation10 + $0x98] sm:$0xff]
    %v1332 = vld [vmem:[#allocation10 + $0xa0] sm:$0xff]
    %v1333 = vld [vmem:[#allocation10 + $0xa8] sm:$0xff]
    %v1334 = vld [vmem:[#allocation10 + $0xb0] sm:$0xff]
    %v1335 = vld [vmem:[#allocation10 + $0xb8] sm:$0xff]
    %v1336 = vld [vmem:[#allocation10 + $0xc0] sm:$0xff]
    %v1337 = vld [vmem:[#allocation10 + $0xc8] sm:$0xff]
    %v1338 = vld [vmem:[#allocation10 + $0xd0] sm:$0xff]
    %v1339 = vld [vmem:[#allocation10 + $0xd8] sm:$0xff]
    %v1340 = vld [vmem:[#allocation10 + $0xe0] sm:$0xff]
    %v1341 = vld [vmem:[#allocation10 + $0xe8] sm:$0xff]
    %v1342 = vld [vmem:[#allocation10 + $0xf0] sm:$0xff]
    %v1343 = vld [vmem:[#allocation10 + $0xf8] sm:$0xff]
    %v1344 = vld [vmem:[#allocation10 + $0x100] sm:$0xff]
    %v1345 = vld [vmem:[#allocation10 + $0x108] sm:$0xff]
    %v1346 = vld [vmem:[#allocation10 + $0x110] sm:$0xff]
    %v1347 = vld [vmem:[#allocation10 + $0x118] sm:$0xff]
    %v1348 = vld [vmem:[#allocation10 + $0x120] sm:$0xff]
    %v1349 = vld [vmem:[#allocation10 + $0x128] sm:$0xff]
    %v1350 = vld [vmem:[#allocation10 + $0x130] sm:$0xff]
    %v1351 = vld [vmem:[#allocation10 + $0x138] sm:$0xff]
    %v1352 = vld [vmem:[#allocation10 + $0x140] sm:$0xff]
    %v1353 = vld [vmem:[#allocation10 + $0x148] sm:$0xff]
    %v1354 = vld [vmem:[#allocation10 + $0x150] sm:$0xff]
    %v1355 = vld [vmem:[#allocation10 + $0x158] sm:$0xff]
    %v1356 = vld [vmem:[#allocation10 + $0x160] sm:$0xff]
    %v1357 = vld [vmem:[#allocation10 + $0x168] sm:$0xff]
    %v1358 = vld [vmem:[#allocation10 + $0x170] sm:$0xff]
    %v1359 = vld [vmem:[#allocation10 + $0x178] sm:$0xff]
    %v1360 = vld [vmem:[#allocation10 + $0x180] sm:$0xff]
    %v1361 = vld [vmem:[#allocation10 + $0x188] sm:$0xff]
    %v1362 = vld [vmem:[#allocation10 + $0x190] sm:$0xff]
    %v1363 = vld [vmem:[#allocation10 + $0x198] sm:$0xff]
    %v1364 = vld [vmem:[#allocation10 + $0x1a0] sm:$0xff]
    %v1365 = vld [vmem:[#allocation10 + $0x1a8] sm:$0xff]
    %v1366 = vld [vmem:[#allocation10 + $0x1b0] sm:$0xff]
    %v1367 = vld [vmem:[#allocation10 + $0x1b8] sm:$0xff]
    %v1368 = vld [vmem:[#allocation10 + $0x1c0] sm:$0xff]
    %v1369 = vld [vmem:[#allocation10 + $0x1c8] sm:$0xff]
    %v1370 = vld [vmem:[#allocation10 + $0x1d0] sm:$0xff]
    %v1371 = vld [vmem:[#allocation10 + $0x1d8] sm:$0xff]
    %v1372 = vld [vmem:[#allocation10 + $0x1e0] sm:$0xff]
    %v1373 = vld [vmem:[#allocation10 + $0x1e8] sm:$0xff]
    %v1374 = vld [vmem:[#allocation10 + $0x1f0] sm:$0xff]
    %v1375 = vld [vmem:[#allocation10 + $0x1f8] sm:$0xff]
    %v1376 = vld [vmem:[#allocation10 + $0x200] sm:$0xff]
    %v1377 = vld [vmem:[#allocation10 + $0x208] sm:$0xff]
    %v1378 = vld [vmem:[#allocation10 + $0x210] sm:$0xff]
    %v1379 = vld [vmem:[#allocation10 + $0x218] sm:$0xff]
    %v1380 = vld [vmem:[#allocation10 + $0x220] sm:$0xff]
    %v1381 = vld [vmem:[#allocation10 + $0x228] sm:$0xff]
    %v1382 = vld [vmem:[#allocation10 + $0x230] sm:$0xff]
    %v1383 = vld [vmem:[#allocation10 + $0x238] sm:$0xff]
    %v1384 = vld [vmem:[#allocation10 + $0x240] sm:$0xff]
    %v1385 = vld [vmem:[#allocation10 + $0x248] sm:$0xff]
    %v1386 = vld [vmem:[#allocation10 + $0x250] sm:$0xff]
    %v1387 = vld [vmem:[#allocation10 + $0x258] sm:$0xff]
    %v1388 = vld [vmem:[#allocation10 + $0x260] sm:$0xff]
    %v1389 = vld [vmem:[#allocation10 + $0x268] sm:$0xff]
    %v1390 = vld [vmem:[#allocation10 + $0x270] sm:$0xff]
    %v1391 = vld [vmem:[#allocation10 + $0x278] sm:$0xff]
    %v1392 = vld [vmem:[#allocation10 + $0x280] sm:$0xff]
    %v1393 = vld [vmem:[#allocation10 + $0x288] sm:$0xff]
    %v1394 = vld [vmem:[#allocation10 + $0x290] sm:$0xff]
    %v1395 = vld [vmem:[#allocation10 + $0x298] sm:$0xff]
    %v1396 = vld [vmem:[#allocation10 + $0x2a0] sm:$0xff]
    %v1397 = vld [vmem:[#allocation10 + $0x2a8] sm:$0xff]
    %v1398 = vld [vmem:[#allocation10 + $0x2b0] sm:$0xff]
    %v1399 = vld [vmem:[#allocation10 + $0x2b8] sm:$0xff]
    %v1400 = vld [vmem:[#allocation10 + $0x2c0] sm:$0xff]
    %v1401 = vld [vmem:[#allocation10 + $0x2c8] sm:$0xff]
    %v1402 = vld [vmem:[#allocation10 + $0x2d0] sm:$0xff]
    %v1403 = vld [vmem:[#allocation10 + $0x2d8] sm:$0xff]
    %v1404 = vld [vmem:[#allocation10 + $0x2e0] sm:$0xff]
    %v1405 = vld [vmem:[#allocation10 + $0x2e8] sm:$0xff]
    %v1406 = vld [vmem:[#allocation10 + $0x2f0] sm:$0xff]
    %v1407 = vld [vmem:[#allocation10 + $0x2f8] sm:$0xff]
    %v1408 = vld [vmem:[#allocation10 + $0x300] sm:$0xff]
    %v1409 = vld [vmem:[#allocation10 + $0x308] sm:$0xff]
    %v1410 = vld [vmem:[#allocation10 + $0x310] sm:$0xff]
    %v1411 = vld [vmem:[#allocation10 + $0x318] sm:$0xff]
    %v1412 = vld [vmem:[#allocation10 + $0x320] sm:$0xff]
    %v1413 = vld [vmem:[#allocation10 + $0x328] sm:$0xff]
    %v1414 = vld [vmem:[#allocation10 + $0x330] sm:$0xff]
    %v1415 = vld [vmem:[#allocation10 + $0x338] sm:$0xff]
    %v1416 = vld [vmem:[#allocation10 + $0x340] sm:$0xff]
    %v1417 = vld [vmem:[#allocation10 + $0x348] sm:$0xff]
    %v1418 = vld [vmem:[#allocation10 + $0x350] sm:$0xff]
    %v1419 = vld [vmem:[#allocation10 + $0x358] sm:$0xff]
    %v1420 = vld [vmem:[#allocation10 + $0x360] sm:$0xff]
    %v1421 = vld [vmem:[#allocation10 + $0x368] sm:$0xff]
    %v1422 = vld [vmem:[#allocation10 + $0x370] sm:$0xff]
    %v1423 = vld [vmem:[#allocation10 + $0x378] sm:$0xff]
    %v1424 = vld [vmem:[#allocation10 + $0x380] sm:$0xff]
    %v1425 = vld [vmem:[#allocation10 + $0x388] sm:$0xff]
    %v1426 = vld [vmem:[#allocation10 + $0x390] sm:$0xff]
    %v1427 = vld [vmem:[#allocation10 + $0x398] sm:$0xff]
    %v1428 = vld [vmem:[#allocation10 + $0x3a0] sm:$0xff]
    %v1429 = vld [vmem:[#allocation10 + $0x3a8] sm:$0xff]
    %v1430 = vld [vmem:[#allocation10 + $0x3b0] sm:$0xff]
    %v1431 = vld [vmem:[#allocation10 + $0x3b8] sm:$0xff]
    %v1432 = vld [vmem:[#allocation10 + $0x3c0] sm:$0xff]
    %v1433 = vld [vmem:[#allocation10 + $0x3c8] sm:$0xff]
    %v1434 = vld [vmem:[#allocation10 + $0x3d0] sm:$0xff]
    %v1435 = vld [vmem:[#allocation10 + $0x3d8] sm:$0xff]
    %v1436 = vld [vmem:[#allocation10 + $0x3e0] sm:$0xff]
    %v1437 = vld [vmem:[#allocation10 + $0x3e8] sm:$0xff]
    %v1438 = vld [vmem:[#allocation10 + $0x3f0] sm:$0xff]
    %v1439 = vld [vmem:[#allocation10 + $0x3f8] sm:$0xff]
    %v1440 = vld [vmem:[#allocation10 + $0x400] sm:$0xff]
    %v1441 = vld [vmem:[#allocation10 + $0x408] sm:$0xff]
    %v1442 = vld [vmem:[#allocation10 + $0x410] sm:$0xff]
    %v1443 = vld [vmem:[#allocation10 + $0x418] sm:$0xff]
    %v1444 = vld [vmem:[#allocation10 + $0x420] sm:$0xff]
    %v1445 = vld [vmem:[#allocation10 + $0x428] sm:$0xff]
    %v1446 = vld [vmem:[#allocation10 + $0x430] sm:$0xff]
    %v1447 = vld [vmem:[#allocation10 + $0x438] sm:$0xff]
    %v1448 = vld [vmem:[#allocation10 + $0x440] sm:$0xff]
    %v1449 = vld [vmem:[#allocation10 + $0x448] sm:$0xff]
    %v1450 = vld [vmem:[#allocation10 + $0x450] sm:$0xff]
    %v1451 = vld [vmem:[#allocation10 + $0x458] sm:$0xff]
    %v1452 = vld [vmem:[#allocation10 + $0x460] sm:$0xff]
    %v1453 = vld [vmem:[#allocation10 + $0x468] sm:$0xff]
    %v1454 = vld [vmem:[#allocation10 + $0x470] sm:$0xff]
    %v1455 = vld [vmem:[#allocation10 + $0x478] sm:$0xff]
    %v1456 = vld [vmem:[#allocation10 + $0x480] sm:$0xff]
    %v1457 = vld [vmem:[#allocation10 + $0x488] sm:$0xff]
    %v1458 = vld [vmem:[#allocation10 + $0x490] sm:$0xff]
    %v1459 = vld [vmem:[#allocation10 + $0x498] sm:$0xff]
    %v1460 = vld [vmem:[#allocation10 + $0x4a0] sm:$0xff]
    %v1461 = vld [vmem:[#allocation10 + $0x4a8] sm:$0xff]
    %v1462 = vld [vmem:[#allocation10 + $0x4b0] sm:$0xff]
    %v1463 = vld [vmem:[#allocation10 + $0x4b8] sm:$0xff]
    %v1464 = vld [vmem:[#allocation10 + $0x4c0] sm:$0xff]
    %v1465 = vld [vmem:[#allocation10 + $0x4c8] sm:$0xff]
    %v1466 = vld [vmem:[#allocation10 + $0x4d0] sm:$0xff]
    %v1467 = vld [vmem:[#allocation10 + $0x4d8] sm:$0xff]
    %v1468 = vld [vmem:[#allocation10 + $0x4e0] sm:$0xff]
    %v1469 = vld [vmem:[#allocation10 + $0x4e8] sm:$0xff]
    %v1470 = vld [vmem:[#allocation10 + $0x4f0] sm:$0xff]
    %v1471 = vld [vmem:[#allocation10 + $0x4f8] sm:$0xff]
    %v1472 = vld [vmem:[#allocation10 + $0x500] sm:$0xff]
    %v1473 = vld [vmem:[#allocation10 + $0x508] sm:$0xff]
    %v1474 = vld [vmem:[#allocation10 + $0x510] sm:$0xff]
    %v1475 = vld [vmem:[#allocation10 + $0x518] sm:$0xff]
    %v1476 = vld [vmem:[#allocation10 + $0x520] sm:$0xff]
    %v1477 = vld [vmem:[#allocation10 + $0x528] sm:$0xff]
    %v1478 = vld [vmem:[#allocation10 + $0x530] sm:$0xff]
    %v1479 = vld [vmem:[#allocation10 + $0x538] sm:$0xff]
    %v1480 = vld [vmem:[#allocation10 + $0x540] sm:$0xff]
    %v1481 = vld [vmem:[#allocation10 + $0x548] sm:$0xff]
    %v1482 = vld [vmem:[#allocation10 + $0x550] sm:$0xff]
    %v1483 = vld [vmem:[#allocation10 + $0x558] sm:$0xff]
    %v1484 = vld [vmem:[#allocation10 + $0x560] sm:$0xff]
    %v1485 = vld [vmem:[#allocation10 + $0x568] sm:$0xff]
    %v1486 = vld [vmem:[#allocation10 + $0x570] sm:$0xff]
    %v1487 = vld [vmem:[#allocation10 + $0x578] sm:$0xff]
    %v1488 = vld [vmem:[#allocation10 + $0x580] sm:$0xff]
    %v1489 = vld [vmem:[#allocation10 + $0x588] sm:$0xff]
    %v1490 = vld [vmem:[#allocation10 + $0x590] sm:$0xff]
    %v1491 = vld [vmem:[#allocation10 + $0x598] sm:$0xff]
    %v1492 = vld [vmem:[#allocation10 + $0x5a0] sm:$0xff]
    %v1493 = vld [vmem:[#allocation10 + $0x5a8] sm:$0xff]
    %v1494 = vld [vmem:[#allocation10 + $0x5b0] sm:$0xff]
    %v1495 = vld [vmem:[#allocation10 + $0x5b8] sm:$0xff]
    %v1496 = vld [vmem:[#allocation10 + $0x5c0] sm:$0xff]
    %v1497 = vld [vmem:[#allocation10 + $0x5c8] sm:$0xff]
    %v1498 = vld [vmem:[#allocation10 + $0x5d0] sm:$0xff]
    %v1499 = vld [vmem:[#allocation10 + $0x5d8] sm:$0xff]
    %v1500 = vld [vmem:[#allocation10 + $0x5e0] sm:$0xff]
    %v1501 = vld [vmem:[#allocation10 + $0x5e8] sm:$0xff]
    %v1502 = vld [vmem:[#allocation10 + $0x5f0] sm:$0xff]
    %v1503 = vld [vmem:[#allocation10 + $0x5f8] sm:$0xff]
    %v1504 = vld [vmem:[#allocation10 + $0x600] sm:$0xff]
    %v1505 = vld [vmem:[#allocation10 + $0x608] sm:$0xff]
    %v1506 = vld [vmem:[#allocation10 + $0x610] sm:$0xff]
    %v1507 = vld [vmem:[#allocation10 + $0x618] sm:$0xff]
    %v1508 = vld [vmem:[#allocation10 + $0x620] sm:$0xff]
    %v1509 = vld [vmem:[#allocation10 + $0x628] sm:$0xff]
    %v1510 = vld [vmem:[#allocation10 + $0x630] sm:$0xff]
    %v1511 = vld [vmem:[#allocation10 + $0x638] sm:$0xff]
    %v1512 = vld [vmem:[#allocation10 + $0x640] sm:$0xff]
    %v1513 = vld [vmem:[#allocation10 + $0x648] sm:$0xff]
    %v1514 = vld [vmem:[#allocation10 + $0x650] sm:$0xff]
    %v1515 = vld [vmem:[#allocation10 + $0x658] sm:$0xff]
    %v1516 = vld [vmem:[#allocation10 + $0x660] sm:$0xff]
    %v1517 = vld [vmem:[#allocation10 + $0x668] sm:$0xff]
    %v1518 = vld [vmem:[#allocation10 + $0x670] sm:$0xff]
    %v1519 = vld [vmem:[#allocation10 + $0x678] sm:$0xff]
    %v1520 = vld [vmem:[#allocation10 + $0x680] sm:$0xff]
    %v1521 = vld [vmem:[#allocation10 + $0x688] sm:$0xff]
    %v1522 = vld [vmem:[#allocation10 + $0x690] sm:$0xff]
    %v1523 = vld [vmem:[#allocation10 + $0x698] sm:$0xff]
    %v1524 = vld [vmem:[#allocation10 + $0x6a0] sm:$0xff]
    %v1525 = vld [vmem:[#allocation10 + $0x6a8] sm:$0xff]
    %v1526 = vld [vmem:[#allocation10 + $0x6b0] sm:$0xff]
    %v1527 = vld [vmem:[#allocation10 + $0x6b8] sm:$0xff]
    %v1528 = vld [vmem:[#allocation10 + $0x6c0] sm:$0xff]
    %v1529 = vld [vmem:[#allocation10 + $0x6c8] sm:$0xff]
    %v1530 = vld [vmem:[#allocation10 + $0x6d0] sm:$0xff]
    %v1531 = vld [vmem:[#allocation10 + $0x6d8] sm:$0xff]
    %v1532 = vld [vmem:[#allocation10 + $0x6e0] sm:$0xff]
    %v1533 = vld [vmem:[#allocation10 + $0x6e8] sm:$0xff]
    %v1534 = vld [vmem:[#allocation10 + $0x6f0] sm:$0xff]
    %v1535 = vld [vmem:[#allocation10 + $0x6f8] sm:$0xff]
    %v1536 = vld [vmem:[#allocation10 + $0x700] sm:$0xff]
    %v1537 = vld [vmem:[#allocation10 + $0x708] sm:$0xff]
    %v1538 = vld [vmem:[#allocation10 + $0x710] sm:$0xff]
    %v1539 = vld [vmem:[#allocation10 + $0x718] sm:$0xff]
    %v1540 = vld [vmem:[#allocation10 + $0x720] sm:$0xff]
    %v1541 = vld [vmem:[#allocation10 + $0x728] sm:$0xff]
    %v1542 = vld [vmem:[#allocation10 + $0x730] sm:$0xff]
    %v1543 = vld [vmem:[#allocation10 + $0x738] sm:$0xff]
    %v1544 = vld [vmem:[#allocation10 + $0x740] sm:$0xff]
    %v1545 = vld [vmem:[#allocation10 + $0x748] sm:$0xff]
    %v1546 = vld [vmem:[#allocation10 + $0x750] sm:$0xff]
    %v1547 = vld [vmem:[#allocation10 + $0x758] sm:$0xff]
    %v1548 = vld [vmem:[#allocation10 + $0x760] sm:$0xff]
    %v1549 = vld [vmem:[#allocation10 + $0x768] sm:$0xff]
    %v1550 = vld [vmem:[#allocation10 + $0x770] sm:$0xff]
    %v1551 = vld [vmem:[#allocation10 + $0x778] sm:$0xff]
    %v1552 = vld [vmem:[#allocation10 + $0x780] sm:$0xff]
    %v1553 = vld [vmem:[#allocation10 + $0x788] sm:$0xff]
    %v1554 = vld [vmem:[#allocation10 + $0x790] sm:$0xff]
    %v1555 = vld [vmem:[#allocation10 + $0x798] sm:$0xff]
    %v1556 = vld [vmem:[#allocation10 + $0x7a0] sm:$0xff]
    %v1557 = vld [vmem:[#allocation10 + $0x7a8] sm:$0xff]
    %v1558 = vld [vmem:[#allocation10 + $0x7b0] sm:$0xff]
    %v1559 = vld [vmem:[#allocation10 + $0x7b8] sm:$0xff]
    %v1560 = vld [vmem:[#allocation10 + $0x7c0] sm:$0xff]
    %v1561 = vld [vmem:[#allocation10 + $0x7c8] sm:$0xff]
    %v1562 = vld [vmem:[#allocation10 + $0x7d0] sm:$0xff]
    %v1563 = vld [vmem:[#allocation10 + $0x7d8] sm:$0xff]
    %v1564 = vld [vmem:[#allocation10 + $0x7e0] sm:$0xff]
    %v1565 = vld [vmem:[#allocation10 + $0x7e8] sm:$0xff]
    %v1566 = vld [vmem:[#allocation10 + $0x7f0] sm:$0xff]
    %v1567 = vld [vmem:[#allocation10 + $0x7f8] sm:$0xff]
    %v1568 = vld [vmem:[%s8] sm:$0xf]
    %v1570 = vlaneseq
    %v1571 = vshrl.u32 %v1570, 7
    %v1572 = vsub.s32 0, %v1571
    %v1573 = vrot.slane %v1568, %v1572
    %v1574 = vlaneseq
    %v1575 = vshrl.u32 %v1574, 7
    %v1576 = vsub.s32 1, %v1575
    %v1577 = vrot.slane %v1568, %v1576
    %v1578 = vlaneseq
    %v1579 = vshrl.u32 %v1578, 7
    %v1580 = vsub.s32 2, %v1579
    %v1581 = vrot.slane %v1568, %v1580
    %v1582 = vlaneseq
    %v1583 = vshrl.u32 %v1582, 7
    %v1584 = vsub.s32 3, %v1583
    %v1585 = vrot.slane %v1568, %v1584
    %v1846 = vunpack.c.l.b16 %v1312
    %v1847 = vunpack.c.h.b16 %v1312
    %v1848 = vunpack.c.l.b16 %v1313
    %v1849 = vunpack.c.h.b16 %v1313
    %v1850 = vunpack.c.l.b16 %v1314
    %v1851 = vunpack.c.h.b16 %v1314
    %v1852 = vunpack.c.l.b16 %v1315
    %v1853 = vunpack.c.h.b16 %v1315
    %v1854 = vunpack.c.l.b16 %v1316
    %v1855 = vunpack.c.h.b16 %v1316
    %v1856 = vunpack.c.l.b16 %v1317
    %v1857 = vunpack.c.h.b16 %v1317
    %v1858 = vunpack.c.l.b16 %v1318
    %v1859 = vunpack.c.h.b16 %v1318
    %v1860 = vunpack.c.l.b16 %v1319
    %v1861 = vunpack.c.h.b16 %v1319
    %v1862 = vunpack.c.l.b16 %v1320
    %v1863 = vunpack.c.h.b16 %v1320
    %v1864 = vunpack.c.l.b16 %v1321
    %v1865 = vunpack.c.h.b16 %v1321
    %v1866 = vunpack.c.l.b16 %v1322
    %v1867 = vunpack.c.h.b16 %v1322
    %v1868 = vunpack.c.l.b16 %v1323
    %v1869 = vunpack.c.h.b16 %v1323
    %v1870 = vunpack.c.l.b16 %v1324
    %v1871 = vunpack.c.h.b16 %v1324
    %v1872 = vunpack.c.l.b16 %v1325
    %v1873 = vunpack.c.h.b16 %v1325
    %v1874 = vunpack.c.l.b16 %v1326
    %v1875 = vunpack.c.h.b16 %v1326
    %v1876 = vunpack.c.l.b16 %v1327
    %v1877 = vunpack.c.h.b16 %v1327
    %v1878 = vunpack.c.l.b16 %v1328
    %v1879 = vunpack.c.h.b16 %v1328
    %v1880 = vunpack.c.l.b16 %v1329
    %v1881 = vunpack.c.h.b16 %v1329
    %v1882 = vunpack.c.l.b16 %v1330
    %v1883 = vunpack.c.h.b16 %v1330
    %v1884 = vunpack.c.l.b16 %v1331
    %v1885 = vunpack.c.h.b16 %v1331
    %v1886 = vunpack.c.l.b16 %v1332
    %v1887 = vunpack.c.h.b16 %v1332
    %v1888 = vunpack.c.l.b16 %v1333
    %v1889 = vunpack.c.h.b16 %v1333
    %v1890 = vunpack.c.l.b16 %v1334
    %v1891 = vunpack.c.h.b16 %v1334
    %v1892 = vunpack.c.l.b16 %v1335
    %v1893 = vunpack.c.h.b16 %v1335
    %v1894 = vunpack.c.l.b16 %v1336
    %v1895 = vunpack.c.h.b16 %v1336
    %v1896 = vunpack.c.l.b16 %v1337
    %v1897 = vunpack.c.h.b16 %v1337
    %v1898 = vunpack.c.l.b16 %v1338
    %v1899 = vunpack.c.h.b16 %v1338
    %v1900 = vunpack.c.l.b16 %v1339
    %v1901 = vunpack.c.h.b16 %v1339
    %v1902 = vunpack.c.l.b16 %v1340
    %v1903 = vunpack.c.h.b16 %v1340
    %v1904 = vunpack.c.l.b16 %v1341
    %v1905 = vunpack.c.h.b16 %v1341
    %v1906 = vunpack.c.l.b16 %v1342
    %v1907 = vunpack.c.h.b16 %v1342
    %v1908 = vunpack.c.l.b16 %v1343
    %v1909 = vunpack.c.h.b16 %v1343
    %v1910 = vunpack.c.l.b16 %v1344
    %v1911 = vunpack.c.h.b16 %v1344
    %v1912 = vunpack.c.l.b16 %v1345
    %v1913 = vunpack.c.h.b16 %v1345
    %v1914 = vunpack.c.l.b16 %v1346
    %v1915 = vunpack.c.h.b16 %v1346
    %v1916 = vunpack.c.l.b16 %v1347
    %v1917 = vunpack.c.h.b16 %v1347
    %v1918 = vunpack.c.l.b16 %v1348
    %v1919 = vunpack.c.h.b16 %v1348
    %v1920 = vunpack.c.l.b16 %v1349
    %v1921 = vunpack.c.h.b16 %v1349
    %v1922 = vunpack.c.l.b16 %v1350
    %v1923 = vunpack.c.h.b16 %v1350
    %v1924 = vunpack.c.l.b16 %v1351
    %v1925 = vunpack.c.h.b16 %v1351
    %v1926 = vunpack.c.l.b16 %v1352
    %v1927 = vunpack.c.h.b16 %v1352
    %v1928 = vunpack.c.l.b16 %v1353
    %v1929 = vunpack.c.h.b16 %v1353
    %v1930 = vunpack.c.l.b16 %v1354
    %v1931 = vunpack.c.h.b16 %v1354
    %v1932 = vunpack.c.l.b16 %v1355
    %v1933 = vunpack.c.h.b16 %v1355
    %v1934 = vunpack.c.l.b16 %v1356
    %v1935 = vunpack.c.h.b16 %v1356
    %v1936 = vunpack.c.l.b16 %v1357
    %v1937 = vunpack.c.h.b16 %v1357
    %v1938 = vunpack.c.l.b16 %v1358
    %v1939 = vunpack.c.h.b16 %v1358
    %v1940 = vunpack.c.l.b16 %v1359
    %v1941 = vunpack.c.h.b16 %v1359
    %v1942 = vunpack.c.l.b16 %v1360
    %v1943 = vunpack.c.h.b16 %v1360
    %v1944 = vunpack.c.l.b16 %v1361
    %v1945 = vunpack.c.h.b16 %v1361
    %v1946 = vunpack.c.l.b16 %v1362
    %v1947 = vunpack.c.h.b16 %v1362
    %v1948 = vunpack.c.l.b16 %v1363
    %v1949 = vunpack.c.h.b16 %v1363
    %v1950 = vunpack.c.l.b16 %v1364
    %v1951 = vunpack.c.h.b16 %v1364
    %v1952 = vunpack.c.l.b16 %v1365
    %v1953 = vunpack.c.h.b16 %v1365
    %v1954 = vunpack.c.l.b16 %v1366
    %v1955 = vunpack.c.h.b16 %v1366
    %v1956 = vunpack.c.l.b16 %v1367
    %v1957 = vunpack.c.h.b16 %v1367
    %v1958 = vunpack.c.l.b16 %v1368
    %v1959 = vunpack.c.h.b16 %v1368
    %v1960 = vunpack.c.l.b16 %v1369
    %v1961 = vunpack.c.h.b16 %v1369
    %v1962 = vunpack.c.l.b16 %v1370
    %v1963 = vunpack.c.h.b16 %v1370
    %v1964 = vunpack.c.l.b16 %v1371
    %v1965 = vunpack.c.h.b16 %v1371
    %v1966 = vunpack.c.l.b16 %v1372
    %v1967 = vunpack.c.h.b16 %v1372
    %v1968 = vunpack.c.l.b16 %v1373
    %v1969 = vunpack.c.h.b16 %v1373
    %v1970 = vunpack.c.l.b16 %v1374
    %v1971 = vunpack.c.h.b16 %v1374
    %v1972 = vunpack.c.l.b16 %v1375
    %v1973 = vunpack.c.h.b16 %v1375
    %v1974 = vunpack.c.l.b16 %v1376
    %v1975 = vunpack.c.h.b16 %v1376
    %v1976 = vunpack.c.l.b16 %v1377
    %v1977 = vunpack.c.h.b16 %v1377
    %v1978 = vunpack.c.l.b16 %v1378
    %v1979 = vunpack.c.h.b16 %v1378
    %v1980 = vunpack.c.l.b16 %v1379
    %v1981 = vunpack.c.h.b16 %v1379
    %v1982 = vunpack.c.l.b16 %v1380
    %v1983 = vunpack.c.h.b16 %v1380
    %v1984 = vunpack.c.l.b16 %v1381
    %v1985 = vunpack.c.h.b16 %v1381
    %v1986 = vunpack.c.l.b16 %v1382
    %v1987 = vunpack.c.h.b16 %v1382
    %v1988 = vunpack.c.l.b16 %v1383
    %v1989 = vunpack.c.h.b16 %v1383
    %v1990 = vunpack.c.l.b16 %v1384
    %v1991 = vunpack.c.h.b16 %v1384
    %v1992 = vunpack.c.l.b16 %v1385
    %v1993 = vunpack.c.h.b16 %v1385
    %v1994 = vunpack.c.l.b16 %v1386
    %v1995 = vunpack.c.h.b16 %v1386
    %v1996 = vunpack.c.l.b16 %v1387
    %v1997 = vunpack.c.h.b16 %v1387
    %v1998 = vunpack.c.l.b16 %v1388
    %v1999 = vunpack.c.h.b16 %v1388
    %v2000 = vunpack.c.l.b16 %v1389
    %v2001 = vunpack.c.h.b16 %v1389
    %v2002 = vunpack.c.l.b16 %v1390
    %v2003 = vunpack.c.h.b16 %v1390
    %v2004 = vunpack.c.l.b16 %v1391
    %v2005 = vunpack.c.h.b16 %v1391
    %v2006 = vunpack.c.l.b16 %v1392
    %v2007 = vunpack.c.h.b16 %v1392
    %v2008 = vunpack.c.l.b16 %v1393
    %v2009 = vunpack.c.h.b16 %v1393
    %v2010 = vunpack.c.l.b16 %v1394
    %v2011 = vunpack.c.h.b16 %v1394
    %v2012 = vunpack.c.l.b16 %v1395
    %v2013 = vunpack.c.h.b16 %v1395
    %v2014 = vunpack.c.l.b16 %v1396
    %v2015 = vunpack.c.h.b16 %v1396
    %v2016 = vunpack.c.l.b16 %v1397
    %v2017 = vunpack.c.h.b16 %v1397
    %v2018 = vunpack.c.l.b16 %v1398
    %v2019 = vunpack.c.h.b16 %v1398
    %v2020 = vunpack.c.l.b16 %v1399
    %v2021 = vunpack.c.h.b16 %v1399
    %v2022 = vunpack.c.l.b16 %v1400
    %v2023 = vunpack.c.h.b16 %v1400
    %v2024 = vunpack.c.l.b16 %v1401
    %v2025 = vunpack.c.h.b16 %v1401
    %v2026 = vunpack.c.l.b16 %v1402
    %v2027 = vunpack.c.h.b16 %v1402
    %v2028 = vunpack.c.l.b16 %v1403
    %v2029 = vunpack.c.h.b16 %v1403
    %v2030 = vunpack.c.l.b16 %v1404
    %v2031 = vunpack.c.h.b16 %v1404
    %v2032 = vunpack.c.l.b16 %v1405
    %v2033 = vunpack.c.h.b16 %v1405
    %v2034 = vunpack.c.l.b16 %v1406
    %v2035 = vunpack.c.h.b16 %v1406
    %v2036 = vunpack.c.l.b16 %v1407
    %v2037 = vunpack.c.h.b16 %v1407
    %v2038 = vunpack.c.l.b16 %v1408
    %v2039 = vunpack.c.h.b16 %v1408
    %v2040 = vunpack.c.l.b16 %v1409
    %v2041 = vunpack.c.h.b16 %v1409
    %v2042 = vunpack.c.l.b16 %v1410
    %v2043 = vunpack.c.h.b16 %v1410
    %v2044 = vunpack.c.l.b16 %v1411
    %v2045 = vunpack.c.h.b16 %v1411
    %v2046 = vunpack.c.l.b16 %v1412
    %v2047 = vunpack.c.h.b16 %v1412
    %v2048 = vunpack.c.l.b16 %v1413
    %v2049 = vunpack.c.h.b16 %v1413
    %v2050 = vunpack.c.l.b16 %v1414
    %v2051 = vunpack.c.h.b16 %v1414
    %v2052 = vunpack.c.l.b16 %v1415
    %v2053 = vunpack.c.h.b16 %v1415
    %v2054 = vunpack.c.l.b16 %v1416
    %v2055 = vunpack.c.h.b16 %v1416
    %v2056 = vunpack.c.l.b16 %v1417
    %v2057 = vunpack.c.h.b16 %v1417
    %v2058 = vunpack.c.l.b16 %v1418
    %v2059 = vunpack.c.h.b16 %v1418
    %v2060 = vunpack.c.l.b16 %v1419
    %v2061 = vunpack.c.h.b16 %v1419
    %v2062 = vunpack.c.l.b16 %v1420
    %v2063 = vunpack.c.h.b16 %v1420
    %v2064 = vunpack.c.l.b16 %v1421
    %v2065 = vunpack.c.h.b16 %v1421
    %v2066 = vunpack.c.l.b16 %v1422
    %v2067 = vunpack.c.h.b16 %v1422
    %v2068 = vunpack.c.l.b16 %v1423
    %v2069 = vunpack.c.h.b16 %v1423
    %v2070 = vunpack.c.l.b16 %v1424
    %v2071 = vunpack.c.h.b16 %v1424
    %v2072 = vunpack.c.l.b16 %v1425
    %v2073 = vunpack.c.h.b16 %v1425
    %v2074 = vunpack.c.l.b16 %v1426
    %v2075 = vunpack.c.h.b16 %v1426
    %v2076 = vunpack.c.l.b16 %v1427
    %v2077 = vunpack.c.h.b16 %v1427
    %v2078 = vunpack.c.l.b16 %v1428
    %v2079 = vunpack.c.h.b16 %v1428
    %v2080 = vunpack.c.l.b16 %v1429
    %v2081 = vunpack.c.h.b16 %v1429
    %v2082 = vunpack.c.l.b16 %v1430
    %v2083 = vunpack.c.h.b16 %v1430
    %v2084 = vunpack.c.l.b16 %v1431
    %v2085 = vunpack.c.h.b16 %v1431
    %v2086 = vunpack.c.l.b16 %v1432
    %v2087 = vunpack.c.h.b16 %v1432
    %v2088 = vunpack.c.l.b16 %v1433
    %v2089 = vunpack.c.h.b16 %v1433
    %v2090 = vunpack.c.l.b16 %v1434
    %v2091 = vunpack.c.h.b16 %v1434
    %v2092 = vunpack.c.l.b16 %v1435
    %v2093 = vunpack.c.h.b16 %v1435
    %v2094 = vunpack.c.l.b16 %v1436
    %v2095 = vunpack.c.h.b16 %v1436
    %v2096 = vunpack.c.l.b16 %v1437
    %v2097 = vunpack.c.h.b16 %v1437
    %v2098 = vunpack.c.l.b16 %v1438
    %v2099 = vunpack.c.h.b16 %v1438
    %v2100 = vunpack.c.l.b16 %v1439
    %v2101 = vunpack.c.h.b16 %v1439
    %v2102 = vunpack.c.l.b16 %v1440
    %v2103 = vunpack.c.h.b16 %v1440
    %v2104 = vunpack.c.l.b16 %v1441
    %v2105 = vunpack.c.h.b16 %v1441
    %v2106 = vunpack.c.l.b16 %v1442
    %v2107 = vunpack.c.h.b16 %v1442
    %v2108 = vunpack.c.l.b16 %v1443
    %v2109 = vunpack.c.h.b16 %v1443
    %v2110 = vunpack.c.l.b16 %v1444
    %v2111 = vunpack.c.h.b16 %v1444
    %v2112 = vunpack.c.l.b16 %v1445
    %v2113 = vunpack.c.h.b16 %v1445
    %v2114 = vunpack.c.l.b16 %v1446
    %v2115 = vunpack.c.h.b16 %v1446
    %v2116 = vunpack.c.l.b16 %v1447
    %v2117 = vunpack.c.h.b16 %v1447
    %v2118 = vunpack.c.l.b16 %v1448
    %v2119 = vunpack.c.h.b16 %v1448
    %v2120 = vunpack.c.l.b16 %v1449
    %v2121 = vunpack.c.h.b16 %v1449
    %v2122 = vunpack.c.l.b16 %v1450
    %v2123 = vunpack.c.h.b16 %v1450
    %v2124 = vunpack.c.l.b16 %v1451
    %v2125 = vunpack.c.h.b16 %v1451
    %v2126 = vunpack.c.l.b16 %v1452
    %v2127 = vunpack.c.h.b16 %v1452
    %v2128 = vunpack.c.l.b16 %v1453
    %v2129 = vunpack.c.h.b16 %v1453
    %v2130 = vunpack.c.l.b16 %v1454
    %v2131 = vunpack.c.h.b16 %v1454
    %v2132 = vunpack.c.l.b16 %v1455
    %v2133 = vunpack.c.h.b16 %v1455
    %v2134 = vunpack.c.l.b16 %v1456
    %v2135 = vunpack.c.h.b16 %v1456
    %v2136 = vunpack.c.l.b16 %v1457
    %v2137 = vunpack.c.h.b16 %v1457
    %v2138 = vunpack.c.l.b16 %v1458
    %v2139 = vunpack.c.h.b16 %v1458
    %v2140 = vunpack.c.l.b16 %v1459
    %v2141 = vunpack.c.h.b16 %v1459
    %v2142 = vunpack.c.l.b16 %v1460
    %v2143 = vunpack.c.h.b16 %v1460
    %v2144 = vunpack.c.l.b16 %v1461
    %v2145 = vunpack.c.h.b16 %v1461
    %v2146 = vunpack.c.l.b16 %v1462
    %v2147 = vunpack.c.h.b16 %v1462
    %v2148 = vunpack.c.l.b16 %v1463
    %v2149 = vunpack.c.h.b16 %v1463
    %v2150 = vunpack.c.l.b16 %v1464
    %v2151 = vunpack.c.h.b16 %v1464
    %v2152 = vunpack.c.l.b16 %v1465
    %v2153 = vunpack.c.h.b16 %v1465
    %v2154 = vunpack.c.l.b16 %v1466
    %v2155 = vunpack.c.h.b16 %v1466
    %v2156 = vunpack.c.l.b16 %v1467
    %v2157 = vunpack.c.h.b16 %v1467
    %v2158 = vunpack.c.l.b16 %v1468
    %v2159 = vunpack.c.h.b16 %v1468
    %v2160 = vunpack.c.l.b16 %v1469
    %v2161 = vunpack.c.h.b16 %v1469
    %v2162 = vunpack.c.l.b16 %v1470
    %v2163 = vunpack.c.h.b16 %v1470
    %v2164 = vunpack.c.l.b16 %v1471
    %v2165 = vunpack.c.h.b16 %v1471
    %v2166 = vunpack.c.l.b16 %v1472
    %v2167 = vunpack.c.h.b16 %v1472
    %v2168 = vunpack.c.l.b16 %v1473
    %v2169 = vunpack.c.h.b16 %v1473
    %v2170 = vunpack.c.l.b16 %v1474
    %v2171 = vunpack.c.h.b16 %v1474
    %v2172 = vunpack.c.l.b16 %v1475
    %v2173 = vunpack.c.h.b16 %v1475
    %v2174 = vunpack.c.l.b16 %v1476
    %v2175 = vunpack.c.h.b16 %v1476
    %v2176 = vunpack.c.l.b16 %v1477
    %v2177 = vunpack.c.h.b16 %v1477
    %v2178 = vunpack.c.l.b16 %v1478
    %v2179 = vunpack.c.h.b16 %v1478
    %v2180 = vunpack.c.l.b16 %v1479
    %v2181 = vunpack.c.h.b16 %v1479
    %v2182 = vunpack.c.l.b16 %v1480
    %v2183 = vunpack.c.h.b16 %v1480
    %v2184 = vunpack.c.l.b16 %v1481
    %v2185 = vunpack.c.h.b16 %v1481
    %v2186 = vunpack.c.l.b16 %v1482
    %v2187 = vunpack.c.h.b16 %v1482
    %v2188 = vunpack.c.l.b16 %v1483
    %v2189 = vunpack.c.h.b16 %v1483
    %v2190 = vunpack.c.l.b16 %v1484
    %v2191 = vunpack.c.h.b16 %v1484
    %v2192 = vunpack.c.l.b16 %v1485
    %v2193 = vunpack.c.h.b16 %v1485
    %v2194 = vunpack.c.l.b16 %v1486
    %v2195 = vunpack.c.h.b16 %v1486
    %v2196 = vunpack.c.l.b16 %v1487
    %v2197 = vunpack.c.h.b16 %v1487
    %v2198 = vunpack.c.l.b16 %v1488
    %v2199 = vunpack.c.h.b16 %v1488
    %v2200 = vunpack.c.l.b16 %v1489
    %v2201 = vunpack.c.h.b16 %v1489
    %v2202 = vunpack.c.l.b16 %v1490
    %v2203 = vunpack.c.h.b16 %v1490
    %v2204 = vunpack.c.l.b16 %v1491
    %v2205 = vunpack.c.h.b16 %v1491
    %v2206 = vunpack.c.l.b16 %v1492
    %v2207 = vunpack.c.h.b16 %v1492
    %v2208 = vunpack.c.l.b16 %v1493
    %v2209 = vunpack.c.h.b16 %v1493
    %v2210 = vunpack.c.l.b16 %v1494
    %v2211 = vunpack.c.h.b16 %v1494
    %v2212 = vunpack.c.l.b16 %v1495
    %v2213 = vunpack.c.h.b16 %v1495
    %v2214 = vunpack.c.l.b16 %v1496
    %v2215 = vunpack.c.h.b16 %v1496
    %v2216 = vunpack.c.l.b16 %v1497
    %v2217 = vunpack.c.h.b16 %v1497
    %v2218 = vunpack.c.l.b16 %v1498
    %v2219 = vunpack.c.h.b16 %v1498
    %v2220 = vunpack.c.l.b16 %v1499
    %v2221 = vunpack.c.h.b16 %v1499
    %v2222 = vunpack.c.l.b16 %v1500
    %v2223 = vunpack.c.h.b16 %v1500
    %v2224 = vunpack.c.l.b16 %v1501
    %v2225 = vunpack.c.h.b16 %v1501
    %v2226 = vunpack.c.l.b16 %v1502
    %v2227 = vunpack.c.h.b16 %v1502
    %v2228 = vunpack.c.l.b16 %v1503
    %v2229 = vunpack.c.h.b16 %v1503
    %v2230 = vunpack.c.l.b16 %v1504
    %v2231 = vunpack.c.h.b16 %v1504
    %v2232 = vunpack.c.l.b16 %v1505
    %v2233 = vunpack.c.h.b16 %v1505
    %v2234 = vunpack.c.l.b16 %v1506
    %v2235 = vunpack.c.h.b16 %v1506
    %v2236 = vunpack.c.l.b16 %v1507
    %v2237 = vunpack.c.h.b16 %v1507
    %v2238 = vunpack.c.l.b16 %v1508
    %v2239 = vunpack.c.h.b16 %v1508
    %v2240 = vunpack.c.l.b16 %v1509
    %v2241 = vunpack.c.h.b16 %v1509
    %v2242 = vunpack.c.l.b16 %v1510
    %v2243 = vunpack.c.h.b16 %v1510
    %v2244 = vunpack.c.l.b16 %v1511
    %v2245 = vunpack.c.h.b16 %v1511
    %v2246 = vunpack.c.l.b16 %v1512
    %v2247 = vunpack.c.h.b16 %v1512
    %v2248 = vunpack.c.l.b16 %v1513
    %v2249 = vunpack.c.h.b16 %v1513
    %v2250 = vunpack.c.l.b16 %v1514
    %v2251 = vunpack.c.h.b16 %v1514
    %v2252 = vunpack.c.l.b16 %v1515
    %v2253 = vunpack.c.h.b16 %v1515
    %v2254 = vunpack.c.l.b16 %v1516
    %v2255 = vunpack.c.h.b16 %v1516
    %v2256 = vunpack.c.l.b16 %v1517
    %v2257 = vunpack.c.h.b16 %v1517
    %v2258 = vunpack.c.l.b16 %v1518
    %v2259 = vunpack.c.h.b16 %v1518
    %v2260 = vunpack.c.l.b16 %v1519
    %v2261 = vunpack.c.h.b16 %v1519
    %v2262 = vunpack.c.l.b16 %v1520
    %v2263 = vunpack.c.h.b16 %v1520
    %v2264 = vunpack.c.l.b16 %v1521
    %v2265 = vunpack.c.h.b16 %v1521
    %v2266 = vunpack.c.l.b16 %v1522
    %v2267 = vunpack.c.h.b16 %v1522
    %v2268 = vunpack.c.l.b16 %v1523
    %v2269 = vunpack.c.h.b16 %v1523
    %v2270 = vunpack.c.l.b16 %v1524
    %v2271 = vunpack.c.h.b16 %v1524
    %v2272 = vunpack.c.l.b16 %v1525
    %v2273 = vunpack.c.h.b16 %v1525
    %v2274 = vunpack.c.l.b16 %v1526
    %v2275 = vunpack.c.h.b16 %v1526
    %v2276 = vunpack.c.l.b16 %v1527
    %v2277 = vunpack.c.h.b16 %v1527
    %v2278 = vunpack.c.l.b16 %v1528
    %v2279 = vunpack.c.h.b16 %v1528
    %v2280 = vunpack.c.l.b16 %v1529
    %v2281 = vunpack.c.h.b16 %v1529
    %v2282 = vunpack.c.l.b16 %v1530
    %v2283 = vunpack.c.h.b16 %v1530
    %v2284 = vunpack.c.l.b16 %v1531
    %v2285 = vunpack.c.h.b16 %v1531
    %v2286 = vunpack.c.l.b16 %v1532
    %v2287 = vunpack.c.h.b16 %v1532
    %v2288 = vunpack.c.l.b16 %v1533
    %v2289 = vunpack.c.h.b16 %v1533
    %v2290 = vunpack.c.l.b16 %v1534
    %v2291 = vunpack.c.h.b16 %v1534
    %v2292 = vunpack.c.l.b16 %v1535
    %v2293 = vunpack.c.h.b16 %v1535
    %v2294 = vunpack.c.l.b16 %v1536
    %v2295 = vunpack.c.h.b16 %v1536
    %v2296 = vunpack.c.l.b16 %v1537
    %v2297 = vunpack.c.h.b16 %v1537
    %v2298 = vunpack.c.l.b16 %v1538
    %v2299 = vunpack.c.h.b16 %v1538
    %v2300 = vunpack.c.l.b16 %v1539
    %v2301 = vunpack.c.h.b16 %v1539
    %v2302 = vunpack.c.l.b16 %v1540
    %v2303 = vunpack.c.h.b16 %v1540
    %v2304 = vunpack.c.l.b16 %v1541
    %v2305 = vunpack.c.h.b16 %v1541
    %v2306 = vunpack.c.l.b16 %v1542
    %v2307 = vunpack.c.h.b16 %v1542
    %v2308 = vunpack.c.l.b16 %v1543
    %v2309 = vunpack.c.h.b16 %v1543
    %v2310 = vunpack.c.l.b16 %v1544
    %v2311 = vunpack.c.h.b16 %v1544
    %v2312 = vunpack.c.l.b16 %v1545
    %v2313 = vunpack.c.h.b16 %v1545
    %v2314 = vunpack.c.l.b16 %v1546
    %v2315 = vunpack.c.h.b16 %v1546
    %v2316 = vunpack.c.l.b16 %v1547
    %v2317 = vunpack.c.h.b16 %v1547
    %v2318 = vunpack.c.l.b16 %v1548
    %v2319 = vunpack.c.h.b16 %v1548
    %v2320 = vunpack.c.l.b16 %v1549
    %v2321 = vunpack.c.h.b16 %v1549
    %v2322 = vunpack.c.l.b16 %v1550
    %v2323 = vunpack.c.h.b16 %v1550
    %v2324 = vunpack.c.l.b16 %v1551
    %v2325 = vunpack.c.h.b16 %v1551
    %v2326 = vunpack.c.l.b16 %v1552
    %v2327 = vunpack.c.h.b16 %v1552
    %v2328 = vunpack.c.l.b16 %v1553
    %v2329 = vunpack.c.h.b16 %v1553
    %v2330 = vunpack.c.l.b16 %v1554
    %v2331 = vunpack.c.h.b16 %v1554
    %v2332 = vunpack.c.l.b16 %v1555
    %v2333 = vunpack.c.h.b16 %v1555
    %v2334 = vunpack.c.l.b16 %v1556
    %v2335 = vunpack.c.h.b16 %v1556
    %v2336 = vunpack.c.l.b16 %v1557
    %v2337 = vunpack.c.h.b16 %v1557
    %v2338 = vunpack.c.l.b16 %v1558
    %v2339 = vunpack.c.h.b16 %v1558
    %v2340 = vunpack.c.l.b16 %v1559
    %v2341 = vunpack.c.h.b16 %v1559
    %v2342 = vunpack.c.l.b16 %v1560
    %v2343 = vunpack.c.h.b16 %v1560
    %v2344 = vunpack.c.l.b16 %v1561
    %v2345 = vunpack.c.h.b16 %v1561
    %v2346 = vunpack.c.l.b16 %v1562
    %v2347 = vunpack.c.h.b16 %v1562
    %v2348 = vunpack.c.l.b16 %v1563
    %v2349 = vunpack.c.h.b16 %v1563
    %v2350 = vunpack.c.l.b16 %v1564
    %v2351 = vunpack.c.h.b16 %v1564
    %v2352 = vunpack.c.l.b16 %v1565
    %v2353 = vunpack.c.h.b16 %v1565
    %v2354 = vunpack.c.l.b16 %v1566
    %v2355 = vunpack.c.h.b16 %v1566
    %v2356 = vunpack.c.l.b16 %v1567
    %v2357 = vunpack.c.h.b16 %v1567
    %v2358 = vpack.c.b16 %v1850, %v1846
    %v2359 = vpack.c.b16 %v1851, %v1847
    %v2360 = vpack.c.b16 %v1852, %v1848
    %v2361 = vpack.c.b16 %v1853, %v1849
    %v2362 = vpack.c.b16 %v1858, %v1854
    %v2363 = vpack.c.b16 %v1859, %v1855
    %v2364 = vpack.c.b16 %v1860, %v1856
    %v2365 = vpack.c.b16 %v1861, %v1857
    %v2366 = vpack.c.b16 %v1866, %v1862
    %v2367 = vpack.c.b16 %v1867, %v1863
    %v2368 = vpack.c.b16 %v1868, %v1864
    %v2369 = vpack.c.b16 %v1869, %v1865
    %v2370 = vpack.c.b16 %v1874, %v1870
    %v2371 = vpack.c.b16 %v1875, %v1871
    %v2372 = vpack.c.b16 %v1876, %v1872
    %v2373 = vpack.c.b16 %v1877, %v1873
    %v2374 = vpack.c.b16 %v1882, %v1878
    %v2375 = vpack.c.b16 %v1883, %v1879
    %v2376 = vpack.c.b16 %v1884, %v1880
    %v2377 = vpack.c.b16 %v1885, %v1881
    %v2378 = vpack.c.b16 %v1890, %v1886
    %v2379 = vpack.c.b16 %v1891, %v1887
    %v2380 = vpack.c.b16 %v1892, %v1888
    %v2381 = vpack.c.b16 %v1893, %v1889
    %v2382 = vpack.c.b16 %v1898, %v1894
    %v2383 = vpack.c.b16 %v1899, %v1895
    %v2384 = vpack.c.b16 %v1900, %v1896
    %v2385 = vpack.c.b16 %v1901, %v1897
    %v2386 = vpack.c.b16 %v1906, %v1902
    %v2387 = vpack.c.b16 %v1907, %v1903
    %v2388 = vpack.c.b16 %v1908, %v1904
    %v2389 = vpack.c.b16 %v1909, %v1905
    %v2390 = vpack.c.b16 %v1914, %v1910
    %v2391 = vpack.c.b16 %v1915, %v1911
    %v2392 = vpack.c.b16 %v1916, %v1912
    %v2393 = vpack.c.b16 %v1917, %v1913
    %v2394 = vpack.c.b16 %v1922, %v1918
    %v2395 = vpack.c.b16 %v1923, %v1919
    %v2396 = vpack.c.b16 %v1924, %v1920
    %v2397 = vpack.c.b16 %v1925, %v1921
    %v2398 = vpack.c.b16 %v1930, %v1926
    %v2399 = vpack.c.b16 %v1931, %v1927
    %v2400 = vpack.c.b16 %v1932, %v1928
    %v2401 = vpack.c.b16 %v1933, %v1929
    %v2402 = vpack.c.b16 %v1938, %v1934
    %v2403 = vpack.c.b16 %v1939, %v1935
    %v2404 = vpack.c.b16 %v1940, %v1936
    %v2405 = vpack.c.b16 %v1941, %v1937
    %v2406 = vpack.c.b16 %v1946, %v1942
    %v2407 = vpack.c.b16 %v1947, %v1943
    %v2408 = vpack.c.b16 %v1948, %v1944
    %v2409 = vpack.c.b16 %v1949, %v1945
    %v2410 = vpack.c.b16 %v1954, %v1950
    %v2411 = vpack.c.b16 %v1955, %v1951
    %v2412 = vpack.c.b16 %v1956, %v1952
    %v2413 = vpack.c.b16 %v1957, %v1953
    %v2414 = vpack.c.b16 %v1962, %v1958
    %v2415 = vpack.c.b16 %v1963, %v1959
    %v2416 = vpack.c.b16 %v1964, %v1960
    %v2417 = vpack.c.b16 %v1965, %v1961
    %v2418 = vpack.c.b16 %v1970, %v1966
    %v2419 = vpack.c.b16 %v1971, %v1967
    %v2420 = vpack.c.b16 %v1972, %v1968
    %v2421 = vpack.c.b16 %v1973, %v1969
    %v2422 = vpack.c.b16 %v1978, %v1974
    %v2423 = vpack.c.b16 %v1979, %v1975
    %v2424 = vpack.c.b16 %v1980, %v1976
    %v2425 = vpack.c.b16 %v1981, %v1977
    %v2426 = vpack.c.b16 %v1986, %v1982
    %v2427 = vpack.c.b16 %v1987, %v1983
    %v2428 = vpack.c.b16 %v1988, %v1984
    %v2429 = vpack.c.b16 %v1989, %v1985
    %v2430 = vpack.c.b16 %v1994, %v1990
    %v2431 = vpack.c.b16 %v1995, %v1991
    %v2432 = vpack.c.b16 %v1996, %v1992
    %v2433 = vpack.c.b16 %v1997, %v1993
    %v2434 = vpack.c.b16 %v2002, %v1998
    %v2435 = vpack.c.b16 %v2003, %v1999
    %v2436 = vpack.c.b16 %v2004, %v2000
    %v2437 = vpack.c.b16 %v2005, %v2001
    %v2438 = vpack.c.b16 %v2010, %v2006
    %v2439 = vpack.c.b16 %v2011, %v2007
    %v2440 = vpack.c.b16 %v2012, %v2008
    %v2441 = vpack.c.b16 %v2013, %v2009
    %v2442 = vpack.c.b16 %v2018, %v2014
    %v2443 = vpack.c.b16 %v2019, %v2015
    %v2444 = vpack.c.b16 %v2020, %v2016
    %v2445 = vpack.c.b16 %v2021, %v2017
    %v2446 = vpack.c.b16 %v2026, %v2022
    %v2447 = vpack.c.b16 %v2027, %v2023
    %v2448 = vpack.c.b16 %v2028, %v2024
    %v2449 = vpack.c.b16 %v2029, %v2025
    %v2450 = vpack.c.b16 %v2034, %v2030
    %v2451 = vpack.c.b16 %v2035, %v2031
    %v2452 = vpack.c.b16 %v2036, %v2032
    %v2453 = vpack.c.b16 %v2037, %v2033
    %v2454 = vpack.c.b16 %v2042, %v2038
    %v2455 = vpack.c.b16 %v2043, %v2039
    %v2456 = vpack.c.b16 %v2044, %v2040
    %v2457 = vpack.c.b16 %v2045, %v2041
    %v2458 = vpack.c.b16 %v2050, %v2046
    %v2459 = vpack.c.b16 %v2051, %v2047
    %v2460 = vpack.c.b16 %v2052, %v2048
    %v2461 = vpack.c.b16 %v2053, %v2049
    %v2462 = vpack.c.b16 %v2058, %v2054
    %v2463 = vpack.c.b16 %v2059, %v2055
    %v2464 = vpack.c.b16 %v2060, %v2056
    %v2465 = vpack.c.b16 %v2061, %v2057
    %v2466 = vpack.c.b16 %v2066, %v2062
    %v2467 = vpack.c.b16 %v2067, %v2063
    %v2468 = vpack.c.b16 %v2068, %v2064
    %v2469 = vpack.c.b16 %v2069, %v2065
    %v2470 = vpack.c.b16 %v2074, %v2070
    %v2471 = vpack.c.b16 %v2075, %v2071
    %v2472 = vpack.c.b16 %v2076, %v2072
    %v2473 = vpack.c.b16 %v2077, %v2073
    %v2474 = vpack.c.b16 %v2082, %v2078
    %v2475 = vpack.c.b16 %v2083, %v2079
    %v2476 = vpack.c.b16 %v2084, %v2080
    %v2477 = vpack.c.b16 %v2085, %v2081
    %v2478 = vpack.c.b16 %v2090, %v2086
    %v2479 = vpack.c.b16 %v2091, %v2087
    %v2480 = vpack.c.b16 %v2092, %v2088
    %v2481 = vpack.c.b16 %v2093, %v2089
    %v2482 = vpack.c.b16 %v2098, %v2094
    %v2483 = vpack.c.b16 %v2099, %v2095
    %v2484 = vpack.c.b16 %v2100, %v2096
    %v2485 = vpack.c.b16 %v2101, %v2097
    %v2486 = vpack.c.b16 %v2106, %v2102
    %v2487 = vpack.c.b16 %v2107, %v2103
    %v2488 = vpack.c.b16 %v2108, %v2104
    %v2489 = vpack.c.b16 %v2109, %v2105
    %v2490 = vpack.c.b16 %v2114, %v2110
    %v2491 = vpack.c.b16 %v2115, %v2111
    %v2492 = vpack.c.b16 %v2116, %v2112
    %v2493 = vpack.c.b16 %v2117, %v2113
    %v2494 = vpack.c.b16 %v2122, %v2118
    %v2495 = vpack.c.b16 %v2123, %v2119
    %v2496 = vpack.c.b16 %v2124, %v2120
    %v2497 = vpack.c.b16 %v2125, %v2121
    %v2498 = vpack.c.b16 %v2130, %v2126
    %v2499 = vpack.c.b16 %v2131, %v2127
    %v2500 = vpack.c.b16 %v2132, %v2128
    %v2501 = vpack.c.b16 %v2133, %v2129
    %v2502 = vpack.c.b16 %v2138, %v2134
    %v2503 = vpack.c.b16 %v2139, %v2135
    %v2504 = vpack.c.b16 %v2140, %v2136
    %v2505 = vpack.c.b16 %v2141, %v2137
    %v2506 = vpack.c.b16 %v2146, %v2142
    %v2507 = vpack.c.b16 %v2147, %v2143
    %v2508 = vpack.c.b16 %v2148, %v2144
    %v2509 = vpack.c.b16 %v2149, %v2145
    %v2510 = vpack.c.b16 %v2154, %v2150
    %v2511 = vpack.c.b16 %v2155, %v2151
    %v2512 = vpack.c.b16 %v2156, %v2152
    %v2513 = vpack.c.b16 %v2157, %v2153
    %v2514 = vpack.c.b16 %v2162, %v2158
    %v2515 = vpack.c.b16 %v2163, %v2159
    %v2516 = vpack.c.b16 %v2164, %v2160
    %v2517 = vpack.c.b16 %v2165, %v2161
    %v2518 = vpack.c.b16 %v2170, %v2166
    %v2519 = vpack.c.b16 %v2171, %v2167
    %v2520 = vpack.c.b16 %v2172, %v2168
    %v2521 = vpack.c.b16 %v2173, %v2169
    %v2522 = vpack.c.b16 %v2178, %v2174
    %v2523 = vpack.c.b16 %v2179, %v2175
    %v2524 = vpack.c.b16 %v2180, %v2176
    %v2525 = vpack.c.b16 %v2181, %v2177
    %v2526 = vpack.c.b16 %v2186, %v2182
    %v2527 = vpack.c.b16 %v2187, %v2183
    %v2528 = vpack.c.b16 %v2188, %v2184
    %v2529 = vpack.c.b16 %v2189, %v2185
    %v2530 = vpack.c.b16 %v2194, %v2190
    %v2531 = vpack.c.b16 %v2195, %v2191
    %v2532 = vpack.c.b16 %v2196, %v2192
    %v2533 = vpack.c.b16 %v2197, %v2193
    %v2534 = vpack.c.b16 %v2202, %v2198
    %v2535 = vpack.c.b16 %v2203, %v2199
    %v2536 = vpack.c.b16 %v2204, %v2200
    %v2537 = vpack.c.b16 %v2205, %v2201
    %v2538 = vpack.c.b16 %v2210, %v2206
    %v2539 = vpack.c.b16 %v2211, %v2207
    %v2540 = vpack.c.b16 %v2212, %v2208
    %v2541 = vpack.c.b16 %v2213, %v2209
    %v2542 = vpack.c.b16 %v2218, %v2214
    %v2543 = vpack.c.b16 %v2219, %v2215
    %v2544 = vpack.c.b16 %v2220, %v2216
    %v2545 = vpack.c.b16 %v2221, %v2217
    %v2546 = vpack.c.b16 %v2226, %v2222
    %v2547 = vpack.c.b16 %v2227, %v2223
    %v2548 = vpack.c.b16 %v2228, %v2224
    %v2549 = vpack.c.b16 %v2229, %v2225
    %v2550 = vpack.c.b16 %v2234, %v2230
    %v2551 = vpack.c.b16 %v2235, %v2231
    %v2552 = vpack.c.b16 %v2236, %v2232
    %v2553 = vpack.c.b16 %v2237, %v2233
    %v2554 = vpack.c.b16 %v2242, %v2238
    %v2555 = vpack.c.b16 %v2243, %v2239
    %v2556 = vpack.c.b16 %v2244, %v2240
    %v2557 = vpack.c.b16 %v2245, %v2241
    %v2558 = vpack.c.b16 %v2250, %v2246
    %v2559 = vpack.c.b16 %v2251, %v2247
    %v2560 = vpack.c.b16 %v2252, %v2248
    %v2561 = vpack.c.b16 %v2253, %v2249
    %v2562 = vpack.c.b16 %v2258, %v2254
    %v2563 = vpack.c.b16 %v2259, %v2255
    %v2564 = vpack.c.b16 %v2260, %v2256
    %v2565 = vpack.c.b16 %v2261, %v2257
    %v2566 = vpack.c.b16 %v2266, %v2262
    %v2567 = vpack.c.b16 %v2267, %v2263
    %v2568 = vpack.c.b16 %v2268, %v2264
    %v2569 = vpack.c.b16 %v2269, %v2265
    %v2570 = vpack.c.b16 %v2274, %v2270
    %v2571 = vpack.c.b16 %v2275, %v2271
    %v2572 = vpack.c.b16 %v2276, %v2272
    %v2573 = vpack.c.b16 %v2277, %v2273
    %v2574 = vpack.c.b16 %v2282, %v2278
    %v2575 = vpack.c.b16 %v2283, %v2279
    %v2576 = vpack.c.b16 %v2284, %v2280
    %v2577 = vpack.c.b16 %v2285, %v2281
    %v2578 = vpack.c.b16 %v2290, %v2286
    %v2579 = vpack.c.b16 %v2291, %v2287
    %v2580 = vpack.c.b16 %v2292, %v2288
    %v2581 = vpack.c.b16 %v2293, %v2289
    %v2582 = vpack.c.b16 %v2298, %v2294
    %v2583 = vpack.c.b16 %v2299, %v2295
    %v2584 = vpack.c.b16 %v2300, %v2296
    %v2585 = vpack.c.b16 %v2301, %v2297
    %v2586 = vpack.c.b16 %v2306, %v2302
    %v2587 = vpack.c.b16 %v2307, %v2303
    %v2588 = vpack.c.b16 %v2308, %v2304
    %v2589 = vpack.c.b16 %v2309, %v2305
    %v2590 = vpack.c.b16 %v2314, %v2310
    %v2591 = vpack.c.b16 %v2315, %v2311
    %v2592 = vpack.c.b16 %v2316, %v2312
    %v2593 = vpack.c.b16 %v2317, %v2313
    %v2594 = vpack.c.b16 %v2322, %v2318
    %v2595 = vpack.c.b16 %v2323, %v2319
    %v2596 = vpack.c.b16 %v2324, %v2320
    %v2597 = vpack.c.b16 %v2325, %v2321
    %v2598 = vpack.c.b16 %v2330, %v2326
    %v2599 = vpack.c.b16 %v2331, %v2327
    %v2600 = vpack.c.b16 %v2332, %v2328
    %v2601 = vpack.c.b16 %v2333, %v2329
    %v2602 = vpack.c.b16 %v2338, %v2334
    %v2603 = vpack.c.b16 %v2339, %v2335
    %v2604 = vpack.c.b16 %v2340, %v2336
    %v2605 = vpack.c.b16 %v2341, %v2337
    %v2606 = vpack.c.b16 %v2346, %v2342
    %v2607 = vpack.c.b16 %v2347, %v2343
    %v2608 = vpack.c.b16 %v2348, %v2344
    %v2609 = vpack.c.b16 %v2349, %v2345
    %v2610 = vpack.c.b16 %v2354, %v2350
    %v2611 = vpack.c.b16 %v2355, %v2351
    %v2612 = vpack.c.b16 %v2356, %v2352
    %v2613 = vpack.c.b16 %v2357, %v2353
    %2870 = vmatprep.subr.bf16.mxu0 %v2359
    %2871 = vmatpush1.bf16.msra.mxu0 %v2358
    %2872 = vmatprep.subr.bf16.mxu0 %v2363
    %2873 = vmatpush1.bf16.msra.mxu0 %v2362
    %2874 = vmatprep.subr.bf16.mxu0 %v2367
    %2875 = vmatpush1.bf16.msra.mxu0 %v2366
    %2876 = vmatprep.subr.bf16.mxu0 %v2371
    %2877 = vmatpush1.bf16.msra.mxu0 %v2370
    %2878 = vmatprep.subr.bf16.mxu0 %v2375
    %2879 = vmatpush1.bf16.msra.mxu0 %v2374
    %2880 = vmatprep.subr.bf16.mxu0 %v2379
    %2881 = vmatpush1.bf16.msra.mxu0 %v2378
    %2882 = vmatprep.subr.bf16.mxu0 %v2383
    %2883 = vmatpush1.bf16.msra.mxu0 %v2382
    %2884 = vmatprep.subr.bf16.mxu0 %v2387
    %2885 = vmatpush1.bf16.msra.mxu0 %v2386
    %2886 = vmatprep.subr.bf16.mxu0 %v2391
    %2887 = vmatpush1.bf16.msra.mxu0 %v2390
    %2888 = vmatprep.subr.bf16.mxu0 %v2395
    %2889 = vmatpush1.bf16.msra.mxu0 %v2394
    %2890 = vmatprep.subr.bf16.mxu0 %v2399
    %2891 = vmatpush1.bf16.msra.mxu0 %v2398
    %2892 = vmatprep.subr.bf16.mxu0 %v2403
    %2893 = vmatpush1.bf16.msra.mxu0 %v2402
    %2894 = vmatprep.subr.bf16.mxu0 %v2407
    %2895 = vmatpush1.bf16.msra.mxu0 %v2406
    %2896 = vmatprep.subr.bf16.mxu0 %v2411
    %2897 = vmatpush1.bf16.msra.mxu0 %v2410
    %2898 = vmatprep.subr.bf16.mxu0 %v2415
    %2899 = vmatpush1.bf16.msra.mxu0 %v2414
    %2900 = vmatprep.subr.bf16.mxu0 %v2419
    %2901 = vmatpush1.bf16.msra.mxu0 %v2418
    %2902 = vmatprep.mubr.bf16.mxu0 %v1305
    %2903 = vmatmul.mubr.bf16.gmra.mrb[0].mxu0 %v1304
    %v2904 = vpop.f32.mrb[0].mxu0
    %v2905 = vadd.f32 %v1573, %v2904
    %v2906 = vpop.f32.mrb[0].mxu0
    %v2907 = vadd.f32 %v1577, %v2906
    %v2908 = vpop.f32.mrb[0].mxu0
    %v2909 = vpop.f32.mrb[0].mxu0
    %2910 = vdwg.mxu0
    %2911 = vmatprep.subr.bf16.mxu0 %v2423
    %2912 = vmatpush1.bf16.msra.mxu0 %v2422
    %2913 = vmatprep.subr.bf16.mxu0 %v2427
    %2914 = vmatpush1.bf16.msra.mxu0 %v2426
    %2915 = vmatprep.subr.bf16.mxu0 %v2431
    %2916 = vmatpush1.bf16.msra.mxu0 %v2430
    %2917 = vmatprep.subr.bf16.mxu0 %v2435
    %2918 = vmatpush1.bf16.msra.mxu0 %v2434
    %2919 = vmatprep.subr.bf16.mxu0 %v2439
    %2920 = vmatpush1.bf16.msra.mxu0 %v2438
    %2921 = vmatprep.subr.bf16.mxu0 %v2443
    %2922 = vmatpush1.bf16.msra.mxu0 %v2442
    %2923 = vmatprep.subr.bf16.mxu0 %v2447
    %2924 = vmatpush1.bf16.msra.mxu0 %v2446
    %2925 = vmatprep.subr.bf16.mxu0 %v2451
    %2926 = vmatpush1.bf16.msra.mxu0 %v2450
    %2927 = vmatprep.subr.bf16.mxu0 %v2455
    %2928 = vmatpush1.bf16.msra.mxu0 %v2454
    %2929 = vmatprep.subr.bf16.mxu0 %v2459
    %2930 = vmatpush1.bf16.msra.mxu0 %v2458
    %2931 = vmatprep.subr.bf16.mxu0 %v2463
    %2932 = vmatpush1.bf16.msra.mxu0 %v2462
    %2933 = vmatprep.subr.bf16.mxu0 %v2467
    %2934 = vmatpush1.bf16.msra.mxu0 %v2466
    %2935 = vmatprep.subr.bf16.mxu0 %v2471
    %2936 = vmatpush1.bf16.msra.mxu0 %v2470
    %2937 = vmatprep.subr.bf16.mxu0 %v2475
    %2938 = vmatpush1.bf16.msra.mxu0 %v2474
    %2939 = vmatprep.subr.bf16.mxu0 %v2479
    %2940 = vmatpush1.bf16.msra.mxu0 %v2478
    %2941 = vmatprep.subr.bf16.mxu0 %v2483
    %2942 = vmatpush1.bf16.msra.mxu0 %v2482
    %2943 = vmatprep.mubr.bf16.mxu0 %v1307
    %2944 = vmatmul.mubr.bf16.gmra.mrb[0].mxu0 %v1306
    %v2945 = vpop.f32.mrb[0].mxu0
    %v2946 = vadd.f32 %v2905, %v2945
    %v2947 = vpop.f32.mrb[0].mxu0
    %v2948 = vadd.f32 %v2907, %v2947
    %v2949 = vpop.f32.mrb[0].mxu0
    %v2950 = vpop.f32.mrb[0].mxu0
    %2951 = vdwg.mxu0
    %2952 = vmatprep.subr.bf16.mxu0 %v2487
    %2953 = vmatpush1.bf16.msra.mxu0 %v2486
    %2954 = vmatprep.subr.bf16.mxu0 %v2491
    %2955 = vmatpush1.bf16.msra.mxu0 %v2490
    %2956 = vmatprep.subr.bf16.mxu0 %v2495
    %2957 = vmatpush1.bf16.msra.mxu0 %v2494
    %2958 = vmatprep.subr.bf16.mxu0 %v2499
    %2959 = vmatpush1.bf16.msra.mxu0 %v2498
    %2960 = vmatprep.subr.bf16.mxu0 %v2503
    %2961 = vmatpush1.bf16.msra.mxu0 %v2502
    %2962 = vmatprep.subr.bf16.mxu0 %v2507
    %2963 = vmatpush1.bf16.msra.mxu0 %v2506
    %2964 = vmatprep.subr.bf16.mxu0 %v2511
    %2965 = vmatpush1.bf16.msra.mxu0 %v2510
    %2966 = vmatprep.subr.bf16.mxu0 %v2515
    %2967 = vmatpush1.bf16.msra.mxu0 %v2514
    %2968 = vmatprep.subr.bf16.mxu0 %v2519
    %2969 = vmatpush1.bf16.msra.mxu0 %v2518
    %2970 = vmatprep.subr.bf16.mxu0 %v2523
    %2971 = vmatpush1.bf16.msra.mxu0 %v2522
    %2972 = vmatprep.subr.bf16.mxu0 %v2527
    %2973 = vmatpush1.bf16.msra.mxu0 %v2526
    %2974 = vmatprep.subr.bf16.mxu0 %v2531
    %2975 = vmatpush1.bf16.msra.mxu0 %v2530
    %2976 = vmatprep.subr.bf16.mxu0 %v2535
    %2977 = vmatpush1.bf16.msra.mxu0 %v2534
    %2978 = vmatprep.subr.bf16.mxu0 %v2539
    %2979 = vmatpush1.bf16.msra.mxu0 %v2538
    %2980 = vmatprep.subr.bf16.mxu0 %v2543
    %2981 = vmatpush1.bf16.msra.mxu0 %v2542
    %2982 = vmatprep.subr.bf16.mxu0 %v2547
    %2983 = vmatpush1.bf16.msra.mxu0 %v2546
    %2984 = vmatprep.mubr.bf16.mxu0 %v1309
    %2985 = vmatmul.mubr.bf16.gmra.mrb[0].mxu0 %v1308
    %v2986 = vpop.f32.mrb[0].mxu0
    %v2987 = vadd.f32 %v2946, %v2986
    %v2988 = vpop.f32.mrb[0].mxu0
    %v2989 = vadd.f32 %v2948, %v2988
    %v2990 = vpop.f32.mrb[0].mxu0
    %v2991 = vpop.f32.mrb[0].mxu0
    %2992 = vdwg.mxu0
    %2993 = vmatprep.subr.bf16.mxu0 %v2551
    %2994 = vmatpush1.bf16.msra.mxu0 %v2550
    %2995 = vmatprep.subr.bf16.mxu0 %v2555
    %2996 = vmatpush1.bf16.msra.mxu0 %v2554
    %2997 = vmatprep.subr.bf16.mxu0 %v2559
    %2998 = vmatpush1.bf16.msra.mxu0 %v2558
    %2999 = vmatprep.subr.bf16.mxu0 %v2563
    %3000 = vmatpush1.bf16.msra.mxu0 %v2562
    %3001 = vmatprep.subr.bf16.mxu0 %v2567
    %3002 = vmatpush1.bf16.msra.mxu0 %v2566
    %3003 = vmatprep.subr.bf16.mxu0 %v2571
    %3004 = vmatpush1.bf16.msra.mxu0 %v2570
    %3005 = vmatprep.subr.bf16.mxu0 %v2575
    %3006 = vmatpush1.bf16.msra.mxu0 %v2574
    %3007 = vmatprep.subr.bf16.mxu0 %v2579
    %3008 = vmatpush1.bf16.msra.mxu0 %v2578
    %3009 = vmatprep.subr.bf16.mxu0 %v2583
    %3010 = vmatpush1.bf16.msra.mxu0 %v2582
    %3011 = vmatprep.subr.bf16.mxu0 %v2587
    %3012 = vmatpush1.bf16.msra.mxu0 %v2586
    %3013 = vmatprep.subr.bf16.mxu0 %v2591
    %3014 = vmatpush1.bf16.msra.mxu0 %v2590
    %3015 = vmatprep.subr.bf16.mxu0 %v2595
    %3016 = vmatpush1.bf16.msra.mxu0 %v2594
    %3017 = vmatprep.subr.bf16.mxu0 %v2599
    %3018 = vmatpush1.bf16.msra.mxu0 %v2598
    %3019 = vmatprep.subr.bf16.mxu0 %v2603
    %3020 = vmatpush1.bf16.msra.mxu0 %v2602
    %3021 = vmatprep.subr.bf16.mxu0 %v2607
    %3022 = vmatpush1.bf16.msra.mxu0 %v2606
    %3023 = vmatprep.subr.bf16.mxu0 %v2611
    %3024 = vmatpush1.bf16.msra.mxu0 %v2610
    %3025 = vmatprep.mubr.bf16.mxu0 %v1311
    %3026 = vmatmul.mubr.bf16.gmra.mrb[0].mxu0 %v1310
    %v3027 = vpop.f32.mrb[0].mxu0
    %v3028 = vadd.f32 %v2987, %v3027
    %v3029 = vpop.f32.mrb[0].mxu0
    %v3030 = vadd.f32 %v2989, %v3029
    %v3031 = vpop.f32.mrb[0].mxu0
    %v3032 = vpop.f32.mrb[0].mxu0
    %3033 = vdwg.mxu0
    %3034 = vmatprep.subr.bf16.mxu0 %v2361
    %3035 = vmatpush1.bf16.msra.mxu0 %v2360
    %3036 = vmatprep.subr.bf16.mxu0 %v2365
    %3037 = vmatpush1.bf16.msra.mxu0 %v2364
    %3038 = vmatprep.subr.bf16.mxu0 %v2369
    %3039 = vmatpush1.bf16.msra.mxu0 %v2368
    %3040 = vmatprep.subr.bf16.mxu0 %v2373
    %3041 = vmatpush1.bf16.msra.mxu0 %v2372
    %3042 = vmatprep.subr.bf16.mxu0 %v2377
    %3043 = vmatpush1.bf16.msra.mxu0 %v2376
    %3044 = vmatprep.subr.bf16.mxu0 %v2381
    %3045 = vmatpush1.bf16.msra.mxu0 %v2380
    %3046 = vmatprep.subr.bf16.mxu0 %v2385
    %3047 = vmatpush1.bf16.msra.mxu0 %v2384
    %3048 = vmatprep.subr.bf16.mxu0 %v2389
    %3049 = vmatpush1.bf16.msra.mxu0 %v2388
    %3050 = vmatprep.subr.bf16.mxu0 %v2393
    %3051 = vmatpush1.bf16.msra.mxu0 %v2392
    %3052 = vmatprep.subr.bf16.mxu0 %v2397
    %3053 = vmatpush1.bf16.msra.mxu0 %v2396
    %3054 = vmatprep.subr.bf16.mxu0 %v2401
    %3055 = vmatpush1.bf16.msra.mxu0 %v2400
    %3056 = vmatprep.subr.bf16.mxu0 %v2405
    %3057 = vmatpush1.bf16.msra.mxu0 %v2404
    %3058 = vmatprep.subr.bf16.mxu0 %v2409
    %3059 = vmatpush1.bf16.msra.mxu0 %v2408
    %3060 = vmatprep.subr.bf16.mxu0 %v2413
    %3061 = vmatpush1.bf16.msra.mxu0 %v2412
    %3062 = vmatprep.subr.bf16.mxu0 %v2417
    %3063 = vmatpush1.bf16.msra.mxu0 %v2416
    %3064 = vmatprep.subr.bf16.mxu0 %v2421
    %3065 = vmatpush1.bf16.msra.mxu0 %v2420
    %3066 = vmatprep.mubr.bf16.mxu0 %v1305
    %3067 = vmatmul.mubr.bf16.gmra.mrb[0].mxu0 %v1304
    %v3068 = vpop.f32.mrb[0].mxu0
    %v3069 = vadd.f32 %v1581, %v3068
    %v3070 = vpop.f32.mrb[0].mxu0
    %v3071 = vadd.f32 %v1585, %v3070
    %v3072 = vpop.f32.mrb[0].mxu0
    %v3073 = vpop.f32.mrb[0].mxu0
    %3074 = vdwg.mxu0
    %3075 = vmatprep.subr.bf16.mxu0 %v2425
    %3076 = vmatpush1.bf16.msra.mxu0 %v2424
    %3077 = vmatprep.subr.bf16.mxu0 %v2429
    %3078 = vmatpush1.bf16.msra.mxu0 %v2428
    %3079 = vmatprep.subr.bf16.mxu0 %v2433
    %3080 = vmatpush1.bf16.msra.mxu0 %v2432
    %3081 = vmatprep.subr.bf16.mxu0 %v2437
    %3082 = vmatpush1.bf16.msra.mxu0 %v2436
    %3083 = vmatprep.subr.bf16.mxu0 %v2441
    %3084 = vmatpush1.bf16.msra.mxu0 %v2440
    %3085 = vmatprep.subr.bf16.mxu0 %v2445
    %3086 = vmatpush1.bf16.msra.mxu0 %v2444
    %3087 = vmatprep.subr.bf16.mxu0 %v2449
    %3088 = vmatpush1.bf16.msra.mxu0 %v2448
    %3089 = vmatprep.subr.bf16.mxu0 %v2453
    %3090 = vmatpush1.bf16.msra.mxu0 %v2452
    %3091 = vmatprep.subr.bf16.mxu0 %v2457
    %3092 = vmatpush1.bf16.msra.mxu0 %v2456
    %3093 = vmatprep.subr.bf16.mxu0 %v2461
    %3094 = vmatpush1.bf16.msra.mxu0 %v2460
    %3095 = vmatprep.subr.bf16.mxu0 %v2465
    %3096 = vmatpush1.bf16.msra.mxu0 %v2464
    %3097 = vmatprep.subr.bf16.mxu0 %v2469
    %3098 = vmatpush1.bf16.msra.mxu0 %v2468
    %3099 = vmatprep.subr.bf16.mxu0 %v2473
    %3100 = vmatpush1.bf16.msra.mxu0 %v2472
    %3101 = vmatprep.subr.bf16.mxu0 %v2477
    %3102 = vmatpush1.bf16.msra.mxu0 %v2476
    %3103 = vmatprep.subr.bf16.mxu0 %v2481
    %3104 = vmatpush1.bf16.msra.mxu0 %v2480
    %3105 = vmatprep.subr.bf16.mxu0 %v2485
    %3106 = vmatpush1.bf16.msra.mxu0 %v2484
    %3107 = vmatprep.mubr.bf16.mxu0 %v1307
    %3108 = vmatmul.mubr.bf16.gmra.mrb[0].mxu0 %v1306
    %v3109 = vpop.f32.mrb[0].mxu0
    %v3110 = vadd.f32 %v3069, %v3109
    %v3111 = vpop.f32.mrb[0].mxu0
    %v3112 = vadd.f32 %v3071, %v3111
    %v3113 = vpop.f32.mrb[0].mxu0
    %v3114 = vpop.f32.mrb[0].mxu0
    %3115 = vdwg.mxu0
    %3116 = vmatprep.subr.bf16.mxu0 %v2489
    %3117 = vmatpush1.bf16.msra.mxu0 %v2488
    %3118 = vmatprep.subr.bf16.mxu0 %v2493
    %3119 = vmatpush1.bf16.msra.mxu0 %v2492
    %3120 = vmatprep.subr.bf16.mxu0 %v2497
    %3121 = vmatpush1.bf16.msra.mxu0 %v2496
    %3122 = vmatprep.subr.bf16.mxu0 %v2501
    %3123 = vmatpush1.bf16.msra.mxu0 %v2500
    %3124 = vmatprep.subr.bf16.mxu0 %v2505
    %3125 = vmatpush1.bf16.msra.mxu0 %v2504
    %3126 = vmatprep.subr.bf16.mxu0 %v2509
    %3127 = vmatpush1.bf16.msra.mxu0 %v2508
    %3128 = vmatprep.subr.bf16.mxu0 %v2513
    %3129 = vmatpush1.bf16.msra.mxu0 %v2512
    %3130 = vmatprep.subr.bf16.mxu0 %v2517
    %3131 = vmatpush1.bf16.msra.mxu0 %v2516
    %3132 = vmatprep.subr.bf16.mxu0 %v2521
    %3133 = vmatpush1.bf16.msra.mxu0 %v2520
    %3134 = vmatprep.subr.bf16.mxu0 %v2525
    %3135 = vmatpush1.bf16.msra.mxu0 %v2524
    %3136 = vmatprep.subr.bf16.mxu0 %v2529
    %3137 = vmatpush1.bf16.msra.mxu0 %v2528
    %3138 = vmatprep.subr.bf16.mxu0 %v2533
    %3139 = vmatpush1.bf16.msra.mxu0 %v2532
    %3140 = vmatprep.subr.bf16.mxu0 %v2537
    %3141 = vmatpush1.bf16.msra.mxu0 %v2536
    %3142 = vmatprep.subr.bf16.mxu0 %v2541
    %3143 = vmatpush1.bf16.msra.mxu0 %v2540
    %3144 = vmatprep.subr.bf16.mxu0 %v2545
    %3145 = vmatpush1.bf16.msra.mxu0 %v2544
    %3146 = vmatprep.subr.bf16.mxu0 %v2549
    %3147 = vmatpush1.bf16.msra.mxu0 %v2548
    %3148 = vmatprep.mubr.bf16.mxu0 %v1309
    %3149 = vmatmul.mubr.bf16.gmra.mrb[0].mxu0 %v1308
    %v3150 = vpop.f32.mrb[0].mxu0
    %v3151 = vadd.f32 %v3110, %v3150
    %v3152 = vpop.f32.mrb[0].mxu0
    %v3153 = vadd.f32 %v3112, %v3152
    %v3154 = vpop.f32.mrb[0].mxu0
    %v3155 = vpop.f32.mrb[0].mxu0
    %3156 = vdwg.mxu0
    %3157 = vmatprep.subr.bf16.mxu0 %v2553
    %3158 = vmatpush1.bf16.msra.mxu0 %v2552
    %3159 = vmatprep.subr.bf16.mxu0 %v2557
    %3160 = vmatpush1.bf16.msra.mxu0 %v2556
    %3161 = vmatprep.subr.bf16.mxu0 %v2561
    %3162 = vmatpush1.bf16.msra.mxu0 %v2560
    %3163 = vmatprep.subr.bf16.mxu0 %v2565
    %3164 = vmatpush1.bf16.msra.mxu0 %v2564
    %3165 = vmatprep.subr.bf16.mxu0 %v2569
    %3166 = vmatpush1.bf16.msra.mxu0 %v2568
    %3167 = vmatprep.subr.bf16.mxu0 %v2573
    %3168 = vmatpush1.bf16.msra.mxu0 %v2572
    %3169 = vmatprep.subr.bf16.mxu0 %v2577
    %3170 = vmatpush1.bf16.msra.mxu0 %v2576
    %3171 = vmatprep.subr.bf16.mxu0 %v2581
    %3172 = vmatpush1.bf16.msra.mxu0 %v2580
    %3173 = vmatprep.subr.bf16.mxu0 %v2585
    %3174 = vmatpush1.bf16.msra.mxu0 %v2584
    %3175 = vmatprep.subr.bf16.mxu0 %v2589
    %3176 = vmatpush1.bf16.msra.mxu0 %v2588
    %3177 = vmatprep.subr.bf16.mxu0 %v2593
    %3178 = vmatpush1.bf16.msra.mxu0 %v2592
    %3179 = vmatprep.subr.bf16.mxu0 %v2597
    %3180 = vmatpush1.bf16.msra.mxu0 %v2596
    %3181 = vmatprep.subr.bf16.mxu0 %v2601
    %3182 = vmatpush1.bf16.msra.mxu0 %v2600
    %3183 = vmatprep.subr.bf16.mxu0 %v2605
    %3184 = vmatpush1.bf16.msra.mxu0 %v2604
    %3185 = vmatprep.subr.bf16.mxu0 %v2609
    %3186 = vmatpush1.bf16.msra.mxu0 %v2608
    %3187 = vmatprep.subr.bf16.mxu0 %v2613
    %3188 = vmatpush1.bf16.msra.mxu0 %v2612
    %3189 = vmatprep.mubr.bf16.mxu0 %v1311
    %3190 = vmatmul.mubr.bf16.gmra.mrb[0].mxu0 %v1310
    %v3191 = vpop.f32.mrb[0].mxu0
    %v3192 = vadd.f32 %v3151, %v3191
    %v3193 = vpop.f32.mrb[0].mxu0
    %v3194 = vadd.f32 %v3153, %v3193
    %v3195 = vpop.f32.mrb[0].mxu0
    %v3196 = vpop.f32.mrb[0].mxu0
    %3197 = vdwg.mxu0
    %3198 = vst [vmem:[#allocation12] sm:$0xff] %v3028
    %3199 = vst [vmem:[#allocation12 + $0x8] sm:$0xff] %v3030
    %3200 = vst [vmem:[#allocation12 + $0x10] sm:$0xff] %v3192
    %3201 = vst [vmem:[#allocation12 + $0x18] sm:$0xff] %v3194
    // Predicated region
    $region54: #{tpu_custom_call.1} parent=1 // pred_check
      _
    $region55: #{tpu_custom_call.1} parent=1 // pred_check_branch
      %3203 = sbr.rel (0) target = $region57
    $region56: #{tpu_custom_call.1} parent=1 // pred_region
      %s3205 = ssub.s32 512, 512
      %3206 = vsyncadd [#allocation6], %s3205
      %s3208 = sshll.u32 [#allocation12], 4
      %s3209 = int_to_ptr.vmem [resolvable:$true] %s3208
      %3211 = dma.vmem_to_hbm [thread:$0]  %s3209, 512, %s9, [#allocation6]
    $region57: #{tpu_custom_call.1} parent=1 // pred_fallthru
      _
    // Predicated region
    $region58: #{tpu_custom_call.1} parent=1 // pred_check
      _
    $region59: #{tpu_custom_call.1} parent=1 // pred_check_branch
      %3213 = sbr.rel (0) target = $region61
    $region60: #{tpu_custom_call.1} parent=1 // pred_region
      %3214 = dma.done [#allocation6], 512
    $region61: #{tpu_custom_call.1} parent=1 // pred_fallthru
      _
    %3215 = vsyncpa [#allocation5], 1
    %3216 = vsyncpa [#allocation8], 1
    %3217 = vsyncpa [#allocation11], 1
    %3218 = vsyncpa [#allocation6], 1

// kernel: tpu_custom_call.1
$region0: #{tpu_custom_call.1}
  #allocation0 [shape = 'u32[]', space=smem, size = 0x4, offset = 0x4, fixed_abs, tag = 'smem constant byte address 0x4 - core index']
  #allocation1 [shape = 'u32[144,128]{1,0:T(1,128)}', space=vmem, size = 0x12000, scoped, tag = 'internal scratch']
  #allocation2 [shape = 'f32[1]{0:T(128)S(6)}', space=smem, size = 0x200, scoped, tag = 'scoped memory for tpu_custom_call.1']
  #allocation3 [shape = 'f32[1]{0:T(128)S(6)}', space=smem, size = 0x200, scoped, tag = 'scoped memory for tpu_custom_call.1']
  %s0 = inlined_call_operand.hbm [shape: f32[8,192], index: 0, kind: input, shape index: {}]
  %s1 = inlined_call_operand.hbm [shape: bf16[192,256], index: 1, kind: input, shape index: {}]
  %s2 = inlined_call_operand.vmem [shape: f32[1,256], index: 2, kind: input, shape index: {}]
  %s3 = inlined_call_operand.<no memory space> [shape: f32[1], index: 3, kind: input, shape index: {}]
  %s4 = inlined_call_operand.hbm [shape: bf16[256,1024], index: 4, kind: input, shape index: {}]
  %s5 = inlined_call_operand.vmem [shape: f32[1,1024], index: 5, kind: input, shape index: {}]
  %s6 = inlined_call_operand.<no memory space> [shape: f32[1], index: 6, kind: input, shape index: {}]
  %s7 = inlined_call_operand.hbm [shape: bf16[1024,512], index: 7, kind: input, shape index: {}]
  %s8 = inlined_call_operand.vmem [shape: f32[1,512], index: 8, kind: input, shape index: {}]
  %s9 = inlined_call_operand.hbm [shape: f32[8,512], index: 9, kind: output, shape index: {}]
  %s10 = sld [smem:[#allocation0]]
  $region62: #{tpu_custom_call.1} parent=0
    _
  %s12 = ssub.s32 1, %s10
  %s13 = scalar_select 0, %s12, %s10
  %14 = sst [smem:[#allocation2]] %s3
  %15 = sst [smem:[#allocation3]] %s6
  $region1: #{tpu_custom_call.1} parent=0
    #allocation4 [shape = 'u8[8192]{0}', space=vmem, size = 0x2000, scoped, tag = 'input window, operand 0, single buffered']
    #allocation5 [shape = 's32[1]{0}', space=sflag, size = 0x4, scoped, tag = 'scoped memory for tpu_custom_call.1']
    #allocation6 [shape = 's32[1]{0}', space=sflag, size = 0x4, scoped, tag = 'scoped memory for tpu_custom_call.1']
    #allocation7 [shape = 'u8[98304]{0}', space=vmem, size = 0x18000, scoped, tag = 'input window, operand 1, single buffered']
    #allocation8 [shape = 's32[1]{0}', space=sflag, size = 0x4, scoped, tag = 'scoped memory for tpu_custom_call.1']
    #allocation9 [shape = 'u8[524288]{0}', space=vmem, size = 0x80000, scoped, tag = 'input window, operand 4, single buffered']
    #allocation10 [shape = 'u8[1048576]{0}', space=vmem, size = 0x100000, scoped, tag = 'input window, operand 7, single buffered']
    #allocation11 [shape = 's32[1]{0}', space=sflag, size = 0x4, scoped, tag = 'scoped memory for tpu_custom_call.1']
    #allocation12 [shape = 'u8[16384]{0}', space=vmem, size = 0x4000, scoped, tag = 'output window, operand 0, single buffered']
    %16 = vsyncpa [#allocation5], 0
    %17 = vsyncpa [#allocation8], 0
    %18 = vsyncpa [#allocation11], 0
    %19 = vsyncpa [#allocation6], 0
    // Predicated region
    $region2: #{tpu_custom_call.1} parent=1 // pred_check
      _
    $region3: #{tpu_custom_call.1} parent=1 // pred_check_branch
      %21 = sbr.rel (0) target = $region5
    $region4: #{tpu_custom_call.1} parent=1 // pred_region
      %s23 = ssub.s32 256, 256
      %24 = vsyncadd [#allocation5], %s23
      %s26 = sshll.u32 [#allocation4], 4
      %s27 = int_to_ptr.vmem [resolvable:$true] %s26
      %29 = dma.hbm_to_vmem [thread:$0]  %s0, 256, %s27, [#allocation5]
    $region5: #{tpu_custom_call.1} parent=1 // pred_fallthru
      _
    // Predicated region
    $region6: #{tpu_custom_call.1} parent=1 // pred_check
      _
    $region7: #{tpu_custom_call.1} parent=1 // pred_check_branch
      %31 = sbr.rel (0) target = $region9
    $region8: #{tpu_custom_call.1} parent=1 // pred_region
      %s33 = ssub.s32 3072, 3072
      %34 = vsyncadd [#allocation8], %s33
      %s35 = sshll.u32 [#allocation7], 4
      %s36 = int_to_ptr.vmem [resolvable:$true] %s35
      %41 = dma.hbm_to_vmem [thread:$0]  %s1, 3072, %s36, [#allocation8], 128, 128, 8
    $region9: #{tpu_custom_call.1} parent=1 // pred_fallthru
      _
    // Predicated region
    $region10: #{tpu_custom_call.1} parent=1 // pred_check
      _
    $region11: #{tpu_custom_call.1} parent=1 // pred_check_branch
      %43 = sbr.rel (0) target = $region13
    $region12: #{tpu_custom_call.1} parent=1 // pred_region
      _
    $region13: #{tpu_custom_call.1} parent=1 // pred_fallthru
      _
    // Predicated region
    $region14: #{tpu_custom_call.1} parent=1 // pred_check
      _
    $region15: #{tpu_custom_call.1} parent=1 // pred_check_branch
      %45 = sbr.rel (0) target = $region17
    $region16: #{tpu_custom_call.1} parent=1 // pred_region
      _
    $region17: #{tpu_custom_call.1} parent=1 // pred_fallthru
      _
    // Predicated region
    $region18: #{tpu_custom_call.1} parent=1 // pred_check
      _
    $region19: #{tpu_custom_call.1} parent=1 // pred_check_branch
      %47 = sbr.rel (0) target = $region21
    $region20: #{tpu_custom_call.1} parent=1 // pred_region
      %s49 = ssub.s32 16384, 16384
      %50 = vsyncadd [#allocation8], %s49
      %s51 = sshll.u32 [#allocation9], 4
      %s52 = int_to_ptr.vmem [resolvable:$true] %s51
      %57 = dma.hbm_to_vmem [thread:$0]  %s4, 16384, %s52, [#allocation8], 512, 512, 32
    $region21: #{tpu_custom_call.1} parent=1 // pred_fallthru
      _
    // Predicated region
    $region22: #{tpu_custom_call.1} parent=1 // pred_check
      _
    $region23: #{tpu_custom_call.1} parent=1 // pred_check_branch
      %59 = sbr.rel (0) target = $region25
    $region24: #{tpu_custom_call.1} parent=1 // pred_region
      _
    $region25: #{tpu_custom_call.1} parent=1 // pred_fallthru
      _
    // Predicated region
    $region26: #{tpu_custom_call.1} parent=1 // pred_check
      _
    $region27: #{tpu_custom_call.1} parent=1 // pred_check_branch
      %61 = sbr.rel (0) target = $region29
    $region28: #{tpu_custom_call.1} parent=1 // pred_region
      _
    $region29: #{tpu_custom_call.1} parent=1 // pred_fallthru
      _
    // Predicated region
    $region30: #{tpu_custom_call.1} parent=1 // pred_check
      _
    $region31: #{tpu_custom_call.1} parent=1 // pred_check_branch
      %63 = sbr.rel (0) target = $region33
    $region32: #{tpu_custom_call.1} parent=1 // pred_region
      %s65 = ssub.s32 32768, 32768
      %66 = vsyncadd [#allocation11], %s65
      %s67 = sshll.u32 [#allocation10], 4
      %s68 = int_to_ptr.vmem [resolvable:$true] %s67
      %73 = dma.hbm_to_vmem [thread:$0]  %s7, 32768, %s68, [#allocation11], 256, 256, 16
    $region33: #{tpu_custom_call.1} parent=1 // pred_fallthru
      _
    // Predicated region
    $region34: #{tpu_custom_call.1} parent=1 // pred_check
      _
    $region35: #{tpu_custom_call.1} parent=1 // pred_check_branch
      %75 = sbr.rel (0) target = $region37
    $region36: #{tpu_custom_call.1} parent=1 // pred_region
      _
    $region37: #{tpu_custom_call.1} parent=1 // pred_fallthru
      _
    // Predicated region
    $region38: #{tpu_custom_call.1} parent=1 // pred_check
      _
    $region39: #{tpu_custom_call.1} parent=1 // pred_check_branch
      %77 = sbr.rel (0) target = $region41
    $region40: #{tpu_custom_call.1} parent=1 // pred_region
      %78 = dma.done [#allocation5], 256
    $region41: #{tpu_custom_call.1} parent=1 // pred_fallthru
      _
    // Predicated region
    $region42: #{tpu_custom_call.1} parent=1 // pred_check
      _
    $region43: #{tpu_custom_call.1} parent=1 // pred_check_branch
      %80 = sbr.rel (0) target = $region45
    $region44: #{tpu_custom_call.1} parent=1 // pred_region
      %81 = dma.done [#allocation8], 3072
    $region45: #{tpu_custom_call.1} parent=1 // pred_fallthru
      _
    // Predicated region
    $region46: #{tpu_custom_call.1} parent=1 // pred_check
      _
    $region47: #{tpu_custom_call.1} parent=1 // pred_check_branch
      %83 = sbr.rel (0) target = $region49
    $region48: #{tpu_custom_call.1} parent=1 // pred_region
      %84 = dma.done [#allocation8], 16384
    $region49: #{tpu_custom_call.1} parent=1 // pred_fallthru
      _
    // Predicated region
    $region50: #{tpu_custom_call.1} parent=1 // pred_check
      _
    $region51: #{tpu_custom_call.1} parent=1 // pred_check_branch
      %86 = sbr.rel (0) target = $region53
    $region52: #{tpu_custom_call.1} parent=1 // pred_region
      %87 = dma.done [#allocation11], 32768
    $region53: #{tpu_custom_call.1} parent=1 // pred_fallthru
      _
    %v89 = vld [vmem:[#allocation4] sm:$0xff]
    %v90 = vld [vmem:[#allocation4 + $0x8] sm:$0xff]
    %v91 = vpack.c.bf16 %v89, %v89
    %v92 = vpack.c.bf16 %v90, %v90
    %v93 = vld [vmem:[#allocation7] sm:$0xff]
    %v94 = vld [vmem:[#allocation7 + $0x8] sm:$0xff]
    %v95 = vld [vmem:[#allocation7 + $0x10] sm:$0xff]
    %v96 = vld [vmem:[#allocation7 + $0x18] sm:$0xff]
    %v97 = vld [vmem:[#allocation7 + $0x20] sm:$0xff]
    %v98 = vld [vmem:[#allocation7 + $0x28] sm:$0xff]
    %v99 = vld [vmem:[#allocation7 + $0x30] sm:$0xff]
    %v100 = vld [vmem:[#allocation7 + $0x38] sm:$0xff]
    %v101 = vld [vmem:[#allocation7 + $0x40] sm:$0xff]
    %v102 = vld [vmem:[#allocation7 + $0x48] sm:$0xff]
    %v103 = vld [vmem:[#allocation7 + $0x50] sm:$0xff]
    %v104 = vld [vmem:[#allocation7 + $0x58] sm:$0xff]
    %v105 = vld [vmem:[#allocation7 + $0x60] sm:$0xff]
    %v106 = vld [vmem:[#allocation7 + $0x68] sm:$0xff]
    %v107 = vld [vmem:[#allocation7 + $0x70] sm:$0xff]
    %v108 = vld [vmem:[#allocation7 + $0x78] sm:$0xff]
    %v109 = vld [vmem:[#allocation7 + $0x80] sm:$0xff]
    %v110 = vld [vmem:[#allocation7 + $0x88] sm:$0xff]
    %v111 = vld [vmem:[#allocation7 + $0x90] sm:$0xff]
    %v112 = vld [vmem:[#allocation7 + $0x98] sm:$0xff]
    %v113 = vld [vmem:[#allocation7 + $0xa0] sm:$0xff]
    %v114 = vld [vmem:[#allocation7 + $0xa8] sm:$0xff]
    %v115 = vld [vmem:[#allocation7 + $0xb0] sm:$0xff]
    %v116 = vld [vmem:[#allocation7 + $0xb8] sm:$0xff]
    %v117 = vld [vmem:[%s2] sm:$0x3]
    %v119 = vlaneseq
    %v120 = vshrl.u32 %v119, 7
    %v121 = vsub.s32 0, %v120
    %v122 = vrot.slane %v117, %v121
    %v123 = vlaneseq
    %v124 = vshrl.u32 %v123, 7
    %v125 = vsub.s32 1, %v124
    %v126 = vrot.slane %v117, %v125
    %v153 = vunpack.c.l.b16 %v93
    %v154 = vunpack.c.h.b16 %v93
    %v155 = vunpack.c.l.b16 %v94
    %v156 = vunpack.c.h.b16 %v94
    %v157 = vunpack.c.l.b16 %v95
    %v158 = vunpack.c.h.b16 %v95
    %v159 = vunpack.c.l.b16 %v96
    %v160 = vunpack.c.h.b16 %v96
    %v161 = vunpack.c.l.b16 %v97
    %v162 = vunpack.c.h.b16 %v97
    %v163 = vunpack.c.l.b16 %v98
    %v164 = vunpack.c.h.b16 %v98
    %v165 = vunpack.c.l.b16 %v99
    %v166 = vunpack.c.h.b16 %v99
    %v167 = vunpack.c.l.b16 %v100
    %v168 = vunpack.c.h.b16 %v100
    %v169 = vunpack.c.l.b16 %v101
    %v170 = vunpack.c.h.b16 %v101
    %v171 = vunpack.c.l.b16 %v102
    %v172 = vunpack.c.h.b16 %v102
    %v173 = vunpack.c.l.b16 %v103
    %v174 = vunpack.c.h.b16 %v103
    %v175 = vunpack.c.l.b16 %v104
    %v176 = vunpack.c.h.b16 %v104
    %v177 = vunpack.c.l.b16 %v105
    %v178 = vunpack.c.h.b16 %v105
    %v179 = vunpack.c.l.b16 %v106
    %v180 = vunpack.c.h.b16 %v106
    %v181 = vunpack.c.l.b16 %v107
    %v182 = vunpack.c.h.b16 %v107
    %v183 = vunpack.c.l.b16 %v108
    %v184 = vunpack.c.h.b16 %v108
    %v185 = vunpack.c.l.b16 %v109
    %v186 = vunpack.c.h.b16 %v109
    %v187 = vunpack.c.l.b16 %v110
    %v188 = vunpack.c.h.b16 %v110
    %v189 = vunpack.c.l.b16 %v111
    %v190 = vunpack.c.h.b16 %v111
    %v191 = vunpack.c.l.b16 %v112
    %v192 = vunpack.c.h.b16 %v112
    %v193 = vunpack.c.l.b16 %v113
    %v194 = vunpack.c.h.b16 %v113
    %v195 = vunpack.c.l.b16 %v114
    %v196 = vunpack.c.h.b16 %v114
    %v197 = vunpack.c.l.b16 %v115
    %v198 = vunpack.c.h.b16 %v115
    %v199 = vunpack.c.l.b16 %v116
    %v200 = vunpack.c.h.b16 %v116
    %v201 = vpack.c.b16 %v155, %v153
    %v202 = vpack.c.b16 %v156, %v154
    %v203 = vpack.c.b16 %v159, %v157
    %v204 = vpack.c.b16 %v160, %v158
    %v205 = vpack.c.b16 %v163, %v161
    %v206 = vpack.c.b16 %v164, %v162
    %v207 = vpack.c.b16 %v167, %v165
    %v208 = vpack.c.b16 %v168, %v166
    %v209 = vpack.c.b16 %v171, %v169
    %v210 = vpack.c.b16 %v172, %v170
    %v211 = vpack.c.b16 %v175, %v173
    %v212 = vpack.c.b16 %v176, %v174
    %v213 = vpack.c.b16 %v179, %v177
    %v214 = vpack.c.b16 %v180, %v178
    %v215 = vpack.c.b16 %v183, %v181
    %v216 = vpack.c.b16 %v184, %v182
    %v217 = vpack.c.b16 %v187, %v185
    %v218 = vpack.c.b16 %v188, %v186
    %v219 = vpack.c.b16 %v191, %v189
    %v220 = vpack.c.b16 %v192, %v190
    %v221 = vpack.c.b16 %v195, %v193
    %v222 = vpack.c.b16 %v196, %v194
    %v223 = vpack.c.b16 %v199, %v197
    %v224 = vpack.c.b16 %v200, %v198
    %vm249 = vcmask 523264
    %v251 = vsel %vm249, %v92, 0
    %253 = vmatprep.subr.bf16.mxu0 %v202
    %254 = vmatpush1.bf16.msra.mxu0 %v201
    %255 = vmatprep.subr.bf16.mxu0 %v204
    %256 = vmatpush1.bf16.msra.mxu0 %v203
    %257 = vmatprep.subr.bf16.mxu0 %v206
    %258 = vmatpush1.bf16.msra.mxu0 %v205
    %259 = vmatprep.subr.bf16.mxu0 %v208
    %260 = vmatpush1.bf16.msra.mxu0 %v207
    %261 = vmatprep.subr.bf16.mxu0 %v210
    %262 = vmatpush1.bf16.msra.mxu0 %v209
    %263 = vmatprep.subr.bf16.mxu0 %v212
    %264 = vmatpush1.bf16.msra.mxu0 %v211
    %265 = vmatprep.subr.bf16.mxu0 %v214
    %266 = vmatpush1.bf16.msra.mxu0 %v213
    %267 = vmatprep.subr.bf16.mxu0 %v216
    %268 = vmatpush1.bf16.msra.mxu0 %v215
    %269 = vmatprep.subr.bf16.mxu0 %v218
    %270 = vmatpush1.bf16.msra.mxu0 %v217
    %271 = vmatprep.subr.bf16.mxu0 %v220
    %272 = vmatpush1.bf16.msra.mxu0 %v219
    %273 = vmatprep.subr.bf16.mxu0 %v222
    %274 = vmatpush1.bf16.msra.mxu0 %v221
    %275 = vmatprep.subr.bf16.mxu0 %v224
    %276 = vmatpush1.bf16.msra.mxu0 %v223
    %277 = vmatprep.subr.bf16.mxu0 0
    %278 = vmatpush1.bf16.msra.mxu0 0
    %279 = vmatprep.subr.bf16.mxu0 0
    %280 = vmatpush1.bf16.msra.mxu0 0
    %281 = vmatprep.subr.bf16.mxu0 0
    %282 = vmatpush1.bf16.msra.mxu0 0
    %283 = vmatprep.subr.bf16.mxu0 0
    %284 = vmatpush1.bf16.msra.mxu0 0
    %285 = vmatprep.mubr.bf16.mxu0 %v251
    %286 = vmatmul.mubr.bf16.gmra.mrb[0].mxu0 %v91
    %v287 = vpop.f32.mrb[0].mxu0
    %v288 = vadd.f32 %v122, %v287
    %v289 = vpop.f32.mrb[0].mxu0
    %v290 = vadd.f32 %v126, %v289
    %v291 = vpop.f32.mrb[0].mxu0
    %v292 = vpop.f32.mrb[0].mxu0
    %293 = vdwg.mxu0
    %vm294 = vcmp.ge.f32.partialorder %v288, 0.0
    %vm295 = vcmp.ge.f32.partialorder %v290, 0.0
    %s296 = sld [smem:[#allocation2]]
    %v297 = vstv %s296
    %v298 = vmul.f32 %v297, %v288
    %v299 = vmul.f32 %v297, %v290
    %v300 = vsel %vm294, %v288, %v298
    %v301 = vsel %vm295, %v290, %v299
    %v302 = vpack.c.bf16 %v300, %v300
    %v303 = vpack.c.bf16 %v301, %v301
    %v304 = vld [vmem:[#allocation9] sm:$0xff]
    %v305 = vld [vmem:[#allocation9 + $0x8] sm:$0xff]
    %v306 = vld [vmem:[#allocation9 + $0x10] sm:$0xff]
    %v307 = vld [vmem:[#allocation9 + $0x18] sm:$0xff]
    %v308 = vld [vmem:[#allocation9 + $0x20] sm:$0xff]
    %v309 = vld [vmem:[#allocation9 + $0x28] sm:$0xff]
    %v310 = vld [vmem:[#allocation9 + $0x30] sm:$0xff]
    %v311 = vld [vmem:[#allocation9 + $0x38] sm:$0xff]
    %v312 = vld [vmem:[#allocation9 + $0x40] sm:$0xff]
    %v313 = vld [vmem:[#allocation9 + $0x48] sm:$0xff]
    %v314 = vld [vmem:[#allocation9 + $0x50] sm:$0xff]
    %v315 = vld [vmem:[#allocation9 + $0x58] sm:$0xff]
    %v316 = vld [vmem:[#allocation9 + $0x60] sm:$0xff]
    %v317 = vld [vmem:[#allocation9 + $0x68] sm:$0xff]
    %v318 = vld [vmem:[#allocation9 + $0x70] sm:$0xff]
    %v319 = vld [vmem:[#allocation9 + $0x78] sm:$0xff]
    %v320 = vld [vmem:[#allocation9 + $0x80] sm:$0xff]
    %v321 = vld [vmem:[#allocation9 + $0x88] sm:$0xff]
    %v322 = vld [vmem:[#allocation9 + $0x90] sm:$0xff]
    %v323 = vld [vmem:[#allocation9 + $0x98] sm:$0xff]
    %v324 = vld [vmem:[#allocation9 + $0xa0] sm:$0xff]
    %v325 = vld [vmem:[#allocation9 + $0xa8] sm:$0xff]
    %v326 = vld [vmem:[#allocation9 + $0xb0] sm:$0xff]
    %v327 = vld [vmem:[#allocation9 + $0xb8] sm:$0xff]
    %v328 = vld [vmem:[#allocation9 + $0xc0] sm:$0xff]
    %v329 = vld [vmem:[#allocation9 + $0xc8] sm:$0xff]
    %v330 = vld [vmem:[#allocation9 + $0xd0] sm:$0xff]
    %v331 = vld [vmem:[#allocation9 + $0xd8] sm:$0xff]
    %v332 = vld [vmem:[#allocation9 + $0xe0] sm:$0xff]
    %v333 = vld [vmem:[#allocation9 + $0xe8] sm:$0xff]
    %v334 = vld [vmem:[#allocation9 + $0xf0] sm:$0xff]
    %v335 = vld [vmem:[#allocation9 + $0xf8] sm:$0xff]
    %v336 = vld [vmem:[#allocation9 + $0x100] sm:$0xff]
    %v337 = vld [vmem:[#allocation9 + $0x108] sm:$0xff]
    %v338 = vld [vmem:[#allocation9 + $0x110] sm:$0xff]
    %v339 = vld [vmem:[#allocation9 + $0x118] sm:$0xff]
    %v340 = vld [vmem:[#allocation9 + $0x120] sm:$0xff]
    %v341 = vld [vmem:[#allocation9 + $0x128] sm:$0xff]
    %v342 = vld [vmem:[#allocation9 + $0x130] sm:$0xff]
    %v343 = vld [vmem:[#allocation9 + $0x138] sm:$0xff]
    %v344 = vld [vmem:[#allocation9 + $0x140] sm:$0xff]
    %v345 = vld [vmem:[#allocation9 + $0x148] sm:$0xff]
    %v346 = vld [vmem:[#allocation9 + $0x150] sm:$0xff]
    %v347 = vld [vmem:[#allocation9 + $0x158] sm:$0xff]
    %v348 = vld [vmem:[#allocation9 + $0x160] sm:$0xff]
    %v349 = vld [vmem:[#allocation9 + $0x168] sm:$0xff]
    %v350 = vld [vmem:[#allocation9 + $0x170] sm:$0xff]
    %v351 = vld [vmem:[#allocation9 + $0x178] sm:$0xff]
    %v352 = vld [vmem:[#allocation9 + $0x180] sm:$0xff]
    %v353 = vld [vmem:[#allocation9 + $0x188] sm:$0xff]
    %v354 = vld [vmem:[#allocation9 + $0x190] sm:$0xff]
    %v355 = vld [vmem:[#allocation9 + $0x198] sm:$0xff]
    %v356 = vld [vmem:[#allocation9 + $0x1a0] sm:$0xff]
    %v357 = vld [vmem:[#allocation9 + $0x1a8] sm:$0xff]
    %v358 = vld [vmem:[#allocation9 + $0x1b0] sm:$0xff]
    %v359 = vld [vmem:[#allocation9 + $0x1b8] sm:$0xff]
    %v360 = vld [vmem:[#allocation9 + $0x1c0] sm:$0xff]
    %v361 = vld [vmem:[#allocation9 + $0x1c8] sm:$0xff]
    %v362 = vld [vmem:[#allocation9 + $0x1d0] sm:$0xff]
    %v363 = vld [vmem:[#allocation9 + $0x1d8] sm:$0xff]
    %v364 = vld [vmem:[#allocation9 + $0x1e0] sm:$0xff]
    %v365 = vld [vmem:[#allocation9 + $0x1e8] sm:$0xff]
    %v366 = vld [vmem:[#allocation9 + $0x1f0] sm:$0xff]
    %v367 = vld [vmem:[#allocation9 + $0x1f8] sm:$0xff]
    %v368 = vld [vmem:[#allocation9 + $0x200] sm:$0xff]
    %v369 = vld [vmem:[#allocation9 + $0x208] sm:$0xff]
    %v370 = vld [vmem:[#allocation9 + $0x210] sm:$0xff]
    %v371 = vld [vmem:[#allocation9 + $0x218] sm:$0xff]
    %v372 = vld [vmem:[#allocation9 + $0x220] sm:$0xff]
    %v373 = vld [vmem:[#allocation9 + $0x228] sm:$0xff]
    %v374 = vld [vmem:[#allocation9 + $0x230] sm:$0xff]
    %v375 = vld [vmem:[#allocation9 + $0x238] sm:$0xff]
    %v376 = vld [vmem:[#allocation9 + $0x240] sm:$0xff]
    %v377 = vld [vmem:[#allocation9 + $0x248] sm:$0xff]
    %v378 = vld [vmem:[#allocation9 + $0x250] sm:$0xff]
    %v379 = vld [vmem:[#allocation9 + $0x258] sm:$0xff]
    %v380 = vld [vmem:[#allocation9 + $0x260] sm:$0xff]
    %v381 = vld [vmem:[#allocation9 + $0x268] sm:$0xff]
    %v382 = vld [vmem:[#allocation9 + $0x270] sm:$0xff]
    %v383 = vld [vmem:[#allocation9 + $0x278] sm:$0xff]
    %v384 = vld [vmem:[#allocation9 + $0x280] sm:$0xff]
    %v385 = vld [vmem:[#allocation9 + $0x288] sm:$0xff]
    %v386 = vld [vmem:[#allocation9 + $0x290] sm:$0xff]
    %v387 = vld [vmem:[#allocation9 + $0x298] sm:$0xff]
    %v388 = vld [vmem:[#allocation9 + $0x2a0] sm:$0xff]
    %v389 = vld [vmem:[#allocation9 + $0x2a8] sm:$0xff]
    %v390 = vld [vmem:[#allocation9 + $0x2b0] sm:$0xff]
    %v391 = vld [vmem:[#allocation9 + $0x2b8] sm:$0xff]
    %v392 = vld [vmem:[#allocation9 + $0x2c0] sm:$0xff]
    %v393 = vld [vmem:[#allocation9 + $0x2c8] sm:$0xff]
    %v394 = vld [vmem:[#allocation9 + $0x2d0] sm:$0xff]
    %v395 = vld [vmem:[#allocation9 + $0x2d8] sm:$0xff]
    %v396 = vld [vmem:[#allocation9 + $0x2e0] sm:$0xff]
    %v397 = vld [vmem:[#allocation9 + $0x2e8] sm:$0xff]
    %v398 = vld [vmem:[#allocation9 + $0x2f0] sm:$0xff]
    %v399 = vld [vmem:[#allocation9 + $0x2f8] sm:$0xff]
    %v400 = vld [vmem:[#allocation9 + $0x300] sm:$0xff]
    %v401 = vld [vmem:[#allocation9 + $0x308] sm:$0xff]
    %v402 = vld [vmem:[#allocation9 + $0x310] sm:$0xff]
    %v403 = vld [vmem:[#allocation9 + $0x318] sm:$0xff]
    %v404 = vld [vmem:[#allocation9 + $0x320] sm:$0xff]
    %v405 = vld [vmem:[#allocation9 + $0x328] sm:$0xff]
    %v406 = vld [vmem:[#allocation9 + $0x330] sm:$0xff]
    %v407 = vld [vmem:[#allocation9 + $0x338] sm:$0xff]
    %v408 = vld [vmem:[#allocation9 + $0x340] sm:$0xff]
    %v409 = vld [vmem:[#allocation9 + $0x348] sm:$0xff]
    %v410 = vld [vmem:[#allocation9 + $0x350] sm:$0xff]
    %v411 = vld [vmem:[#allocation9 + $0x358] sm:$0xff]
    %v412 = vld [vmem:[#allocation9 + $0x360] sm:$0xff]
    %v413 = vld [vmem:[#allocation9 + $0x368] sm:$0xff]
    %v414 = vld [vmem:[#allocation9 + $0x370] sm:$0xff]
    %v415 = vld [vmem:[#allocation9 + $0x378] sm:$0xff]
    %v416 = vld [vmem:[#allocation9 + $0x380] sm:$0xff]
    %v417 = vld [vmem:[#allocation9 + $0x388] sm:$0xff]
    %v418 = vld [vmem:[#allocation9 + $0x390] sm:$0xff]
    %v419 = vld [vmem:[#allocation9 + $0x398] sm:$0xff]
    %v420 = vld [vmem:[#allocation9 + $0x3a0] sm:$0xff]
    %v421 = vld [vmem:[#allocation9 + $0x3a8] sm:$0xff]
    %v422 = vld [vmem:[#allocation9 + $0x3b0] sm:$0xff]
    %v423 = vld [vmem:[#allocation9 + $0x3b8] sm:$0xff]
    %v424 = vld [vmem:[#allocation9 + $0x3c0] sm:$0xff]
    %v425 = vld [vmem:[#allocation9 + $0x3c8] sm:$0xff]
    %v426 = vld [vmem:[#allocation9 + $0x3d0] sm:$0xff]
    %v427 = vld [vmem:[#allocation9 + $0x3d8] sm:$0xff]
    %v428 = vld [vmem:[#allocation9 + $0x3e0] sm:$0xff]
    %v429 = vld [vmem:[#allocation9 + $0x3e8] sm:$0xff]
    %v430 = vld [vmem:[#allocation9 + $0x3f0] sm:$0xff]
    %v431 = vld [vmem:[#allocation9 + $0x3f8] sm:$0xff]
    %v432 = vld [vmem:[%s5] sm:$0xff]
    %v434 = vlaneseq
    %v435 = vshrl.u32 %v434, 7
    %v436 = vsub.s32 0, %v435
    %v437 = vrot.slane %v432, %v436
    %v438 = vlaneseq
    %v439 = vshrl.u32 %v438, 7
    %v440 = vsub.s32 1, %v439
    %v441 = vrot.slane %v432, %v440
    %v442 = vlaneseq
    %v443 = vshrl.u32 %v442, 7
    %v444 = vsub.s32 2, %v443
    %v445 = vrot.slane %v432, %v444
    %v446 = vlaneseq
    %v447 = vshrl.u32 %v446, 7
    %v448 = vsub.s32 3, %v447
    %v449 = vrot.slane %v432, %v448
    %v450 = vlaneseq
    %v451 = vshrl.u32 %v450, 7
    %v452 = vsub.s32 4, %v451
    %v453 = vrot.slane %v432, %v452
    %v454 = vlaneseq
    %v455 = vshrl.u32 %v454, 7
    %v456 = vsub.s32 5, %v455
    %v457 = vrot.slane %v432, %v456
    %v458 = vlaneseq
    %v459 = vshrl.u32 %v458, 7
    %v460 = vsub.s32 6, %v459
    %v461 = vrot.slane %v432, %v460
    %v462 = vlaneseq
    %v463 = vshrl.u32 %v462, 7
    %v464 = vsub.s32 7, %v463
    %v465 = vrot.slane %v432, %v464
    %v602 = vunpack.c.l.b16 %v304
    %v603 = vunpack.c.h.b16 %v304
    %v604 = vunpack.c.l.b16 %v305
    %v605 = vunpack.c.h.b16 %v305
    %v606 = vunpack.c.l.b16 %v306
    %v607 = vunpack.c.h.b16 %v306
    %v608 = vunpack.c.l.b16 %v307
    %v609 = vunpack.c.h.b16 %v307
    %v610 = vunpack.c.l.b16 %v308
    %v611 = vunpack.c.h.b16 %v308
    %v612 = vunpack.c.l.b16 %v309
    %v613 = vunpack.c.h.b16 %v309
    %v614 = vunpack.c.l.b16 %v310
    %v615 = vunpack.c.h.b16 %v310
    %v616 = vunpack.c.l.b16 %v311
    %v617 = vunpack.c.h.b16 %v311
    %v618 = vunpack.c.l.b16 %v312
    %v619 = vunpack.c.h.b16 %v312
    %v620 = vunpack.c.l.b16 %v313
    %v621 = vunpack.c.h.b16 %v313
    %v622 = vunpack.c.l.b16 %v314
    %v623 = vunpack.c.h.b16 %v314
    %v624 = vunpack.c.l.b16 %v315
    %v625 = vunpack.c.h.b16 %v315
    %v626 = vunpack.c.l.b16 %v316
    %v627 = vunpack.c.h.b16 %v316
    %v628 = vunpack.c.l.b16 %v317
    %v629 = vunpack.c.h.b16 %v317
    %v630 = vunpack.c.l.b16 %v318
    %v631 = vunpack.c.h.b16 %v318
    %v632 = vunpack.c.l.b16 %v319
    %v633 = vunpack.c.h.b16 %v319
    %v634 = vunpack.c.l.b16 %v320
    %v635 = vunpack.c.h.b16 %v320
    %v636 = vunpack.c.l.b16 %v321
    %v637 = vunpack.c.h.b16 %v321
    %v638 = vunpack.c.l.b16 %v322
    %v639 = vunpack.c.h.b16 %v322
    %v640 = vunpack.c.l.b16 %v323
    %v641 = vunpack.c.h.b16 %v323
    %v642 = vunpack.c.l.b16 %v324
    %v643 = vunpack.c.h.b16 %v324
    %v644 = vunpack.c.l.b16 %v325
    %v645 = vunpack.c.h.b16 %v325
    %v646 = vunpack.c.l.b16 %v326
    %v647 = vunpack.c.h.b16 %v326
    %v648 = vunpack.c.l.b16 %v327
    %v649 = vunpack.c.h.b16 %v327
    %v650 = vunpack.c.l.b16 %v328
    %v651 = vunpack.c.h.b16 %v328
    %v652 = vunpack.c.l.b16 %v329
    %v653 = vunpack.c.h.b16 %v329
    %v654 = vunpack.c.l.b16 %v330
    %v655 = vunpack.c.h.b16 %v330
    %v656 = vunpack.c.l.b16 %v331
    %v657 = vunpack.c.h.b16 %v331
    %v658 = vunpack.c.l.b16 %v332
    %v659 = vunpack.c.h.b16 %v332
    %v660 = vunpack.c.l.b16 %v333
    %v661 = vunpack.c.h.b16 %v333
    %v662 = vunpack.c.l.b16 %v334
    %v663 = vunpack.c.h.b16 %v334
    %v664 = vunpack.c.l.b16 %v335
    %v665 = vunpack.c.h.b16 %v335
    %v666 = vunpack.c.l.b16 %v336
    %v667 = vunpack.c.h.b16 %v336
    %v668 = vunpack.c.l.b16 %v337
    %v669 = vunpack.c.h.b16 %v337
    %v670 = vunpack.c.l.b16 %v338
    %v671 = vunpack.c.h.b16 %v338
    %v672 = vunpack.c.l.b16 %v339
    %v673 = vunpack.c.h.b16 %v339
    %v674 = vunpack.c.l.b16 %v340
    %v675 = vunpack.c.h.b16 %v340
    %v676 = vunpack.c.l.b16 %v341
    %v677 = vunpack.c.h.b16 %v341
    %v678 = vunpack.c.l.b16 %v342
    %v679 = vunpack.c.h.b16 %v342
    %v680 = vunpack.c.l.b16 %v343
    %v681 = vunpack.c.h.b16 %v343
    %v682 = vunpack.c.l.b16 %v344
    %v683 = vunpack.c.h.b16 %v344
    %v684 = vunpack.c.l.b16 %v345
    %v685 = vunpack.c.h.b16 %v345
    %v686 = vunpack.c.l.b16 %v346
    %v687 = vunpack.c.h.b16 %v346
    %v688 = vunpack.c.l.b16 %v347
    %v689 = vunpack.c.h.b16 %v347
    %v690 = vunpack.c.l.b16 %v348
    %v691 = vunpack.c.h.b16 %v348
    %v692 = vunpack.c.l.b16 %v349
    %v693 = vunpack.c.h.b16 %v349
    %v694 = vunpack.c.l.b16 %v350
    %v695 = vunpack.c.h.b16 %v350
    %v696 = vunpack.c.l.b16 %v351
    %v697 = vunpack.c.h.b16 %v351
    %v698 = vunpack.c.l.b16 %v352
    %v699 = vunpack.c.h.b16 %v352
    %v700 = vunpack.c.l.b16 %v353
    %v701 = vunpack.c.h.b16 %v353
    %v702 = vunpack.c.l.b16 %v354
    %v703 = vunpack.c.h.b16 %v354
    %v704 = vunpack.c.l.b16 %v355
    %v705 = vunpack.c.h.b16 %v355
    %v706 = vunpack.c.l.b16 %v356
    %v707 = vunpack.c.h.b16 %v356
    %v708 = vunpack.c.l.b16 %v357
    %v709 = vunpack.c.h.b16 %v357
    %v710 = vunpack.c.l.b16 %v358
    %v711 = vunpack.c.h.b16 %v358
    %v712 = vunpack.c.l.b16 %v359
    %v713 = vunpack.c.h.b16 %v359
    %v714 = vunpack.c.l.b16 %v360
    %v715 = vunpack.c.h.b16 %v360
    %v716 = vunpack.c.l.b16 %v361
    %v717 = vunpack.c.h.b16 %v361
    %v718 = vunpack.c.l.b16 %v362
    %v719 = vunpack.c.h.b16 %v362
    %v720 = vunpack.c.l.b16 %v363
    %v721 = vunpack.c.h.b16 %v363
    %v722 = vunpack.c.l.b16 %v364
    %v723 = vunpack.c.h.b16 %v364
    %v724 = vunpack.c.l.b16 %v365
    %v725 = vunpack.c.h.b16 %v365
    %v726 = vunpack.c.l.b16 %v366
    %v727 = vunpack.c.h.b16 %v366
    %v728 = vunpack.c.l.b16 %v367
    %v729 = vunpack.c.h.b16 %v367
    %v730 = vunpack.c.l.b16 %v368
    %v731 = vunpack.c.h.b16 %v368
    %v732 = vunpack.c.l.b16 %v369
    %v733 = vunpack.c.h.b16 %v369
    %v734 = vunpack.c.l.b16 %v370
    %v735 = vunpack.c.h.b16 %v370
    %v736 = vunpack.c.l.b16 %v371
    %v737 = vunpack.c.h.b16 %v371
    %v738 = vunpack.c.l.b16 %v372
    %v739 = vunpack.c.h.b16 %v372
    %v740 = vunpack.c.l.b16 %v373
    %v741 = vunpack.c.h.b16 %v373
    %v742 = vunpack.c.l.b16 %v374
    %v743 = vunpack.c.h.b16 %v374
    %v744 = vunpack.c.l.b16 %v375
    %v745 = vunpack.c.h.b16 %v375
    %v746 = vunpack.c.l.b16 %v376
    %v747 = vunpack.c.h.b16 %v376
    %v748 = vunpack.c.l.b16 %v377
    %v749 = vunpack.c.h.b16 %v377
    %v750 = vunpack.c.l.b16 %v378
    %v751 = vunpack.c.h.b16 %v378
    %v752 = vunpack.c.l.b16 %v379
    %v753 = vunpack.c.h.b16 %v379
    %v754 = vunpack.c.l.b16 %v380
    %v755 = vunpack.c.h.b16 %v380
    %v756 = vunpack.c.l.b16 %v381
    %v757 = vunpack.c.h.b16 %v381
    %v758 = vunpack.c.l.b16 %v382
    %v759 = vunpack.c.h.b16 %v382
    %v760 = vunpack.c.l.b16 %v383
    %v761 = vunpack.c.h.b16 %v383
    %v762 = vunpack.c.l.b16 %v384
    %v763 = vunpack.c.h.b16 %v384
    %v764 = vunpack.c.l.b16 %v385
    %v765 = vunpack.c.h.b16 %v385
    %v766 = vunpack.c.l.b16 %v386
    %v767 = vunpack.c.h.b16 %v386
    %v768 = vunpack.c.l.b16 %v387
    %v769 = vunpack.c.h.b16 %v387
    %v770 = vunpack.c.l.b16 %v388
    %v771 = vunpack.c.h.b16 %v388
    %v772 = vunpack.c.l.b16 %v389
    %v773 = vunpack.c.h.b16 %v389
    %v774 = vunpack.c.l.b16 %v390
    %v775 = vunpack.c.h.b16 %v390
    %v776 = vunpack.c.l.b16 %v391
    %v777 = vunpack.c.h.b16 %v391
    %v778 = vunpack.c.l.b16 %v392
    %v779 = vunpack.c.h.b16 %v392
    %v780 = vunpack.c.l.b16 %v393
    %v781 = vunpack.c.h.b16 %v393
    %v782 = vunpack.c.l.b16 %v394
    %v783 = vunpack.c.h.b16 %v394
    %v784 = vunpack.c.l.b16 %v395
    %v785 = vunpack.c.h.b16 %v395
    %v786 = vunpack.c.l.b16 %v396
    %v787 = vunpack.c.h.b16 %v396
    %v788 = vunpack.c.l.b16 %v397
    %v789 = vunpack.c.h.b16 %v397
    %v790 = vunpack.c.l.b16 %v398
    %v791 = vunpack.c.h.b16 %v398
    %v792 = vunpack.c.l.b16 %v399
    %v793 = vunpack.c.h.b16 %v399
    %v794 = vunpack.c.l.b16 %v400
    %v795 = vunpack.c.h.b16 %v400
    %v796 = vunpack.c.l.b16 %v401
    %v797 = vunpack.c.h.b16 %v401
    %v798 = vunpack.c.l.b16 %v402
    %v799 = vunpack.c.h.b16 %v402
    %v800 = vunpack.c.l.b16 %v403
    %v801 = vunpack.c.h.b16 %v403
    %v802 = vunpack.c.l.b16 %v404
    %v803 = vunpack.c.h.b16 %v404
    %v804 = vunpack.c.l.b16 %v405
    %v805 = vunpack.c.h.b16 %v405
    %v806 = vunpack.c.l.b16 %v406
    %v807 = vunpack.c.h.b16 %v406
    %v808 = vunpack.c.l.b16 %v407
    %v809 = vunpack.c.h.b16 %v407
    %v810 = vunpack.c.l.b16 %v408
    %v811 = vunpack.c.h.b16 %v408
    %v812 = vunpack.c.l.b16 %v409
    %v813 = vunpack.c.h.b16 %v409
    %v814 = vunpack.c.l.b16 %v410
    %v815 = vunpack.c.h.b16 %v410
    %v816 = vunpack.c.l.b16 %v411
    %v817 = vunpack.c.h.b16 %v411
    %v818 = vunpack.c.l.b16 %v412
    %v819 = vunpack.c.h.b16 %v412
    %v820 = vunpack.c.l.b16 %v413
    %v821 = vunpack.c.h.b16 %v413
    %v822 = vunpack.c.l.b16 %v414
    %v823 = vunpack.c.h.b16 %v414
    %v824 = vunpack.c.l.b16 %v415
    %v825 = vunpack.c.h.b16 %v415
    %v826 = vunpack.c.l.b16 %v416
    %v827 = vunpack.c.h.b16 %v416
    %v828 = vunpack.c.l.b16 %v417
    %v829 = vunpack.c.h.b16 %v417
    %v830 = vunpack.c.l.b16 %v418
    %v831 = vunpack.c.h.b16 %v418
    %v832 = vunpack.c.l.b16 %v419
    %v833 = vunpack.c.h.b16 %v419
    %v834 = vunpack.c.l.b16 %v420
    %v835 = vunpack.c.h.b16 %v420
    %v836 = vunpack.c.l.b16 %v421
    %v837 = vunpack.c.h.b16 %v421
    %v838 = vunpack.c.l.b16 %v422
    %v839 = vunpack.c.h.b16 %v422
    %v840 = vunpack.c.l.b16 %v423
    %v841 = vunpack.c.h.b16 %v423
    %v842 = vunpack.c.l.b16 %v424
    %v843 = vunpack.c.h.b16 %v424
    %v844 = vunpack.c.l.b16 %v425
    %v845 = vunpack.c.h.b16 %v425
    %v846 = vunpack.c.l.b16 %v426
    %v847 = vunpack.c.h.b16 %v426
    %v848 = vunpack.c.l.b16 %v427
    %v849 = vunpack.c.h.b16 %v427
    %v850 = vunpack.c.l.b16 %v428
    %v851 = vunpack.c.h.b16 %v428
    %v852 = vunpack.c.l.b16 %v429
    %v853 = vunpack.c.h.b16 %v429
    %v854 = vunpack.c.l.b16 %v430
    %v855 = vunpack.c.h.b16 %v430
    %v856 = vunpack.c.l.b16 %v431
    %v857 = vunpack.c.h.b16 %v431
    %v858 = vpack.c.b16 %v610, %v602
    %v859 = vpack.c.b16 %v611, %v603
    %v860 = vpack.c.b16 %v612, %v604
    %v861 = vpack.c.b16 %v613, %v605
    %v862 = vpack.c.b16 %v614, %v606
    %v863 = vpack.c.b16 %v615, %v607
    %v864 = vpack.c.b16 %v616, %v608
    %v865 = vpack.c.b16 %v617, %v609
    %v866 = vpack.c.b16 %v626, %v618
    %v867 = vpack.c.b16 %v627, %v619
    %v868 = vpack.c.b16 %v628, %v620
    %v869 = vpack.c.b16 %v629, %v621
    %v870 = vpack.c.b16 %v630, %v622
    %v871 = vpack.c.b16 %v631, %v623
    %v872 = vpack.c.b16 %v632, %v624
    %v873 = vpack.c.b16 %v633, %v625
    %v874 = vpack.c.b16 %v642, %v634
    %v875 = vpack.c.b16 %v643, %v635
    %v876 = vpack.c.b16 %v644, %v636
    %v877 = vpack.c.b16 %v645, %v637
    %v878 = vpack.c.b16 %v646, %v638
    %v879 = vpack.c.b16 %v647, %v639
    %v880 = vpack.c.b16 %v648, %v640
    %v881 = vpack.c.b16 %v649, %v641
    %v882 = vpack.c.b16 %v658, %v650
    %v883 = vpack.c.b16 %v659, %v651
    %v884 = vpack.c.b16 %v660, %v652
    %v885 = vpack.c.b16 %v661, %v653
    %v886 = vpack.c.b16 %v662, %v654
    %v887 = vpack.c.b16 %v663, %v655
    %v888 = vpack.c.b16 %v664, %v656
    %v889 = vpack.c.b16 %v665, %v657
    %v890 = vpack.c.b16 %v674, %v666
    %v891 = vpack.c.b16 %v675, %v667
    %v892 = vpack.c.b16 %v676, %v668
    %v893 = vpack.c.b16 %v677, %v669
    %v894 = vpack.c.b16 %v678, %v670
    %v895 = vpack.c.b16 %v679, %v671
    %v896 = vpack.c.b16 %v680, %v672
    %v897 = vpack.c.b16 %v681, %v673
    %v898 = vpack.c.b16 %v690, %v682
    %v899 = vpack.c.b16 %v691, %v683
    %v900 = vpack.c.b16 %v692, %v684
    %v901 = vpack.c.b16 %v693, %v685
    %v902 = vpack.c.b16 %v694, %v686
    %v903 = vpack.c.b16 %v695, %v687
    %v904 = vpack.c.b16 %v696, %v688
    %v905 = vpack.c.b16 %v697, %v689
    %v906 = vpack.c.b16 %v706, %v698
    %v907 = vpack.c.b16 %v707, %v699
    %v908 = vpack.c.b16 %v708, %v700
    %v909 = vpack.c.b16 %v709, %v701
    %v910 = vpack.c.b16 %v710, %v702
    %v911 = vpack.c.b16 %v711, %v703
    %v912 = vpack.c.b16 %v712, %v704
    %v913 = vpack.c.b16 %v713, %v705
    %v914 = vpack.c.b16 %v722, %v714
    %v915 = vpack.c.b16 %v723, %v715
    %v916 = vpack.c.b16 %v724, %v716
    %v917 = vpack.c.b16 %v725, %v717
    %v918 = vpack.c.b16 %v726, %v718
    %v919 = vpack.c.b16 %v727, %v719
    %v920 = vpack.c.b16 %v728, %v720
    %v921 = vpack.c.b16 %v729, %v721
    %v922 = vpack.c.b16 %v738, %v730
    %v923 = vpack.c.b16 %v739, %v731
    %v924 = vpack.c.b16 %v740, %v732
    %v925 = vpack.c.b16 %v741, %v733
    %v926 = vpack.c.b16 %v742, %v734
    %v927 = vpack.c.b16 %v743, %v735
    %v928 = vpack.c.b16 %v744, %v736
    %v929 = vpack.c.b16 %v745, %v737
    %v930 = vpack.c.b16 %v754, %v746
    %v931 = vpack.c.b16 %v755, %v747
    %v932 = vpack.c.b16 %v756, %v748
    %v933 = vpack.c.b16 %v757, %v749
    %v934 = vpack.c.b16 %v758, %v750
    %v935 = vpack.c.b16 %v759, %v751
    %v936 = vpack.c.b16 %v760, %v752
    %v937 = vpack.c.b16 %v761, %v753
    %v938 = vpack.c.b16 %v770, %v762
    %v939 = vpack.c.b16 %v771, %v763
    %v940 = vpack.c.b16 %v772, %v764
    %v941 = vpack.c.b16 %v773, %v765
    %v942 = vpack.c.b16 %v774, %v766
    %v943 = vpack.c.b16 %v775, %v767
    %v944 = vpack.c.b16 %v776, %v768
    %v945 = vpack.c.b16 %v777, %v769
    %v946 = vpack.c.b16 %v786, %v778
    %v947 = vpack.c.b16 %v787, %v779
    %v948 = vpack.c.b16 %v788, %v780
    %v949 = vpack.c.b16 %v789, %v781
    %v950 = vpack.c.b16 %v790, %v782
    %v951 = vpack.c.b16 %v791, %v783
    %v952 = vpack.c.b16 %v792, %v784
    %v953 = vpack.c.b16 %v793, %v785
    %v954 = vpack.c.b16 %v802, %v794
    %v955 = vpack.c.b16 %v803, %v795
    %v956 = vpack.c.b16 %v804, %v796
    %v957 = vpack.c.b16 %v805, %v797
    %v958 = vpack.c.b16 %v806, %v798
    %v959 = vpack.c.b16 %v807, %v799
    %v960 = vpack.c.b16 %v808, %v800
    %v961 = vpack.c.b16 %v809, %v801
    %v962 = vpack.c.b16 %v818, %v810
    %v963 = vpack.c.b16 %v819, %v811
    %v964 = vpack.c.b16 %v820, %v812
    %v965 = vpack.c.b16 %v821, %v813
    %v966 = vpack.c.b16 %v822, %v814
    %v967 = vpack.c.b16 %v823, %v815
    %v968 = vpack.c.b16 %v824, %v816
    %v969 = vpack.c.b16 %v825, %v817
    %v970 = vpack.c.b16 %v834, %v826
    %v971 = vpack.c.b16 %v835, %v827
    %v972 = vpack.c.b16 %v836, %v828
    %v973 = vpack.c.b16 %v837, %v829
    %v974 = vpack.c.b16 %v838, %v830
    %v975 = vpack.c.b16 %v839, %v831
    %v976 = vpack.c.b16 %v840, %v832
    %v977 = vpack.c.b16 %v841, %v833
    %v978 = vpack.c.b16 %v850, %v842
    %v979 = vpack.c.b16 %v851, %v843
    %v980 = vpack.c.b16 %v852, %v844
    %v981 = vpack.c.b16 %v853, %v845
    %v982 = vpack.c.b16 %v854, %v846
    %v983 = vpack.c.b16 %v855, %v847
    %v984 = vpack.c.b16 %v856, %v848
    %v985 = vpack.c.b16 %v857, %v849
    %1114 = vmatprep.subr.bf16.mxu0 %v859
    %1115 = vmatpush1.bf16.msra.mxu0 %v858
    %1116 = vmatprep.subr.bf16.mxu0 %v867
    %1117 = vmatpush1.bf16.msra.mxu0 %v866
    %1118 = vmatprep.subr.bf16.mxu0 %v875
    %1119 = vmatpush1.bf16.msra.mxu0 %v874
    %1120 = vmatprep.subr.bf16.mxu0 %v883
    %1121 = vmatpush1.bf16.msra.mxu0 %v882
    %1122 = vmatprep.subr.bf16.mxu0 %v891
    %1123 = vmatpush1.bf16.msra.mxu0 %v890
    %1124 = vmatprep.subr.bf16.mxu0 %v899
    %1125 = vmatpush1.bf16.msra.mxu0 %v898
    %1126 = vmatprep.subr.bf16.mxu0 %v907
    %1127 = vmatpush1.bf16.msra.mxu0 %v906
    %1128 = vmatprep.subr.bf16.mxu0 %v915
    %1129 = vmatpush1.bf16.msra.mxu0 %v914
    %1130 = vmatprep.subr.bf16.mxu0 %v923
    %1131 = vmatpush1.bf16.msra.mxu0 %v922
    %1132 = vmatprep.subr.bf16.mxu0 %v931
    %1133 = vmatpush1.bf16.msra.mxu0 %v930
    %1134 = vmatprep.subr.bf16.mxu0 %v939
    %1135 = vmatpush1.bf16.msra.mxu0 %v938
    %1136 = vmatprep.subr.bf16.mxu0 %v947
    %1137 = vmatpush1.bf16.msra.mxu0 %v946
    %1138 = vmatprep.subr.bf16.mxu0 %v955
    %1139 = vmatpush1.bf16.msra.mxu0 %v954
    %1140 = vmatprep.subr.bf16.mxu0 %v963
    %1141 = vmatpush1.bf16.msra.mxu0 %v962
    %1142 = vmatprep.subr.bf16.mxu0 %v971
    %1143 = vmatpush1.bf16.msra.mxu0 %v970
    %1144 = vmatprep.subr.bf16.mxu0 %v979
    %1145 = vmatpush1.bf16.msra.mxu0 %v978
    %1146 = vmatprep.mubr.bf16.mxu0 %v303
    %1147 = vmatmul.mubr.bf16.gmra.mrb[0].mxu0 %v302
    %v1148 = vpop.f32.mrb[0].mxu0
    %v1149 = vadd.f32 %v437, %v1148
    %v1150 = vpop.f32.mrb[0].mxu0
    %v1151 = vadd.f32 %v441, %v1150
    %v1152 = vpop.f32.mrb[0].mxu0
    %v1153 = vpop.f32.mrb[0].mxu0
    %1154 = vdwg.mxu0
    %1155 = vmatprep.subr.bf16.mxu0 %v861
    %1156 = vmatpush1.bf16.msra.mxu0 %v860
    %1157 = vmatprep.subr.bf16.mxu0 %v869
    %1158 = vmatpush1.bf16.msra.mxu0 %v868
    %1159 = vmatprep.subr.bf16.mxu0 %v877
    %1160 = vmatpush1.bf16.msra.mxu0 %v876
    %1161 = vmatprep.subr.bf16.mxu0 %v885
    %1162 = vmatpush1.bf16.msra.mxu0 %v884
    %1163 = vmatprep.subr.bf16.mxu0 %v893
    %1164 = vmatpush1.bf16.msra.mxu0 %v892
    %1165 = vmatprep.subr.bf16.mxu0 %v901
    %1166 = vmatpush1.bf16.msra.mxu0 %v900
    %1167 = vmatprep.subr.bf16.mxu0 %v909
    %1168 = vmatpush1.bf16.msra.mxu0 %v908
    %1169 = vmatprep.subr.bf16.mxu0 %v917
    %1170 = vmatpush1.bf16.msra.mxu0 %v916
    %1171 = vmatprep.subr.bf16.mxu0 %v925
    %1172 = vmatpush1.bf16.msra.mxu0 %v924
    %1173 = vmatprep.subr.bf16.mxu0 %v933
    %1174 = vmatpush1.bf16.msra.mxu0 %v932
    %1175 = vmatprep.subr.bf16.mxu0 %v941
    %1176 = vmatpush1.bf16.msra.mxu0 %v940
    %1177 = vmatprep.subr.bf16.mxu0 %v949
    %1178 = vmatpush1.bf16.msra.mxu0 %v948
    %1179 = vmatprep.subr.bf16.mxu0 %v957
    %1180 = vmatpush1.bf16.msra.mxu0 %v956
    %1181 = vmatprep.subr.bf16.mxu0 %v965
    %1182 = vmatpush1.bf16.msra.mxu0 %v964
    %1183 = vmatprep.subr.bf16.mxu0 %v973
    %1184 = vmatpush1.bf16.msra.mxu0 %v972
    %1185 = vmatprep.subr.bf16.mxu0 %v981
    %1186 = vmatpush1.bf16.msra.mxu0 %v980
    %1187 = vmatprep.mubr.bf16.mxu0 %v303
    %1188 = vmatmul.mubr.bf16.gmra.mrb[0].mxu0 %v302
    %v1189 = vpop.f32.mrb[0].mxu0
    %v1190 = vadd.f32 %v445, %v1189
    %v1191 = vpop.f32.mrb[0].mxu0
    %v1192 = vadd.f32 %v449, %v1191
    %v1193 = vpop.f32.mrb[0].mxu0
    %v1194 = vpop.f32.mrb[0].mxu0
    %1195 = vdwg.mxu0
    %1196 = vmatprep.subr.bf16.mxu0 %v863
    %1197 = vmatpush1.bf16.msra.mxu0 %v862
    %1198 = vmatprep.subr.bf16.mxu0 %v871
    %1199 = vmatpush1.bf16.msra.mxu0 %v870
    %1200 = vmatprep.subr.bf16.mxu0 %v879
    %1201 = vmatpush1.bf16.msra.mxu0 %v878
    %1202 = vmatprep.subr.bf16.mxu0 %v887
    %1203 = vmatpush1.bf16.msra.mxu0 %v886
    %1204 = vmatprep.subr.bf16.mxu0 %v895
    %1205 = vmatpush1.bf16.msra.mxu0 %v894
    %1206 = vmatprep.subr.bf16.mxu0 %v903
    %1207 = vmatpush1.bf16.msra.mxu0 %v902
    %1208 = vmatprep.subr.bf16.mxu0 %v911
    %1209 = vmatpush1.bf16.msra.mxu0 %v910
    %1210 = vmatprep.subr.bf16.mxu0 %v919
    %1211 = vmatpush1.bf16.msra.mxu0 %v918
    %1212 = vmatprep.subr.bf16.mxu0 %v927
    %1213 = vmatpush1.bf16.msra.mxu0 %v926
    %1214 = vmatprep.subr.bf16.mxu0 %v935
    %1215 = vmatpush1.bf16.msra.mxu0 %v934
    %1216 = vmatprep.subr.bf16.mxu0 %v943
    %1217 = vmatpush1.bf16.msra.mxu0 %v942
    %1218 = vmatprep.subr.bf16.mxu0 %v951
    %1219 = vmatpush1.bf16.msra.mxu0 %v950
    %1220 = vmatprep.subr.bf16.mxu0 %v959
    %1221 = vmatpush1.bf16.msra.mxu0 %v958
    %1222 = vmatprep.subr.bf16.mxu0 %v967
    %1223 = vmatpush1.bf16.msra.mxu0 %v966
    %1224 = vmatprep.subr.bf16.mxu0 %v975
    %1225 = vmatpush1.bf16.msra.mxu0 %v974
    %1226 = vmatprep.subr.bf16.mxu0 %v983
    %1227 = vmatpush1.bf16.msra.mxu0 %v982
    %1228 = vmatprep.mubr.bf16.mxu0 %v303
    %1229 = vmatmul.mubr.bf16.gmra.mrb[0].mxu0 %v302
    %v1230 = vpop.f32.mrb[0].mxu0
    %v1231 = vadd.f32 %v453, %v1230
    %v1232 = vpop.f32.mrb[0].mxu0
    %v1233 = vadd.f32 %v457, %v1232
    %v1234 = vpop.f32.mrb[0].mxu0
    %v1235 = vpop.f32.mrb[0].mxu0
    %1236 = vdwg.mxu0
    %1237 = vmatprep.subr.bf16.mxu0 %v865
    %1238 = vmatpush1.bf16.msra.mxu0 %v864
    %1239 = vmatprep.subr.bf16.mxu0 %v873
    %1240 = vmatpush1.bf16.msra.mxu0 %v872
    %1241 = vmatprep.subr.bf16.mxu0 %v881
    %1242 = vmatpush1.bf16.msra.mxu0 %v880
    %1243 = vmatprep.subr.bf16.mxu0 %v889
    %1244 = vmatpush1.bf16.msra.mxu0 %v888
    %1245 = vmatprep.subr.bf16.mxu0 %v897
    %1246 = vmatpush1.bf16.msra.mxu0 %v896
    %1247 = vmatprep.subr.bf16.mxu0 %v905
    %1248 = vmatpush1.bf16.msra.mxu0 %v904
    %1249 = vmatprep.subr.bf16.mxu0 %v913
    %1250 = vmatpush1.bf16.msra.mxu0 %v912
    %1251 = vmatprep.subr.bf16.mxu0 %v921
    %1252 = vmatpush1.bf16.msra.mxu0 %v920
    %1253 = vmatprep.subr.bf16.mxu0 %v929
    %1254 = vmatpush1.bf16.msra.mxu0 %v928
    %1255 = vmatprep.subr.bf16.mxu0 %v937
    %1256 = vmatpush1.bf16.msra.mxu0 %v936
    %1257 = vmatprep.subr.bf16.mxu0 %v945
    %1258 = vmatpush1.bf16.msra.mxu0 %v944
    %1259 = vmatprep.subr.bf16.mxu0 %v953
    %1260 = vmatpush1.bf16.msra.mxu0 %v952
    %1261 = vmatprep.subr.bf16.mxu0 %v961
    %1262 = vmatpush1.bf16.msra.mxu0 %v960
    %1263 = vmatprep.subr.bf16.mxu0 %v969
    %1264 = vmatpush1.bf16.msra.mxu0 %v968
    %1265 = vmatprep.subr.bf16.mxu0 %v977
    %1266 = vmatpush1.bf16.msra.mxu0 %v976
    %1267 = vmatprep.subr.bf16.mxu0 %v985
    %1268 = vmatpush1.bf16.msra.mxu0 %v984
    %1269 = vmatprep.mubr.bf16.mxu0 %v303
    %1270 = vmatmul.mubr.bf16.gmra.mrb[0].mxu0 %v302
    %v1271 = vpop.f32.mrb[0].mxu0
    %v1272 = vadd.f32 %v461, %v1271
    %v1273 = vpop.f32.mrb[0].mxu0
    %v1274 = vadd.f32 %v465, %v1273
    %v1275 = vpop.f32.mrb[0].mxu0
    %v1276 = vpop.f32.mrb[0].mxu0
    %1277 = vdwg.mxu0
    %vm1278 = vcmp.ge.f32.partialorder %v1149, 0.0
    %vm1279 = vcmp.ge.f32.partialorder %v1151, 0.0
    %vm1280 = vcmp.ge.f32.partialorder %v1190, 0.0
    %vm1281 = vcmp.ge.f32.partialorder %v1192, 0.0
    %vm1282 = vcmp.ge.f32.partialorder %v1231, 0.0
    %vm1283 = vcmp.ge.f32.partialorder %v1233, 0.0
    %vm1284 = vcmp.ge.f32.partialorder %v1272, 0.0
    %vm1285 = vcmp.ge.f32.partialorder %v1274, 0.0
    %s1286 = sld [smem:[#allocation3]]
    %v1287 = vstv %s1286
    %v1288 = vmul.f32 %v1287, %v1149
    %v1289 = vmul.f32 %v1287, %v1151
    %v1290 = vmul.f32 %v1287, %v1190
    %v1291 = vmul.f32 %v1287, %v1192
    %v1292 = vmul.f32 %v1287, %v1231
    %v1293 = vmul.f32 %v1287, %v1233
    %v1294 = vmul.f32 %v1287, %v1272
    %v1295 = vmul.f32 %v1287, %v1274
    %v1296 = vsel %vm1278, %v1149, %v1288
    %v1297 = vsel %vm1279, %v1151, %v1289
    %v1298 = vsel %vm1280, %v1190, %v1290
    %v1299 = vsel %vm1281, %v1192, %v1291
    %v1300 = vsel %vm1282, %v1231, %v1292
    %v1301 = vsel %vm1283, %v1233, %v1293
    %v1302 = vsel %vm1284, %v1272, %v1294
    %v1303 = vsel %vm1285, %v1274, %v1295
    %v1304 = vpack.c.bf16 %v1296, %v1296
    %v1305 = vpack.c.bf16 %v1297, %v1297
    %v1306 = vpack.c.bf16 %v1298, %v1298
    %v1307 = vpack.c.bf16 %v1299, %v1299
    %v1308 = vpack.c.bf16 %v1300, %v1300
    %v1309 = vpack.c.bf16 %v1301, %v1301
    %v1310 = vpack.c.bf16 %v1302, %v1302
    %v1311 = vpack.c.bf16 %v1303, %v1303
    %v1312 = vld [vmem:[#allocation10] sm:$0xff]
    %v1313 = vld [vmem:[#allocation10 + $0x8] sm:$0xff]
    %v1314 = vld [vmem:[#allocation10 + $0x10] sm:$0xff]
    %v1315 = vld [vmem:[#allocation10 + $0x18] sm:$0xff]
    %v1316 = vld [vmem:[#allocation10 + $0x20] sm:$0xff]
    %v1317 = vld [vmem:[#allocation10 + $0x28] sm:$0xff]
    %v1318 = vld [vmem:[#allocation10 + $0x30] sm:$0xff]
    %v1319 = vld [vmem:[#allocation10 + $0x38] sm:$0xff]
    %v1320 = vld [vmem:[#allocation10 + $0x40] sm:$0xff]
    %v1321 = vld [vmem:[#allocation10 + $0x48] sm:$0xff]
    %v1322 = vld [vmem:[#allocation10 + $0x50] sm:$0xff]
    %v1323 = vld [vmem:[#allocation10 + $0x58] sm:$0xff]
    %v1324 = vld [vmem:[#allocation10 + $0x60] sm:$0xff]
    %v1325 = vld [vmem:[#allocation10 + $0x68] sm:$0xff]
    %v1326 = vld [vmem:[#allocation10 + $0x70] sm:$0xff]
    %v1327 = vld [vmem:[#allocation10 + $0x78] sm:$0xff]
    %v1328 = vld [vmem:[#allocation10 + $0x80] sm:$0xff]
    %v1329 = vld [vmem:[#allocation10 + $0x88] sm:$0xff]
    %v1330 = vld [vmem:[#allocation10 + $0x90] sm:$0xff]
    %v1331 = vld [vmem:[#allocation10 + $0x98] sm:$0xff]
    %v1332 = vld [vmem:[#allocation10 + $0xa0] sm:$0xff]
    %v1333 = vld [vmem:[#allocation10 + $0xa8] sm:$0xff]
    %v1334 = vld [vmem:[#allocation10 + $0xb0] sm:$0xff]
    %v1335 = vld [vmem:[#allocation10 + $0xb8] sm:$0xff]
    %v1336 = vld [vmem:[#allocation10 + $0xc0] sm:$0xff]
    %v1337 = vld [vmem:[#allocation10 + $0xc8] sm:$0xff]
    %v1338 = vld [vmem:[#allocation10 + $0xd0] sm:$0xff]
    %v1339 = vld [vmem:[#allocation10 + $0xd8] sm:$0xff]
    %v1340 = vld [vmem:[#allocation10 + $0xe0] sm:$0xff]
    %v1341 = vld [vmem:[#allocation10 + $0xe8] sm:$0xff]
    %v1342 = vld [vmem:[#allocation10 + $0xf0] sm:$0xff]
    %v1343 = vld [vmem:[#allocation10 + $0xf8] sm:$0xff]
    %v1344 = vld [vmem:[#allocation10 + $0x100] sm:$0xff]
    %v1345 = vld [vmem:[#allocation10 + $0x108] sm:$0xff]
    %v1346 = vld [vmem:[#allocation10 + $0x110] sm:$0xff]
    %v1347 = vld [vmem:[#allocation10 + $0x118] sm:$0xff]
    %v1348 = vld [vmem:[#allocation10 + $0x120] sm:$0xff]
    %v1349 = vld [vmem:[#allocation10 + $0x128] sm:$0xff]
    %v1350 = vld [vmem:[#allocation10 + $0x130] sm:$0xff]
    %v1351 = vld [vmem:[#allocation10 + $0x138] sm:$0xff]
    %v1352 = vld [vmem:[#allocation10 + $0x140] sm:$0xff]
    %v1353 = vld [vmem:[#allocation10 + $0x148] sm:$0xff]
    %v1354 = vld [vmem:[#allocation10 + $0x150] sm:$0xff]
    %v1355 = vld [vmem:[#allocation10 + $0x158] sm:$0xff]
    %v1356 = vld [vmem:[#allocation10 + $0x160] sm:$0xff]
    %v1357 = vld [vmem:[#allocation10 + $0x168] sm:$0xff]
    %v1358 = vld [vmem:[#allocation10 + $0x170] sm:$0xff]
    %v1359 = vld [vmem:[#allocation10 + $0x178] sm:$0xff]
    %v1360 = vld [vmem:[#allocation10 + $0x180] sm:$0xff]
    %v1361 = vld [vmem:[#allocation10 + $0x188] sm:$0xff]
    %v1362 = vld [vmem:[#allocation10 + $0x190] sm:$0xff]
    %v1363 = vld [vmem:[#allocation10 + $0x198] sm:$0xff]
    %v1364 = vld [vmem:[#allocation10 + $0x1a0] sm:$0xff]
    %v1365 = vld [vmem:[#allocation10 + $0x1a8] sm:$0xff]
    %v1366 = vld [vmem:[#allocation10 + $0x1b0] sm:$0xff]
    %v1367 = vld [vmem:[#allocation10 + $0x1b8] sm:$0xff]
    %v1368 = vld [vmem:[#allocation10 + $0x1c0] sm:$0xff]
    %v1369 = vld [vmem:[#allocation10 + $0x1c8] sm:$0xff]
    %v1370 = vld [vmem:[#allocation10 + $0x1d0] sm:$0xff]
    %v1371 = vld [vmem:[#allocation10 + $0x1d8] sm:$0xff]
    %v1372 = vld [vmem:[#allocation10 + $0x1e0] sm:$0xff]
    %v1373 = vld [vmem:[#allocation10 + $0x1e8] sm:$0xff]
    %v1374 = vld [vmem:[#allocation10 + $0x1f0] sm:$0xff]
    %v1375 = vld [vmem:[#allocation10 + $0x1f8] sm:$0xff]
    %v1376 = vld [vmem:[#allocation10 + $0x200] sm:$0xff]
    %v1377 = vld [vmem:[#allocation10 + $0x208] sm:$0xff]
    %v1378 = vld [vmem:[#allocation10 + $0x210] sm:$0xff]
    %v1379 = vld [vmem:[#allocation10 + $0x218] sm:$0xff]
    %v1380 = vld [vmem:[#allocation10 + $0x220] sm:$0xff]
    %v1381 = vld [vmem:[#allocation10 + $0x228] sm:$0xff]
    %v1382 = vld [vmem:[#allocation10 + $0x230] sm:$0xff]
    %v1383 = vld [vmem:[#allocation10 + $0x238] sm:$0xff]
    %v1384 = vld [vmem:[#allocation10 + $0x240] sm:$0xff]
    %v1385 = vld [vmem:[#allocation10 + $0x248] sm:$0xff]
    %v1386 = vld [vmem:[#allocation10 + $0x250] sm:$0xff]
    %v1387 = vld [vmem:[#allocation10 + $0x258] sm:$0xff]
    %v1388 = vld [vmem:[#allocation10 + $0x260] sm:$0xff]
    %v1389 = vld [vmem:[#allocation10 + $0x268] sm:$0xff]
    %v1390 = vld [vmem:[#allocation10 + $0x270] sm:$0xff]
    %v1391 = vld [vmem:[#allocation10 + $0x278] sm:$0xff]
    %v1392 = vld [vmem:[#allocation10 + $0x280] sm:$0xff]
    %v1393 = vld [vmem:[#allocation10 + $0x288] sm:$0xff]
    %v1394 = vld [vmem:[#allocation10 + $0x290] sm:$0xff]
    %v1395 = vld [vmem:[#allocation10 + $0x298] sm:$0xff]
    %v1396 = vld [vmem:[#allocation10 + $0x2a0] sm:$0xff]
    %v1397 = vld [vmem:[#allocation10 + $0x2a8] sm:$0xff]
    %v1398 = vld [vmem:[#allocation10 + $0x2b0] sm:$0xff]
    %v1399 = vld [vmem:[#allocation10 + $0x2b8] sm:$0xff]
    %v1400 = vld [vmem:[#allocation10 + $0x2c0] sm:$0xff]
    %v1401 = vld [vmem:[#allocation10 + $0x2c8] sm:$0xff]
    %v1402 = vld [vmem:[#allocation10 + $0x2d0] sm:$0xff]
    %v1403 = vld [vmem:[#allocation10 + $0x2d8] sm:$0xff]
    %v1404 = vld [vmem:[#allocation10 + $0x2e0] sm:$0xff]
    %v1405 = vld [vmem:[#allocation10 + $0x2e8] sm:$0xff]
    %v1406 = vld [vmem:[#allocation10 + $0x2f0] sm:$0xff]
    %v1407 = vld [vmem:[#allocation10 + $0x2f8] sm:$0xff]
    %v1408 = vld [vmem:[#allocation10 + $0x300] sm:$0xff]
    %v1409 = vld [vmem:[#allocation10 + $0x308] sm:$0xff]
    %v1410 = vld [vmem:[#allocation10 + $0x310] sm:$0xff]
    %v1411 = vld [vmem:[#allocation10 + $0x318] sm:$0xff]
    %v1412 = vld [vmem:[#allocation10 + $0x320] sm:$0xff]
    %v1413 = vld [vmem:[#allocation10 + $0x328] sm:$0xff]
    %v1414 = vld [vmem:[#allocation10 + $0x330] sm:$0xff]
    %v1415 = vld [vmem:[#allocation10 + $0x338] sm:$0xff]
    %v1416 = vld [vmem:[#allocation10 + $0x340] sm:$0xff]
    %v1417 = vld [vmem:[#allocation10 + $0x348] sm:$0xff]
    %v1418 = vld [vmem:[#allocation10 + $0x350] sm:$0xff]
    %v1419 = vld [vmem:[#allocation10 + $0x358] sm:$0xff]
    %v1420 = vld [vmem:[#allocation10 + $0x360] sm:$0xff]
    %v1421 = vld [vmem:[#allocation10 + $0x368] sm:$0xff]
    %v1422 = vld [vmem:[#allocation10 + $0x370] sm:$0xff]
    %v1423 = vld [vmem:[#allocation10 + $0x378] sm:$0xff]
    %v1424 = vld [vmem:[#allocation10 + $0x380] sm:$0xff]
    %v1425 = vld [vmem:[#allocation10 + $0x388] sm:$0xff]
    %v1426 = vld [vmem:[#allocation10 + $0x390] sm:$0xff]
    %v1427 = vld [vmem:[#allocation10 + $0x398] sm:$0xff]
    %v1428 = vld [vmem:[#allocation10 + $0x3a0] sm:$0xff]
    %v1429 = vld [vmem:[#allocation10 + $0x3a8] sm:$0xff]
    %v1430 = vld [vmem:[#allocation10 + $0x3b0] sm:$0xff]
    %v1431 = vld [vmem:[#allocation10 + $0x3b8] sm:$0xff]
    %v1432 = vld [vmem:[#allocation10 + $0x3c0] sm:$0xff]
    %v1433 = vld [vmem:[#allocation10 + $0x3c8] sm:$0xff]
    %v1434 = vld [vmem:[#allocation10 + $0x3d0] sm:$0xff]
    %v1435 = vld [vmem:[#allocation10 + $0x3d8] sm:$0xff]
    %v1436 = vld [vmem:[#allocation10 + $0x3e0] sm:$0xff]
    %v1437 = vld [vmem:[#allocation10 + $0x3e8] sm:$0xff]
    %v1438 = vld [vmem:[#allocation10 + $0x3f0] sm:$0xff]
    %v1439 = vld [vmem:[#allocation10 + $0x3f8] sm:$0xff]
    %v1440 = vld [vmem:[#allocation10 + $0x400] sm:$0xff]
    %v1441 = vld [vmem:[#allocation10 + $0x408] sm:$0xff]
    %v1442 = vld [vmem:[#allocation10 + $0x410] sm:$0xff]
    %v1443 = vld [vmem:[#allocation10 + $0x418] sm:$0xff]
    %v1444 = vld [vmem:[#allocation10 + $0x420] sm:$0xff]
    %v1445 = vld [vmem:[#allocation10 + $0x428] sm:$0xff]
    %v1446 = vld [vmem:[#allocation10 + $0x430] sm:$0xff]
    %v1447 = vld [vmem:[#allocation10 + $0x438] sm:$0xff]
    %v1448 = vld [vmem:[#allocation10 + $0x440] sm:$0xff]
    %v1449 = vld [vmem:[#allocation10 + $0x448] sm:$0xff]
    %v1450 = vld [vmem:[#allocation10 + $0x450] sm:$0xff]
    %v1451 = vld [vmem:[#allocation10 + $0x458] sm:$0xff]
    %v1452 = vld [vmem:[#allocation10 + $0x460] sm:$0xff]
    %v1453 = vld [vmem:[#allocation10 + $0x468] sm:$0xff]
    %v1454 = vld [vmem:[#allocation10 + $0x470] sm:$0xff]
    %v1455 = vld [vmem:[#allocation10 + $0x478] sm:$0xff]
    %v1456 = vld [vmem:[#allocation10 + $0x480] sm:$0xff]
    %v1457 = vld [vmem:[#allocation10 + $0x488] sm:$0xff]
    %v1458 = vld [vmem:[#allocation10 + $0x490] sm:$0xff]
    %v1459 = vld [vmem:[#allocation10 + $0x498] sm:$0xff]
    %v1460 = vld [vmem:[#allocation10 + $0x4a0] sm:$0xff]
    %v1461 = vld [vmem:[#allocation10 + $0x4a8] sm:$0xff]
    %v1462 = vld [vmem:[#allocation10 + $0x4b0] sm:$0xff]
    %v1463 = vld [vmem:[#allocation10 + $0x4b8] sm:$0xff]
    %v1464 = vld [vmem:[#allocation10 + $0x4c0] sm:$0xff]
    %v1465 = vld [vmem:[#allocation10 + $0x4c8] sm:$0xff]
    %v1466 = vld [vmem:[#allocation10 + $0x4d0] sm:$0xff]
    %v1467 = vld [vmem:[#allocation10 + $0x4d8] sm:$0xff]
    %v1468 = vld [vmem:[#allocation10 + $0x4e0] sm:$0xff]
    %v1469 = vld [vmem:[#allocation10 + $0x4e8] sm:$0xff]
    %v1470 = vld [vmem:[#allocation10 + $0x4f0] sm:$0xff]
    %v1471 = vld [vmem:[#allocation10 + $0x4f8] sm:$0xff]
    %v1472 = vld [vmem:[#allocation10 + $0x500] sm:$0xff]
    %v1473 = vld [vmem:[#allocation10 + $0x508] sm:$0xff]
    %v1474 = vld [vmem:[#allocation10 + $0x510] sm:$0xff]
    %v1475 = vld [vmem:[#allocation10 + $0x518] sm:$0xff]
    %v1476 = vld [vmem:[#allocation10 + $0x520] sm:$0xff]
    %v1477 = vld [vmem:[#allocation10 + $0x528] sm:$0xff]
    %v1478 = vld [vmem:[#allocation10 + $0x530] sm:$0xff]
    %v1479 = vld [vmem:[#allocation10 + $0x538] sm:$0xff]
    %v1480 = vld [vmem:[#allocation10 + $0x540] sm:$0xff]
    %v1481 = vld [vmem:[#allocation10 + $0x548] sm:$0xff]
    %v1482 = vld [vmem:[#allocation10 + $0x550] sm:$0xff]
    %v1483 = vld [vmem:[#allocation10 + $0x558] sm:$0xff]
    %v1484 = vld [vmem:[#allocation10 + $0x560] sm:$0xff]
    %v1485 = vld [vmem:[#allocation10 + $0x568] sm:$0xff]
    %v1486 = vld [vmem:[#allocation10 + $0x570] sm:$0xff]
    %v1487 = vld [vmem:[#allocation10 + $0x578] sm:$0xff]
    %v1488 = vld [vmem:[#allocation10 + $0x580] sm:$0xff]
    %v1489 = vld [vmem:[#allocation10 + $0x588] sm:$0xff]
    %v1490 = vld [vmem:[#allocation10 + $0x590] sm:$0xff]
    %v1491 = vld [vmem:[#allocation10 + $0x598] sm:$0xff]
    %v1492 = vld [vmem:[#allocation10 + $0x5a0] sm:$0xff]
    %v1493 = vld [vmem:[#allocation10 + $0x5a8] sm:$0xff]
    %v1494 = vld [vmem:[#allocation10 + $0x5b0] sm:$0xff]
    %v1495 = vld [vmem:[#allocation10 + $0x5b8] sm:$0xff]
    %v1496 = vld [vmem:[#allocation10 + $0x5c0] sm:$0xff]
    %v1497 = vld [vmem:[#allocation10 + $0x5c8] sm:$0xff]
    %v1498 = vld [vmem:[#allocation10 + $0x5d0] sm:$0xff]
    %v1499 = vld [vmem:[#allocation10 + $0x5d8] sm:$0xff]
    %v1500 = vld [vmem:[#allocation10 + $0x5e0] sm:$0xff]
    %v1501 = vld [vmem:[#allocation10 + $0x5e8] sm:$0xff]
    %v1502 = vld [vmem:[#allocation10 + $0x5f0] sm:$0xff]
    %v1503 = vld [vmem:[#allocation10 + $0x5f8] sm:$0xff]
    %v1504 = vld [vmem:[#allocation10 + $0x600] sm:$0xff]
    %v1505 = vld [vmem:[#allocation10 + $0x608] sm:$0xff]
    %v1506 = vld [vmem:[#allocation10 + $0x610] sm:$0xff]
    %v1507 = vld [vmem:[#allocation10 + $0x618] sm:$0xff]
    %v1508 = vld [vmem:[#allocation10 + $0x620] sm:$0xff]
    %v1509 = vld [vmem:[#allocation10 + $0x628] sm:$0xff]
    %v1510 = vld [vmem:[#allocation10 + $0x630] sm:$0xff]
    %v1511 = vld [vmem:[#allocation10 + $0x638] sm:$0xff]
    %v1512 = vld [vmem:[#allocation10 + $0x640] sm:$0xff]
    %v1513 = vld [vmem:[#allocation10 + $0x648] sm:$0xff]
    %v1514 = vld [vmem:[#allocation10 + $0x650] sm:$0xff]
    %v1515 = vld [vmem:[#allocation10 + $0x658] sm:$0xff]
    %v1516 = vld [vmem:[#allocation10 + $0x660] sm:$0xff]
    %v1517 = vld [vmem:[#allocation10 + $0x668] sm:$0xff]
    %v1518 = vld [vmem:[#allocation10 + $0x670] sm:$0xff]
    %v1519 = vld [vmem:[#allocation10 + $0x678] sm:$0xff]
    %v1520 = vld [vmem:[#allocation10 + $0x680] sm:$0xff]
    %v1521 = vld [vmem:[#allocation10 + $0x688] sm:$0xff]
    %v1522 = vld [vmem:[#allocation10 + $0x690] sm:$0xff]
    %v1523 = vld [vmem:[#allocation10 + $0x698] sm:$0xff]
    %v1524 = vld [vmem:[#allocation10 + $0x6a0] sm:$0xff]
    %v1525 = vld [vmem:[#allocation10 + $0x6a8] sm:$0xff]
    %v1526 = vld [vmem:[#allocation10 + $0x6b0] sm:$0xff]
    %v1527 = vld [vmem:[#allocation10 + $0x6b8] sm:$0xff]
    %v1528 = vld [vmem:[#allocation10 + $0x6c0] sm:$0xff]
    %v1529 = vld [vmem:[#allocation10 + $0x6c8] sm:$0xff]
    %v1530 = vld [vmem:[#allocation10 + $0x6d0] sm:$0xff]
    %v1531 = vld [vmem:[#allocation10 + $0x6d8] sm:$0xff]
    %v1532 = vld [vmem:[#allocation10 + $0x6e0] sm:$0xff]
    %v1533 = vld [vmem:[#allocation10 + $0x6e8] sm:$0xff]
    %v1534 = vld [vmem:[#allocation10 + $0x6f0] sm:$0xff]
    %v1535 = vld [vmem:[#allocation10 + $0x6f8] sm:$0xff]
    %v1536 = vld [vmem:[#allocation10 + $0x700] sm:$0xff]
    %v1537 = vld [vmem:[#allocation10 + $0x708] sm:$0xff]
    %v1538 = vld [vmem:[#allocation10 + $0x710] sm:$0xff]
    %v1539 = vld [vmem:[#allocation10 + $0x718] sm:$0xff]
    %v1540 = vld [vmem:[#allocation10 + $0x720] sm:$0xff]
    %v1541 = vld [vmem:[#allocation10 + $0x728] sm:$0xff]
    %v1542 = vld [vmem:[#allocation10 + $0x730] sm:$0xff]
    %v1543 = vld [vmem:[#allocation10 + $0x738] sm:$0xff]
    %v1544 = vld [vmem:[#allocation10 + $0x740] sm:$0xff]
    %v1545 = vld [vmem:[#allocation10 + $0x748] sm:$0xff]
    %v1546 = vld [vmem:[#allocation10 + $0x750] sm:$0xff]
    %v1547 = vld [vmem:[#allocation10 + $0x758] sm:$0xff]
    %v1548 = vld [vmem:[#allocation10 + $0x760] sm:$0xff]
    %v1549 = vld [vmem:[#allocation10 + $0x768] sm:$0xff]
    %v1550 = vld [vmem:[#allocation10 + $0x770] sm:$0xff]
    %v1551 = vld [vmem:[#allocation10 + $0x778] sm:$0xff]
    %v1552 = vld [vmem:[#allocation10 + $0x780] sm:$0xff]
    %v1553 = vld [vmem:[#allocation10 + $0x788] sm:$0xff]
    %v1554 = vld [vmem:[#allocation10 + $0x790] sm:$0xff]
    %v1555 = vld [vmem:[#allocation10 + $0x798] sm:$0xff]
    %v1556 = vld [vmem:[#allocation10 + $0x7a0] sm:$0xff]
    %v1557 = vld [vmem:[#allocation10 + $0x7a8] sm:$0xff]
    %v1558 = vld [vmem:[#allocation10 + $0x7b0] sm:$0xff]
    %v1559 = vld [vmem:[#allocation10 + $0x7b8] sm:$0xff]
    %v1560 = vld [vmem:[#allocation10 + $0x7c0] sm:$0xff]
    %v1561 = vld [vmem:[#allocation10 + $0x7c8] sm:$0xff]
    %v1562 = vld [vmem:[#allocation10 + $0x7d0] sm:$0xff]
    %v1563 = vld [vmem:[#allocation10 + $0x7d8] sm:$0xff]
    %v1564 = vld [vmem:[#allocation10 + $0x7e0] sm:$0xff]
    %v1565 = vld [vmem:[#allocation10 + $0x7e8] sm:$0xff]
    %v1566 = vld [vmem:[#allocation10 + $0x7f0] sm:$0xff]
    %v1567 = vld [vmem:[#allocation10 + $0x7f8] sm:$0xff]
    %v1568 = vld [vmem:[%s8] sm:$0xf]
    %v1570 = vlaneseq
    %v1571 = vshrl.u32 %v1570, 7
    %v1572 = vsub.s32 0, %v1571
    %v1573 = vrot.slane %v1568, %v1572
    %v1574 = vlaneseq
    %v1575 = vshrl.u32 %v1574, 7
    %v1576 = vsub.s32 1, %v1575
    %v1577 = vrot.slane %v1568, %v1576
    %v1578 = vlaneseq
    %v1579 = vshrl.u32 %v1578, 7
    %v1580 = vsub.s32 2, %v1579
    %v1581 = vrot.slane %v1568, %v1580
    %v1582 = vlaneseq
    %v1583 = vshrl.u32 %v1582, 7
    %v1584 = vsub.s32 3, %v1583
    %v1585 = vrot.slane %v1568, %v1584
    %v1846 = vunpack.c.l.b16 %v1312
    %v1847 = vunpack.c.h.b16 %v1312
    %v1848 = vunpack.c.l.b16 %v1313
    %v1849 = vunpack.c.h.b16 %v1313
    %v1850 = vunpack.c.l.b16 %v1314
    %v1851 = vunpack.c.h.b16 %v1314
    %v1852 = vunpack.c.l.b16 %v1315
    %v1853 = vunpack.c.h.b16 %v1315
    %v1854 = vunpack.c.l.b16 %v1316
    %v1855 = vunpack.c.h.b16 %v1316
    %v1856 = vunpack.c.l.b16 %v1317
    %v1857 = vunpack.c.h.b16 %v1317
    %v1858 = vunpack.c.l.b16 %v1318
    %v1859 = vunpack.c.h.b16 %v1318
    %v1860 = vunpack.c.l.b16 %v1319
    %v1861 = vunpack.c.h.b16 %v1319
    %v1862 = vunpack.c.l.b16 %v1320
    %v1863 = vunpack.c.h.b16 %v1320
    %v1864 = vunpack.c.l.b16 %v1321
    %v1865 = vunpack.c.h.b16 %v1321
    %v1866 = vunpack.c.l.b16 %v1322
    %v1867 = vunpack.c.h.b16 %v1322
    %v1868 = vunpack.c.l.b16 %v1323
    %v1869 = vunpack.c.h.b16 %v1323
    %v1870 = vunpack.c.l.b16 %v1324
    %v1871 = vunpack.c.h.b16 %v1324
    %v1872 = vunpack.c.l.b16 %v1325
    %v1873 = vunpack.c.h.b16 %v1325
    %v1874 = vunpack.c.l.b16 %v1326
    %v1875 = vunpack.c.h.b16 %v1326
    %v1876 = vunpack.c.l.b16 %v1327
    %v1877 = vunpack.c.h.b16 %v1327
    %v1878 = vunpack.c.l.b16 %v1328
    %v1879 = vunpack.c.h.b16 %v1328
    %v1880 = vunpack.c.l.b16 %v1329
    %v1881 = vunpack.c.h.b16 %v1329
    %v1882 = vunpack.c.l.b16 %v1330
    %v1883 = vunpack.c.h.b16 %v1330
    %v1884 = vunpack.c.l.b16 %v1331
    %v1885 = vunpack.c.h.b16 %v1331
    %v1886 = vunpack.c.l.b16 %v1332
    %v1887 = vunpack.c.h.b16 %v1332
    %v1888 = vunpack.c.l.b16 %v1333
    %v1889 = vunpack.c.h.b16 %v1333
    %v1890 = vunpack.c.l.b16 %v1334
    %v1891 = vunpack.c.h.b16 %v1334
    %v1892 = vunpack.c.l.b16 %v1335
    %v1893 = vunpack.c.h.b16 %v1335
    %v1894 = vunpack.c.l.b16 %v1336
    %v1895 = vunpack.c.h.b16 %v1336
    %v1896 = vunpack.c.l.b16 %v1337
    %v1897 = vunpack.c.h.b16 %v1337
    %v1898 = vunpack.c.l.b16 %v1338
    %v1899 = vunpack.c.h.b16 %v1338
    %v1900 = vunpack.c.l.b16 %v1339
    %v1901 = vunpack.c.h.b16 %v1339
    %v1902 = vunpack.c.l.b16 %v1340
    %v1903 = vunpack.c.h.b16 %v1340
    %v1904 = vunpack.c.l.b16 %v1341
    %v1905 = vunpack.c.h.b16 %v1341
    %v1906 = vunpack.c.l.b16 %v1342
    %v1907 = vunpack.c.h.b16 %v1342
    %v1908 = vunpack.c.l.b16 %v1343
    %v1909 = vunpack.c.h.b16 %v1343
    %v1910 = vunpack.c.l.b16 %v1344
    %v1911 = vunpack.c.h.b16 %v1344
    %v1912 = vunpack.c.l.b16 %v1345
    %v1913 = vunpack.c.h.b16 %v1345
    %v1914 = vunpack.c.l.b16 %v1346
    %v1915 = vunpack.c.h.b16 %v1346
    %v1916 = vunpack.c.l.b16 %v1347
    %v1917 = vunpack.c.h.b16 %v1347
    %v1918 = vunpack.c.l.b16 %v1348
    %v1919 = vunpack.c.h.b16 %v1348
    %v1920 = vunpack.c.l.b16 %v1349
    %v1921 = vunpack.c.h.b16 %v1349
    %v1922 = vunpack.c.l.b16 %v1350
    %v1923 = vunpack.c.h.b16 %v1350
    %v1924 = vunpack.c.l.b16 %v1351
    %v1925 = vunpack.c.h.b16 %v1351
    %v1926 = vunpack.c.l.b16 %v1352
    %v1927 = vunpack.c.h.b16 %v1352
    %v1928 = vunpack.c.l.b16 %v1353
    %v1929 = vunpack.c.h.b16 %v1353
    %v1930 = vunpack.c.l.b16 %v1354
    %v1931 = vunpack.c.h.b16 %v1354
    %v1932 = vunpack.c.l.b16 %v1355
    %v1933 = vunpack.c.h.b16 %v1355
    %v1934 = vunpack.c.l.b16 %v1356
    %v1935 = vunpack.c.h.b16 %v1356
    %v1936 = vunpack.c.l.b16 %v1357
    %v1937 = vunpack.c.h.b16 %v1357
    %v1938 = vunpack.c.l.b16 %v1358
    %v1939 = vunpack.c.h.b16 %v1358
    %v1940 = vunpack.c.l.b16 %v1359
    %v1941 = vunpack.c.h.b16 %v1359
    %v1942 = vunpack.c.l.b16 %v1360
    %v1943 = vunpack.c.h.b16 %v1360
    %v1944 = vunpack.c.l.b16 %v1361
    %v1945 = vunpack.c.h.b16 %v1361
    %v1946 = vunpack.c.l.b16 %v1362
    %v1947 = vunpack.c.h.b16 %v1362
    %v1948 = vunpack.c.l.b16 %v1363
    %v1949 = vunpack.c.h.b16 %v1363
    %v1950 = vunpack.c.l.b16 %v1364
    %v1951 = vunpack.c.h.b16 %v1364
    %v1952 = vunpack.c.l.b16 %v1365
    %v1953 = vunpack.c.h.b16 %v1365
    %v1954 = vunpack.c.l.b16 %v1366
    %v1955 = vunpack.c.h.b16 %v1366
    %v1956 = vunpack.c.l.b16 %v1367
    %v1957 = vunpack.c.h.b16 %v1367
    %v1958 = vunpack.c.l.b16 %v1368
    %v1959 = vunpack.c.h.b16 %v1368
    %v1960 = vunpack.c.l.b16 %v1369
    %v1961 = vunpack.c.h.b16 %v1369
    %v1962 = vunpack.c.l.b16 %v1370
    %v1963 = vunpack.c.h.b16 %v1370
    %v1964 = vunpack.c.l.b16 %v1371
    %v1965 = vunpack.c.h.b16 %v1371
    %v1966 = vunpack.c.l.b16 %v1372
    %v1967 = vunpack.c.h.b16 %v1372
    %v1968 = vunpack.c.l.b16 %v1373
    %v1969 = vunpack.c.h.b16 %v1373
    %v1970 = vunpack.c.l.b16 %v1374
    %v1971 = vunpack.c.h.b16 %v1374
    %v1972 = vunpack.c.l.b16 %v1375
    %v1973 = vunpack.c.h.b16 %v1375
    %v1974 = vunpack.c.l.b16 %v1376
    %v1975 = vunpack.c.h.b16 %v1376
    %v1976 = vunpack.c.l.b16 %v1377
    %v1977 = vunpack.c.h.b16 %v1377
    %v1978 = vunpack.c.l.b16 %v1378
    %v1979 = vunpack.c.h.b16 %v1378
    %v1980 = vunpack.c.l.b16 %v1379
    %v1981 = vunpack.c.h.b16 %v1379
    %v1982 = vunpack.c.l.b16 %v1380
    %v1983 = vunpack.c.h.b16 %v1380
    %v1984 = vunpack.c.l.b16 %v1381
    %v1985 = vunpack.c.h.b16 %v1381
    %v1986 = vunpack.c.l.b16 %v1382
    %v1987 = vunpack.c.h.b16 %v1382
    %v1988 = vunpack.c.l.b16 %v1383
    %v1989 = vunpack.c.h.b16 %v1383
    %v1990 = vunpack.c.l.b16 %v1384
    %v1991 = vunpack.c.h.b16 %v1384
    %v1992 = vunpack.c.l.b16 %v1385
    %v1993 = vunpack.c.h.b16 %v1385
    %v1994 = vunpack.c.l.b16 %v1386
    %v1995 = vunpack.c.h.b16 %v1386
    %v1996 = vunpack.c.l.b16 %v1387
    %v1997 = vunpack.c.h.b16 %v1387
    %v1998 = vunpack.c.l.b16 %v1388
    %v1999 = vunpack.c.h.b16 %v1388
    %v2000 = vunpack.c.l.b16 %v1389
    %v2001 = vunpack.c.h.b16 %v1389
    %v2002 = vunpack.c.l.b16 %v1390
    %v2003 = vunpack.c.h.b16 %v1390
    %v2004 = vunpack.c.l.b16 %v1391
    %v2005 = vunpack.c.h.b16 %v1391
    %v2006 = vunpack.c.l.b16 %v1392
    %v2007 = vunpack.c.h.b16 %v1392
    %v2008 = vunpack.c.l.b16 %v1393
    %v2009 = vunpack.c.h.b16 %v1393
    %v2010 = vunpack.c.l.b16 %v1394
    %v2011 = vunpack.c.h.b16 %v1394
    %v2012 = vunpack.c.l.b16 %v1395
    %v2013 = vunpack.c.h.b16 %v1395
    %v2014 = vunpack.c.l.b16 %v1396
    %v2015 = vunpack.c.h.b16 %v1396
    %v2016 = vunpack.c.l.b16 %v1397
    %v2017 = vunpack.c.h.b16 %v1397
    %v2018 = vunpack.c.l.b16 %v1398
    %v2019 = vunpack.c.h.b16 %v1398
    %v2020 = vunpack.c.l.b16 %v1399
    %v2021 = vunpack.c.h.b16 %v1399
    %v2022 = vunpack.c.l.b16 %v1400
    %v2023 = vunpack.c.h.b16 %v1400
    %v2024 = vunpack.c.l.b16 %v1401
    %v2025 = vunpack.c.h.b16 %v1401
    %v2026 = vunpack.c.l.b16 %v1402
    %v2027 = vunpack.c.h.b16 %v1402
    %v2028 = vunpack.c.l.b16 %v1403
    %v2029 = vunpack.c.h.b16 %v1403
    %v2030 = vunpack.c.l.b16 %v1404
    %v2031 = vunpack.c.h.b16 %v1404
    %v2032 = vunpack.c.l.b16 %v1405
    %v2033 = vunpack.c.h.b16 %v1405
    %v2034 = vunpack.c.l.b16 %v1406
    %v2035 = vunpack.c.h.b16 %v1406
    %v2036 = vunpack.c.l.b16 %v1407
    %v2037 = vunpack.c.h.b16 %v1407
    %v2038 = vunpack.c.l.b16 %v1408
    %v2039 = vunpack.c.h.b16 %v1408
    %v2040 = vunpack.c.l.b16 %v1409
    %v2041 = vunpack.c.h.b16 %v1409
    %v2042 = vunpack.c.l.b16 %v1410
    %v2043 = vunpack.c.h.b16 %v1410
    %v2044 = vunpack.c.l.b16 %v1411
    %v2045 = vunpack.c.h.b16 %v1411
    %v2046 = vunpack.c.l.b16 %v1412
    %v2047 = vunpack.c.h.b16 %v1412
    %v2048 = vunpack.c.l.b16 %v1413
    %v2049 = vunpack.c.h.b16 %v1413
    %v2050 = vunpack.c.l.b16 %v1414
    %v2051 = vunpack.c.h.b16 %v1414
    %v2052 = vunpack.c.l.b16 %v1415
    %v2053 = vunpack.c.h.b16 %v1415
    %v2054 = vunpack.c.l.b16 %v1416
    %v2055 = vunpack.c.h.b16 %v1416
    %v2056 = vunpack.c.l.b16 %v1417
    %v2057 = vunpack.c.h.b16 %v1417
    %v2058 = vunpack.c.l.b16 %v1418
    %v2059 = vunpack.c.h.b16 %v1418
    %v2060 = vunpack.c.l.b16 %v1419
    %v2061 = vunpack.c.h.b16 %v1419
    %v2062 = vunpack.c.l.b16 %v1420
    %v2063 = vunpack.c.h.b16 %v1420
    %v2064 = vunpack.c.l.b16 %v1421
    %v2065 = vunpack.c.h.b16 %v1421
    %v2066 = vunpack.c.l.b16 %v1422
    %v2067 = vunpack.c.h.b16 %v1422
    %v2068 = vunpack.c.l.b16 %v1423
    %v2069 = vunpack.c.h.b16 %v1423
    %v2070 = vunpack.c.l.b16 %v1424
    %v2071 = vunpack.c.h.b16 %v1424
    %v2072 = vunpack.c.l.b16 %v1425
    %v2073 = vunpack.c.h.b16 %v1425
    %v2074 = vunpack.c.l.b16 %v1426
    %v2075 = vunpack.c.h.b16 %v1426
    %v2076 = vunpack.c.l.b16 %v1427
    %v2077 = vunpack.c.h.b16 %v1427
    %v2078 = vunpack.c.l.b16 %v1428
    %v2079 = vunpack.c.h.b16 %v1428
    %v2080 = vunpack.c.l.b16 %v1429
    %v2081 = vunpack.c.h.b16 %v1429
    %v2082 = vunpack.c.l.b16 %v1430
    %v2083 = vunpack.c.h.b16 %v1430
    %v2084 = vunpack.c.l.b16 %v1431
    %v2085 = vunpack.c.h.b16 %v1431
    %v2086 = vunpack.c.l.b16 %v1432
    %v2087 = vunpack.c.h.b16 %v1432
    %v2088 = vunpack.c.l.b16 %v1433
    %v2089 = vunpack.c.h.b16 %v1433
    %v2090 = vunpack.c.l.b16 %v1434
    %v2091 = vunpack.c.h.b16 %v1434
    %v2092 = vunpack.c.l.b16 %v1435
    %v2093 = vunpack.c.h.b16 %v1435
    %v2094 = vunpack.c.l.b16 %v1436
    %v2095 = vunpack.c.h.b16 %v1436
    %v2096 = vunpack.c.l.b16 %v1437
    %v2097 = vunpack.c.h.b16 %v1437
    %v2098 = vunpack.c.l.b16 %v1438
    %v2099 = vunpack.c.h.b16 %v1438
    %v2100 = vunpack.c.l.b16 %v1439
    %v2101 = vunpack.c.h.b16 %v1439
    %v2102 = vunpack.c.l.b16 %v1440
    %v2103 = vunpack.c.h.b16 %v1440
    %v2104 = vunpack.c.l.b16 %v1441
    %v2105 = vunpack.c.h.b16 %v1441
    %v2106 = vunpack.c.l.b16 %v1442
    %v2107 = vunpack.c.h.b16 %v1442
    %v2108 = vunpack.c.l.b16 %v1443
    %v2109 = vunpack.c.h.b16 %v1443
    %v2110 = vunpack.c.l.b16 %v1444
    %v2111 = vunpack.c.h.b16 %v1444
    %v2112 = vunpack.c.l.b16 %v1445
    %v2113 = vunpack.c.h.b16 %v1445
    %v2114 = vunpack.c.l.b16 %v1446
    %v2115 = vunpack.c.h.b16 %v1446
    %v2116 = vunpack.c.l.b16 %v1447
    %v2117 = vunpack.c.h.b16 %v1447
    %v2118 = vunpack.c.l.b16 %v1448
    %v2119 = vunpack.c.h.b16 %v1448
    %v2120 = vunpack.c.l.b16 %v1449
    %v2121 = vunpack.c.h.b16 %v1449
    %v2122 = vunpack.c.l.b16 %v1450
    %v2123 = vunpack.c.h.b16 %v1450
    %v2124 = vunpack.c.l.b16 %v1451
    %v2125 = vunpack.c.h.b16 %v1451
    %v2126 = vunpack.c.l.b16 %v1452
    %v2127 = vunpack.c.h.b16 %v1452
    %v2128 = vunpack.c.l.b16 %v1453
    %v2129 = vunpack.c.h.b16 %v1453
    %v2130 = vunpack.c.l.b16 %v1454
    %v2131 = vunpack.c.h.b16 %v1454
    %v2132 = vunpack.c.l.b16 %v1455
    %v2133 = vunpack.c.h.b16 %v1455
    %v2134 = vunpack.c.l.b16 %v1456
    %v2135 = vunpack.c.h.b16 %v1456
    %v2136 = vunpack.c.l.b16 %v1457
    %v2137 = vunpack.c.h.b16 %v1457
    %v2138 = vunpack.c.l.b16 %v1458
    %v2139 = vunpack.c.h.b16 %v1458
    %v2140 = vunpack.c.l.b16 %v1459
    %v2141 = vunpack.c.h.b16 %v1459
    %v2142 = vunpack.c.l.b16 %v1460
    %v2143 = vunpack.c.h.b16 %v1460
    %v2144 = vunpack.c.l.b16 %v1461
    %v2145 = vunpack.c.h.b16 %v1461
    %v2146 = vunpack.c.l.b16 %v1462
    %v2147 = vunpack.c.h.b16 %v1462
    %v2148 = vunpack.c.l.b16 %v1463
    %v2149 = vunpack.c.h.b16 %v1463
    %v2150 = vunpack.c.l.b16 %v1464
    %v2151 = vunpack.c.h.b16 %v1464
    %v2152 = vunpack.c.l.b16 %v1465
    %v2153 = vunpack.c.h.b16 %v1465
    %v2154 = vunpack.c.l.b16 %v1466
    %v2155 = vunpack.c.h.b16 %v1466
    %v2156 = vunpack.c.l.b16 %v1467
    %v2157 = vunpack.c.h.b16 %v1467
    %v2158 = vunpack.c.l.b16 %v1468
    %v2159 = vunpack.c.h.b16 %v1468
    %v2160 = vunpack.c.l.b16 %v1469
    %v2161 = vunpack.c.h.b16 %v1469
    %v2162 = vunpack.c.l.b16 %v1470
    %v2163 = vunpack.c.h.b16 %v1470
    %v2164 = vunpack.c.l.b16 %v1471
    %v2165 = vunpack.c.h.b16 %v1471
    %v2166 = vunpack.c.l.b16 %v1472
    %v2167 = vunpack.c.h.b16 %v1472
    %v2168 = vunpack.c.l.b16 %v1473
    %v2169 = vunpack.c.h.b16 %v1473
    %v2170 = vunpack.c.l.b16 %v1474
    %v2171 = vunpack.c.h.b16 %v1474
    %v2172 = vunpack.c.l.b16 %v1475
    %v2173 = vunpack.c.h.b16 %v1475
    %v2174 = vunpack.c.l.b16 %v1476
    %v2175 = vunpack.c.h.b16 %v1476
    %v2176 = vunpack.c.l.b16 %v1477
    %v2177 = vunpack.c.h.b16 %v1477
    %v2178 = vunpack.c.l.b16 %v1478
    %v2179 = vunpack.c.h.b16 %v1478
    %v2180 = vunpack.c.l.b16 %v1479
    %v2181 = vunpack.c.h.b16 %v1479
    %v2182 = vunpack.c.l.b16 %v1480
    %v2183 = vunpack.c.h.b16 %v1480
    %v2184 = vunpack.c.l.b16 %v1481
    %v2185 = vunpack.c.h.b16 %v1481
    %v2186 = vunpack.c.l.b16 %v1482
    %v2187 = vunpack.c.h.b16 %v1482
    %v2188 = vunpack.c.l.b16 %v1483
    %v2189 = vunpack.c.h.b16 %v1483
    %v2190 = vunpack.c.l.b16 %v1484
    %v2191 = vunpack.c.h.b16 %v1484
    %v2192 = vunpack.c.l.b16 %v1485
    %v2193 = vunpack.c.h.b16 %v1485
    %v2194 = vunpack.c.l.b16 %v1486
    %v2195 = vunpack.c.h.b16 %v1486
    %v2196 = vunpack.c.l.b16 %v1487
    %v2197 = vunpack.c.h.b16 %v1487
    %v2198 = vunpack.c.l.b16 %v1488
    %v2199 = vunpack.c.h.b16 %v1488
    %v2200 = vunpack.c.l.b16 %v1489
    %v2201 = vunpack.c.h.b16 %v1489
    %v2202 = vunpack.c.l.b16 %v1490
    %v2203 = vunpack.c.h.b16 %v1490
    %v2204 = vunpack.c.l.b16 %v1491
    %v2205 = vunpack.c.h.b16 %v1491
    %v2206 = vunpack.c.l.b16 %v1492
    %v2207 = vunpack.c.h.b16 %v1492
    %v2208 = vunpack.c.l.b16 %v1493
    %v2209 = vunpack.c.h.b16 %v1493
    %v2210 = vunpack.c.l.b16 %v1494
    %v2211 = vunpack.c.h.b16 %v1494
    %v2212 = vunpack.c.l.b16 %v1495
    %v2213 = vunpack.c.h.b16 %v1495
    %v2214 = vunpack.c.l.b16 %v1496
    %v2215 = vunpack.c.h.b16 %v1496
    %v2216 = vunpack.c.l.b16 %v1497
    %v2217 = vunpack.c.h.b16 %v1497
    %v2218 = vunpack.c.l.b16 %v1498
    %v2219 = vunpack.c.h.b16 %v1498
    %v2220 = vunpack.c.l.b16 %v1499
    %v2221 = vunpack.c.h.b16 %v1499
    %v2222 = vunpack.c.l.b16 %v1500
    %v2223 = vunpack.c.h.b16 %v1500
    %v2224 = vunpack.c.l.b16 %v1501
    %v2225 = vunpack.c.h.b16 %v1501
    %v2226 = vunpack.c.l.b16 %v1502
    %v2227 = vunpack.c.h.b16 %v1502
    %v2228 = vunpack.c.l.b16 %v1503
    %v2229 = vunpack.c.h.b16 %v1503
    %v2230 = vunpack.c.l.b16 %v1504
    %v2231 = vunpack.c.h.b16 %v1504
    %v2232 = vunpack.c.l.b16 %v1505
    %v2233 = vunpack.c.h.b16 %v1505
    %v2234 = vunpack.c.l.b16 %v1506
    %v2235 = vunpack.c.h.b16 %v1506
    %v2236 = vunpack.c.l.b16 %v1507
    %v2237 = vunpack.c.h.b16 %v1507
    %v2238 = vunpack.c.l.b16 %v1508
    %v2239 = vunpack.c.h.b16 %v1508
    %v2240 = vunpack.c.l.b16 %v1509
    %v2241 = vunpack.c.h.b16 %v1509
    %v2242 = vunpack.c.l.b16 %v1510
    %v2243 = vunpack.c.h.b16 %v1510
    %v2244 = vunpack.c.l.b16 %v1511
    %v2245 = vunpack.c.h.b16 %v1511
    %v2246 = vunpack.c.l.b16 %v1512
    %v2247 = vunpack.c.h.b16 %v1512
    %v2248 = vunpack.c.l.b16 %v1513
    %v2249 = vunpack.c.h.b16 %v1513
    %v2250 = vunpack.c.l.b16 %v1514
    %v2251 = vunpack.c.h.b16 %v1514
    %v2252 = vunpack.c.l.b16 %v1515
    %v2253 = vunpack.c.h.b16 %v1515
    %v2254 = vunpack.c.l.b16 %v1516
    %v2255 = vunpack.c.h.b16 %v1516
    %v2256 = vunpack.c.l.b16 %v1517
    %v2257 = vunpack.c.h.b16 %v1517
    %v2258 = vunpack.c.l.b16 %v1518
    %v2259 = vunpack.c.h.b16 %v1518
    %v2260 = vunpack.c.l.b16 %v1519
    %v2261 = vunpack.c.h.b16 %v1519
    %v2262 = vunpack.c.l.b16 %v1520
    %v2263 = vunpack.c.h.b16 %v1520
    %v2264 = vunpack.c.l.b16 %v1521
    %v2265 = vunpack.c.h.b16 %v1521
    %v2266 = vunpack.c.l.b16 %v1522
    %v2267 = vunpack.c.h.b16 %v1522
    %v2268 = vunpack.c.l.b16 %v1523
    %v2269 = vunpack.c.h.b16 %v1523
    %v2270 = vunpack.c.l.b16 %v1524
    %v2271 = vunpack.c.h.b16 %v1524
    %v2272 = vunpack.c.l.b16 %v1525
    %v2273 = vunpack.c.h.b16 %v1525
    %v2274 = vunpack.c.l.b16 %v1526
    %v2275 = vunpack.c.h.b16 %v1526
    %v2276 = vunpack.c.l.b16 %v1527
    %v2277 = vunpack.c.h.b16 %v1527
    %v2278 = vunpack.c.l.b16 %v1528
    %v2279 = vunpack.c.h.b16 %v1528
    %v2280 = vunpack.c.l.b16 %v1529
    %v2281 = vunpack.c.h.b16 %v1529
    %v2282 = vunpack.c.l.b16 %v1530
    %v2283 = vunpack.c.h.b16 %v1530
    %v2284 = vunpack.c.l.b16 %v1531
    %v2285 = vunpack.c.h.b16 %v1531
    %v2286 = vunpack.c.l.b16 %v1532
    %v2287 = vunpack.c.h.b16 %v1532
    %v2288 = vunpack.c.l.b16 %v1533
    %v2289 = vunpack.c.h.b16 %v1533
    %v2290 = vunpack.c.l.b16 %v1534
    %v2291 = vunpack.c.h.b16 %v1534
    %v2292 = vunpack.c.l.b16 %v1535
    %v2293 = vunpack.c.h.b16 %v1535
    %v2294 = vunpack.c.l.b16 %v1536
    %v2295 = vunpack.c.h.b16 %v1536
    %v2296 = vunpack.c.l.b16 %v1537
    %v2297 = vunpack.c.h.b16 %v1537
    %v2298 = vunpack.c.l.b16 %v1538
    %v2299 = vunpack.c.h.b16 %v1538
    %v2300 = vunpack.c.l.b16 %v1539
    %v2301 = vunpack.c.h.b16 %v1539
    %v2302 = vunpack.c.l.b16 %v1540
    %v2303 = vunpack.c.h.b16 %v1540
    %v2304 = vunpack.c.l.b16 %v1541
    %v2305 = vunpack.c.h.b16 %v1541
    %v2306 = vunpack.c.l.b16 %v1542
    %v2307 = vunpack.c.h.b16 %v1542
    %v2308 = vunpack.c.l.b16 %v1543
    %v2309 = vunpack.c.h.b16 %v1543
    %v2310 = vunpack.c.l.b16 %v1544
    %v2311 = vunpack.c.h.b16 %v1544
    %v2312 = vunpack.c.l.b16 %v1545
    %v2313 = vunpack.c.h.b16 %v1545
    %v2314 = vunpack.c.l.b16 %v1546
    %v2315 = vunpack.c.h.b16 %v1546
    %v2316 = vunpack.c.l.b16 %v1547
    %v2317 = vunpack.c.h.b16 %v1547
    %v2318 = vunpack.c.l.b16 %v1548
    %v2319 = vunpack.c.h.b16 %v1548
    %v2320 = vunpack.c.l.b16 %v1549
    %v2321 = vunpack.c.h.b16 %v1549
    %v2322 = vunpack.c.l.b16 %v1550
    %v2323 = vunpack.c.h.b16 %v1550
    %v2324 = vunpack.c.l.b16 %v1551
    %v2325 = vunpack.c.h.b16 %v1551
    %v2326 = vunpack.c.l.b16 %v1552
    %v2327 = vunpack.c.h.b16 %v1552
    %v2328 = vunpack.c.l.b16 %v1553
    %v2329 = vunpack.c.h.b16 %v1553
    %v2330 = vunpack.c.l.b16 %v1554
    %v2331 = vunpack.c.h.b16 %v1554
    %v2332 = vunpack.c.l.b16 %v1555
    %v2333 = vunpack.c.h.b16 %v1555
    %v2334 = vunpack.c.l.b16 %v1556
    %v2335 = vunpack.c.h.b16 %v1556
    %v2336 = vunpack.c.l.b16 %v1557
    %v2337 = vunpack.c.h.b16 %v1557
    %v2338 = vunpack.c.l.b16 %v1558
    %v2339 = vunpack.c.h.b16 %v1558
    %v2340 = vunpack.c.l.b16 %v1559
    %v2341 = vunpack.c.h.b16 %v1559
    %v2342 = vunpack.c.l.b16 %v1560
    %v2343 = vunpack.c.h.b16 %v1560
    %v2344 = vunpack.c.l.b16 %v1561
    %v2345 = vunpack.c.h.b16 %v1561
    %v2346 = vunpack.c.l.b16 %v1562
    %v2347 = vunpack.c.h.b16 %v1562
    %v2348 = vunpack.c.l.b16 %v1563
    %v2349 = vunpack.c.h.b16 %v1563
    %v2350 = vunpack.c.l.b16 %v1564
    %v2351 = vunpack.c.h.b16 %v1564
    %v2352 = vunpack.c.l.b16 %v1565
    %v2353 = vunpack.c.h.b16 %v1565
    %v2354 = vunpack.c.l.b16 %v1566
    %v2355 = vunpack.c.h.b16 %v1566
    %v2356 = vunpack.c.l.b16 %v1567
    %v2357 = vunpack.c.h.b16 %v1567
    %v2358 = vpack.c.b16 %v1850, %v1846
    %v2359 = vpack.c.b16 %v1851, %v1847
    %v2360 = vpack.c.b16 %v1852, %v1848
    %v2361 = vpack.c.b16 %v1853, %v1849
    %v2362 = vpack.c.b16 %v1858, %v1854
    %v2363 = vpack.c.b16 %v1859, %v1855
    %v2364 = vpack.c.b16 %v1860, %v1856
    %v2365 = vpack.c.b16 %v1861, %v1857
    %v2366 = vpack.c.b16 %v1866, %v1862
    %v2367 = vpack.c.b16 %v1867, %v1863
    %v2368 = vpack.c.b16 %v1868, %v1864
    %v2369 = vpack.c.b16 %v1869, %v1865
    %v2370 = vpack.c.b16 %v1874, %v1870
    %v2371 = vpack.c.b16 %v1875, %v1871
    %v2372 = vpack.c.b16 %v1876, %v1872
    %v2373 = vpack.c.b16 %v1877, %v1873
    %v2374 = vpack.c.b16 %v1882, %v1878
    %v2375 = vpack.c.b16 %v1883, %v1879
    %v2376 = vpack.c.b16 %v1884, %v1880
    %v2377 = vpack.c.b16 %v1885, %v1881
    %v2378 = vpack.c.b16 %v1890, %v1886
    %v2379 = vpack.c.b16 %v1891, %v1887
    %v2380 = vpack.c.b16 %v1892, %v1888
    %v2381 = vpack.c.b16 %v1893, %v1889
    %v2382 = vpack.c.b16 %v1898, %v1894
    %v2383 = vpack.c.b16 %v1899, %v1895
    %v2384 = vpack.c.b16 %v1900, %v1896
    %v2385 = vpack.c.b16 %v1901, %v1897
    %v2386 = vpack.c.b16 %v1906, %v1902
    %v2387 = vpack.c.b16 %v1907, %v1903
    %v2388 = vpack.c.b16 %v1908, %v1904
    %v2389 = vpack.c.b16 %v1909, %v1905
    %v2390 = vpack.c.b16 %v1914, %v1910
    %v2391 = vpack.c.b16 %v1915, %v1911
    %v2392 = vpack.c.b16 %v1916, %v1912
    %v2393 = vpack.c.b16 %v1917, %v1913
    %v2394 = vpack.c.b16 %v1922, %v1918
    %v2395 = vpack.c.b16 %v1923, %v1919
    %v2396 = vpack.c.b16 %v1924, %v1920
    %v2397 = vpack.c.b16 %v1925, %v1921
    %v2398 = vpack.c.b16 %v1930, %v1926
    %v2399 = vpack.c.b16 %v1931, %v1927
    %v2400 = vpack.c.b16 %v1932, %v1928
    %v2401 = vpack.c.b16 %v1933, %v1929
    %v2402 = vpack.c.b16 %v1938, %v1934
    %v2403 = vpack.c.b16 %v1939, %v1935
    %v2404 = vpack.c.b16 %v1940, %v1936
    %v2405 = vpack.c.b16 %v1941, %v1937
    %v2406 = vpack.c.b16 %v1946, %v1942
    %v2407 = vpack.c.b16 %v1947, %v1943
    %v2408 = vpack.c.b16 %v1948, %v1944
    %v2409 = vpack.c.b16 %v1949, %v1945
    %v2410 = vpack.c.b16 %v1954, %v1950
    %v2411 = vpack.c.b16 %v1955, %v1951
    %v2412 = vpack.c.b16 %v1956, %v1952
    %v2413 = vpack.c.b16 %v1957, %v1953
    %v2414 = vpack.c.b16 %v1962, %v1958
    %v2415 = vpack.c.b16 %v1963, %v1959
    %v2416 = vpack.c.b16 %v1964, %v1960
    %v2417 = vpack.c.b16 %v1965, %v1961
    %v2418 = vpack.c.b16 %v1970, %v1966
    %v2419 = vpack.c.b16 %v1971, %v1967
    %v2420 = vpack.c.b16 %v1972, %v1968
    %v2421 = vpack.c.b16 %v1973, %v1969
    %v2422 = vpack.c.b16 %v1978, %v1974
    %v2423 = vpack.c.b16 %v1979, %v1975
    %v2424 = vpack.c.b16 %v1980, %v1976
    %v2425 = vpack.c.b16 %v1981, %v1977
    %v2426 = vpack.c.b16 %v1986, %v1982
    %v2427 = vpack.c.b16 %v1987, %v1983
    %v2428 = vpack.c.b16 %v1988, %v1984
    %v2429 = vpack.c.b16 %v1989, %v1985
    %v2430 = vpack.c.b16 %v1994, %v1990
    %v2431 = vpack.c.b16 %v1995, %v1991
    %v2432 = vpack.c.b16 %v1996, %v1992
    %v2433 = vpack.c.b16 %v1997, %v1993
    %v2434 = vpack.c.b16 %v2002, %v1998
    %v2435 = vpack.c.b16 %v2003, %v1999
    %v2436 = vpack.c.b16 %v2004, %v2000
    %v2437 = vpack.c.b16 %v2005, %v2001
    %v2438 = vpack.c.b16 %v2010, %v2006
    %v2439 = vpack.c.b16 %v2011, %v2007
    %v2440 = vpack.c.b16 %v2012, %v2008
    %v2441 = vpack.c.b16 %v2013, %v2009
    %v2442 = vpack.c.b16 %v2018, %v2014
    %v2443 = vpack.c.b16 %v2019, %v2015
    %v2444 = vpack.c.b16 %v2020, %v2016
    %v2445 = vpack.c.b16 %v2021, %v2017
    %v2446 = vpack.c.b16 %v2026, %v2022
    %v2447 = vpack.c.b16 %v2027, %v2023
    %v2448 = vpack.c.b16 %v2028, %v2024
    %v2449 = vpack.c.b16 %v2029, %v2025
    %v2450 = vpack.c.b16 %v2034, %v2030
    %v2451 = vpack.c.b16 %v2035, %v2031
    %v2452 = vpack.c.b16 %v2036, %v2032
    %v2453 = vpack.c.b16 %v2037, %v2033
    %v2454 = vpack.c.b16 %v2042, %v2038
    %v2455 = vpack.c.b16 %v2043, %v2039
    %v2456 = vpack.c.b16 %v2044, %v2040
    %v2457 = vpack.c.b16 %v2045, %v2041
    %v2458 = vpack.c.b16 %v2050, %v2046
    %v2459 = vpack.c.b16 %v2051, %v2047
    %v2460 = vpack.c.b16 %v2052, %v2048
    %v2461 = vpack.c.b16 %v2053, %v2049
    %v2462 = vpack.c.b16 %v2058, %v2054
    %v2463 = vpack.c.b16 %v2059, %v2055
    %v2464 = vpack.c.b16 %v2060, %v2056
    %v2465 = vpack.c.b16 %v2061, %v2057
    %v2466 = vpack.c.b16 %v2066, %v2062
    %v2467 = vpack.c.b16 %v2067, %v2063
    %v2468 = vpack.c.b16 %v2068, %v2064
    %v2469 = vpack.c.b16 %v2069, %v2065
    %v2470 = vpack.c.b16 %v2074, %v2070
    %v2471 = vpack.c.b16 %v2075, %v2071
    %v2472 = vpack.c.b16 %v2076, %v2072
    %v2473 = vpack.c.b16 %v2077, %v2073
    %v2474 = vpack.c.b16 %v2082, %v2078
    %v2475 = vpack.c.b16 %v2083, %v2079
    %v2476 = vpack.c.b16 %v2084, %v2080
    %v2477 = vpack.c.b16 %v2085, %v2081
    %v2478 = vpack.c.b16 %v2090, %v2086
    %v2479 = vpack.c.b16 %v2091, %v2087
    %v2480 = vpack.c.b16 %v2092, %v2088
    %v2481 = vpack.c.b16 %v2093, %v2089
    %v2482 = vpack.c.b16 %v2098, %v2094
    %v2483 = vpack.c.b16 %v2099, %v2095
    %v2484 = vpack.c.b16 %v2100, %v2096
    %v2485 = vpack.c.b16 %v2101, %v2097
    %v2486 = vpack.c.b16 %v2106, %v2102
    %v2487 = vpack.c.b16 %v2107, %v2103
    %v2488 = vpack.c.b16 %v2108, %v2104
    %v2489 = vpack.c.b16 %v2109, %v2105
    %v2490 = vpack.c.b16 %v2114, %v2110
    %v2491 = vpack.c.b16 %v2115, %v2111
    %v2492 = vpack.c.b16 %v2116, %v2112
    %v2493 = vpack.c.b16 %v2117, %v2113
    %v2494 = vpack.c.b16 %v2122, %v2118
    %v2495 = vpack.c.b16 %v2123, %v2119
    %v2496 = vpack.c.b16 %v2124, %v2120
    %v2497 = vpack.c.b16 %v2125, %v2121
    %v2498 = vpack.c.b16 %v2130, %v2126
    %v2499 = vpack.c.b16 %v2131, %v2127
    %v2500 = vpack.c.b16 %v2132, %v2128
    %v2501 = vpack.c.b16 %v2133, %v2129
    %v2502 = vpack.c.b16 %v2138, %v2134
    %v2503 = vpack.c.b16 %v2139, %v2135
    %v2504 = vpack.c.b16 %v2140, %v2136
    %v2505 = vpack.c.b16 %v2141, %v2137
    %v2506 = vpack.c.b16 %v2146, %v2142
    %v2507 = vpack.c.b16 %v2147, %v2143
    %v2508 = vpack.c.b16 %v2148, %v2144
    %v2509 = vpack.c.b16 %v2149, %v2145
    %v2510 = vpack.c.b16 %v2154, %v2150
    %v2511 = vpack.c.b16 %v2155, %v2151
    %v2512 = vpack.c.b16 %v2156, %v2152
    %v2513 = vpack.c.b16 %v2157, %v2153
    %v2514 = vpack.c.b16 %v2162, %v2158
    %v2515 = vpack.c.b16 %v2163, %v2159
    %v2516 = vpack.c.b16 %v2164, %v2160
    %v2517 = vpack.c.b16 %v2165, %v2161
    %v2518 = vpack.c.b16 %v2170, %v2166
    %v2519 = vpack.c.b16 %v2171, %v2167
    %v2520 = vpack.c.b16 %v2172, %v2168
    %v2521 = vpack.c.b16 %v2173, %v2169
    %v2522 = vpack.c.b16 %v2178, %v2174
    %v2523 = vpack.c.b16 %v2179, %v2175
    %v2524 = vpack.c.b16 %v2180, %v2176
    %v2525 = vpack.c.b16 %v2181, %v2177
    %v2526 = vpack.c.b16 %v2186, %v2182
    %v2527 = vpack.c.b16 %v2187, %v2183
    %v2528 = vpack.c.b16 %v2188, %v2184
    %v2529 = vpack.c.b16 %v2189, %v2185
    %v2530 = vpack.c.b16 %v2194, %v2190
    %v2531 = vpack.c.b16 %v2195, %v2191
    %v2532 = vpack.c.b16 %v2196, %v2192
    %v2533 = vpack.c.b16 %v2197, %v2193
    %v2534 = vpack.c.b16 %v2202, %v2198
    %v2535 = vpack.c.b16 %v2203, %v2199
    %v2536 = vpack.c.b16 %v2204, %v2200
    %v2537 = vpack.c.b16 %v2205, %v2201
    %v2538 = vpack.c.b16 %v2210, %v2206
    %v2539 = vpack.c.b16 %v2211, %v2207
    %v2540 = vpack.c.b16 %v2212, %v2208
    %v2541 = vpack.c.b16 %v2213, %v2209
    %v2542 = vpack.c.b16 %v2218, %v2214
    %v2543 = vpack.c.b16 %v2219, %v2215
    %v2544 = vpack.c.b16 %v2220, %v2216
    %v2545 = vpack.c.b16 %v2221, %v2217
    %v2546 = vpack.c.b16 %v2226, %v2222
    %v2547 = vpack.c.b16 %v2227, %v2223
    %v2548 = vpack.c.b16 %v2228, %v2224
    %v2549 = vpack.c.b16 %v2229, %v2225
    %v2550 = vpack.c.b16 %v2234, %v2230
    %v2551 = vpack.c.b16 %v2235, %v2231
    %v2552 = vpack.c.b16 %v2236, %v2232
    %v2553 = vpack.c.b16 %v2237, %v2233
    %v2554 = vpack.c.b16 %v2242, %v2238
    %v2555 = vpack.c.b16 %v2243, %v2239
    %v2556 = vpack.c.b16 %v2244, %v2240
    %v2557 = vpack.c.b16 %v2245, %v2241
    %v2558 = vpack.c.b16 %v2250, %v2246
    %v2559 = vpack.c.b16 %v2251, %v2247
    %v2560 = vpack.c.b16 %v2252, %v2248
    %v2561 = vpack.c.b16 %v2253, %v2249
    %v2562 = vpack.c.b16 %v2258, %v2254
    %v2563 = vpack.c.b16 %v2259, %v2255
    %v2564 = vpack.c.b16 %v2260, %v2256
    %v2565 = vpack.c.b16 %v2261, %v2257
    %v2566 = vpack.c.b16 %v2266, %v2262
    %v2567 = vpack.c.b16 %v2267, %v2263
    %v2568 = vpack.c.b16 %v2268, %v2264
    %v2569 = vpack.c.b16 %v2269, %v2265
    %v2570 = vpack.c.b16 %v2274, %v2270
    %v2571 = vpack.c.b16 %v2275, %v2271
    %v2572 = vpack.c.b16 %v2276, %v2272
    %v2573 = vpack.c.b16 %v2277, %v2273
    %v2574 = vpack.c.b16 %v2282, %v2278
    %v2575 = vpack.c.b16 %v2283, %v2279
    %v2576 = vpack.c.b16 %v2284, %v2280
    %v2577 = vpack.c.b16 %v2285, %v2281
    %v2578 = vpack.c.b16 %v2290, %v2286
    %v2579 = vpack.c.b16 %v2291, %v2287
    %v2580 = vpack.c.b16 %v2292, %v2288
    %v2581 = vpack.c.b16 %v2293, %v2289
    %v2582 = vpack.c.b16 %v2298, %v2294
    %v2583 = vpack.c.b16 %v2299, %v2295
    %v2584 = vpack.c.b16 %v2300, %v2296
    %v2585 = vpack.c.b16 %v2301, %v2297
    %v2586 = vpack.c.b16 %v2306, %v2302
    %v2587 = vpack.c.b16 %v2307, %v2303
    %v2588 = vpack.c.b16 %v2308, %v2304
    %v2589 = vpack.c.b16 %v2309, %v2305
    %v2590 = vpack.c.b16 %v2314, %v2310
    %v2591 = vpack.c.b16 %v2315, %v2311
    %v2592 = vpack.c.b16 %v2316, %v2312
    %v2593 = vpack.c.b16 %v2317, %v2313
    %v2594 = vpack.c.b16 %v2322, %v2318
    %v2595 = vpack.c.b16 %v2323, %v2319
    %v2596 = vpack.c.b16 %v2324, %v2320
    %v2597 = vpack.c.b16 %v2325, %v2321
    %v2598 = vpack.c.b16 %v2330, %v2326
    %v2599 = vpack.c.b16 %v2331, %v2327
    %v2600 = vpack.c.b16 %v2332, %v2328
    %v2601 = vpack.c.b16 %v2333, %v2329
    %v2602 = vpack.c.b16 %v2338, %v2334
    %v2603 = vpack.c.b16 %v2339, %v2335
    %v2604 = vpack.c.b16 %v2340, %v2336
    %v2605 = vpack.c.b16 %v2341, %v2337
    %v2606 = vpack.c.b16 %v2346, %v2342
    %v2607 = vpack.c.b16 %v2347, %v2343
    %v2608 = vpack.c.b16 %v2348, %v2344
    %v2609 = vpack.c.b16 %v2349, %v2345
    %v2610 = vpack.c.b16 %v2354, %v2350
    %v2611 = vpack.c.b16 %v2355, %v2351
    %v2612 = vpack.c.b16 %v2356, %v2352
    %v2613 = vpack.c.b16 %v2357, %v2353
    %2870 = vmatprep.subr.bf16.mxu0 %v2359
    %2871 = vmatpush1.bf16.msra.mxu0 %v2358
    %2872 = vmatprep.subr.bf16.mxu0 %v2363
    %2873 = vmatpush1.bf16.msra.mxu0 %v2362
    %2874 = vmatprep.subr.bf16.mxu0 %v2367
    %2875 = vmatpush1.bf16.msra.mxu0 %v2366
    %2876 = vmatprep.subr.bf16.mxu0 %v2371
    %2877 = vmatpush1.bf16.msra.mxu0 %v2370
    %2878 = vmatprep.subr.bf16.mxu0 %v2375
    %2879 = vmatpush1.bf16.msra.mxu0 %v2374
    %2880 = vmatprep.subr.bf16.mxu0 %v2379
    %2881 = vmatpush1.bf16.msra.mxu0 %v2378
    %2882 = vmatprep.subr.bf16.mxu0 %v2383
    %2883 = vmatpush1.bf16.msra.mxu0 %v2382
    %2884 = vmatprep.subr.bf16.mxu0 %v2387
    %2885 = vmatpush1.bf16.msra.mxu0 %v2386
    %2886 = vmatprep.subr.bf16.mxu0 %v2391
    %2887 = vmatpush1.bf16.msra.mxu0 %v2390
    %2888 = vmatprep.subr.bf16.mxu0 %v2395
    %2889 = vmatpush1.bf16.msra.mxu0 %v2394
    %2890 = vmatprep.subr.bf16.mxu0 %v2399
    %2891 = vmatpush1.bf16.msra.mxu0 %v2398
    %2892 = vmatprep.subr.bf16.mxu0 %v2403
    %2893 = vmatpush1.bf16.msra.mxu0 %v2402
    %2894 = vmatprep.subr.bf16.mxu0 %v2407
    %2895 = vmatpush1.bf16.msra.mxu0 %v2406
    %2896 = vmatprep.subr.bf16.mxu0 %v2411
    %2897 = vmatpush1.bf16.msra.mxu0 %v2410
    %2898 = vmatprep.subr.bf16.mxu0 %v2415
    %2899 = vmatpush1.bf16.msra.mxu0 %v2414
    %2900 = vmatprep.subr.bf16.mxu0 %v2419
    %2901 = vmatpush1.bf16.msra.mxu0 %v2418
    %2902 = vmatprep.mubr.bf16.mxu0 %v1305
    %2903 = vmatmul.mubr.bf16.gmra.mrb[0].mxu0 %v1304
    %v2904 = vpop.f32.mrb[0].mxu0
    %v2905 = vadd.f32 %v1573, %v2904
    %v2906 = vpop.f32.mrb[0].mxu0
    %v2907 = vadd.f32 %v1577, %v2906
    %v2908 = vpop.f32.mrb[0].mxu0
    %v2909 = vpop.f32.mrb[0].mxu0
    %2910 = vdwg.mxu0
    %2911 = vmatprep.subr.bf16.mxu0 %v2423
    %2912 = vmatpush1.bf16.msra.mxu0 %v2422
    %2913 = vmatprep.subr.bf16.mxu0 %v2427
    %2914 = vmatpush1.bf16.msra.mxu0 %v2426
    %2915 = vmatprep.subr.bf16.mxu0 %v2431
    %2916 = vmatpush1.bf16.msra.mxu0 %v2430
    %2917 = vmatprep.subr.bf16.mxu0 %v2435
    %2918 = vmatpush1.bf16.msra.mxu0 %v2434
    %2919 = vmatprep.subr.bf16.mxu0 %v2439
    %2920 = vmatpush1.bf16.msra.mxu0 %v2438
    %2921 = vmatprep.subr.bf16.mxu0 %v2443
    %2922 = vmatpush1.bf16.msra.mxu0 %v2442
    %2923 = vmatprep.subr.bf16.mxu0 %v2447
    %2924 = vmatpush1.bf16.msra.mxu0 %v2446
    %2925 = vmatprep.subr.bf16.mxu0 %v2451
    %2926 = vmatpush1.bf16.msra.mxu0 %v2450
    %2927 = vmatprep.subr.bf16.mxu0 %v2455
    %2928 = vmatpush1.bf16.msra.mxu0 %v2454
    %2929 = vmatprep.subr.bf16.mxu0 %v2459
    %2930 = vmatpush1.bf16.msra.mxu0 %v2458
    %2931 = vmatprep.subr.bf16.mxu0 %v2463
    %2932 = vmatpush1.bf16.msra.mxu0 %v2462
    %2933 = vmatprep.subr.bf16.mxu0 %v2467
    %2934 = vmatpush1.bf16.msra.mxu0 %v2466
    %2935 = vmatprep.subr.bf16.mxu0 %v2471
    %2936 = vmatpush1.bf16.msra.mxu0 %v2470
    %2937 = vmatprep.subr.bf16.mxu0 %v2475
    %2938 = vmatpush1.bf16.msra.mxu0 %v2474
    %2939 = vmatprep.subr.bf16.mxu0 %v2479
    %2940 = vmatpush1.bf16.msra.mxu0 %v2478
    %2941 = vmatprep.subr.bf16.mxu0 %v2483
    %2942 = vmatpush1.bf16.msra.mxu0 %v2482
    %2943 = vmatprep.mubr.bf16.mxu0 %v1307
    %2944 = vmatmul.mubr.bf16.gmra.mrb[0].mxu0 %v1306
    %v2945 = vpop.f32.mrb[0].mxu0
    %v2946 = vadd.f32 %v2905, %v2945
    %v2947 = vpop.f32.mrb[0].mxu0
    %v2948 = vadd.f32 %v2907, %v2947
    %v2949 = vpop.f32.mrb[0].mxu0
    %v2950 = vpop.f32.mrb[0].mxu0
    %2951 = vdwg.mxu0
    %2952 = vmatprep.subr.bf16.mxu0 %v2487
    %2953 = vmatpush1.bf16.msra.mxu0 %v2486
    %2954 = vmatprep.subr.bf16.mxu0 %v2491
    %2955 = vmatpush1.bf16.msra.mxu0 %v2490
    %2956 = vmatprep.subr.bf16.mxu0 %v2495
    %2957 = vmatpush1.bf16.msra.mxu0 %v2494
    %2958 = vmatprep.subr.bf16.mxu0 %v2499
    %2959 = vmatpush1.bf16.msra.mxu0 %v2498
    %2960 = vmatprep.subr.bf16.mxu0 %v2503
    %2961 = vmatpush1.bf16.msra.mxu0 %v2502
    %2962 = vmatprep.subr.bf16.mxu0 %v2507
    %2963 = vmatpush1.bf16.msra.mxu0 %v2506
    %2964 = vmatprep.subr.bf16.mxu0 %v2511
    %2965 = vmatpush1.bf16.msra.mxu0 %v2510
    %2966 = vmatprep.subr.bf16.mxu0 %v2515
    %2967 = vmatpush1.bf16.msra.mxu0 %v2514
    %2968 = vmatprep.subr.bf16.mxu0 %v2519
    %2969 = vmatpush1.bf16.msra.mxu0 %v2518
    %2970 = vmatprep.subr.bf16.mxu0 %v2523
    %2971 = vmatpush1.bf16.msra.mxu0 %v2522
    %2972 = vmatprep.subr.bf16.mxu0 %v2527
    %2973 = vmatpush1.bf16.msra.mxu0 %v2526
    %2974 = vmatprep.subr.bf16.mxu0 %v2531
    %2975 = vmatpush1.bf16.msra.mxu0 %v2530
    %2976 = vmatprep.subr.bf16.mxu0 %v2535
    %2977 = vmatpush1.bf16.msra.mxu0 %v2534
    %2978 = vmatprep.subr.bf16.mxu0 %v2539
    %2979 = vmatpush1.bf16.msra.mxu0 %v2538
    %2980 = vmatprep.subr.bf16.mxu0 %v2543
    %2981 = vmatpush1.bf16.msra.mxu0 %v2542
    %2982 = vmatprep.subr.bf16.mxu0 %v2547
    %2983 = vmatpush1.bf16.msra.mxu0 %v2546
    %2984 = vmatprep.mubr.bf16.mxu0 %v1309
    %2985 = vmatmul.mubr.bf16.gmra.mrb[0].mxu0 %v1308
    %v2986 = vpop.f32.mrb[0].mxu0
    %v2987 = vadd.f32 %v2946, %v2986
    %v2988 = vpop.f32.mrb[0].mxu0
    %v2989 = vadd.f32 %v2948, %v2988
    %v2990 = vpop.f32.mrb[0].mxu0
    %v2991 = vpop.f32.mrb[0].mxu0
    %2992 = vdwg.mxu0
    %2993 = vmatprep.subr.bf16.mxu0 %v2551
    %2994 = vmatpush1.bf16.msra.mxu0 %v2550
    %2995 = vmatprep.subr.bf16.mxu0 %v2555
    %2996 = vmatpush1.bf16.msra.mxu0 %v2554
    %2997 = vmatprep.subr.bf16.mxu0 %v2559
    %2998 = vmatpush1.bf16.msra.mxu0 %v2558
    %2999 = vmatprep.subr.bf16.mxu0 %v2563
    %3000 = vmatpush1.bf16.msra.mxu0 %v2562
    %3001 = vmatprep.subr.bf16.mxu0 %v2567
    %3002 = vmatpush1.bf16.msra.mxu0 %v2566
    %3003 = vmatprep.subr.bf16.mxu0 %v2571
    %3004 = vmatpush1.bf16.msra.mxu0 %v2570
    %3005 = vmatprep.subr.bf16.mxu0 %v2575
    %3006 = vmatpush1.bf16.msra.mxu0 %v2574
    %3007 = vmatprep.subr.bf16.mxu0 %v2579
    %3008 = vmatpush1.bf16.msra.mxu0 %v2578
    %3009 = vmatprep.subr.bf16.mxu0 %v2583
    %3010 = vmatpush1.bf16.msra.mxu0 %v2582
    %3011 = vmatprep.subr.bf16.mxu0 %v2587
    %3012 = vmatpush1.bf16.msra.mxu0 %v2586
    %3013 = vmatprep.subr.bf16.mxu0 %v2591
    %3014 = vmatpush1.bf16.msra.mxu0 %v2590
    %3015 = vmatprep.subr.bf16.mxu0 %v2595
    %3016 = vmatpush1.bf16.msra.mxu0 %v2594
    %3017 = vmatprep.subr.bf16.mxu0 %v2599
    %3018 = vmatpush1.bf16.msra.mxu0 %v2598
    %3019 = vmatprep.subr.bf16.mxu0 %v2603
    %3020 = vmatpush1.bf16.msra.mxu0 %v2602
    %3021 = vmatprep.subr.bf16.mxu0 %v2607
    %3022 = vmatpush1.bf16.msra.mxu0 %v2606
    %3023 = vmatprep.subr.bf16.mxu0 %v2611
    %3024 = vmatpush1.bf16.msra.mxu0 %v2610
    %3025 = vmatprep.mubr.bf16.mxu0 %v1311
    %3026 = vmatmul.mubr.bf16.gmra.mrb[0].mxu0 %v1310
    %v3027 = vpop.f32.mrb[0].mxu0
    %v3028 = vadd.f32 %v2987, %v3027
    %v3029 = vpop.f32.mrb[0].mxu0
    %v3030 = vadd.f32 %v2989, %v3029
    %v3031 = vpop.f32.mrb[0].mxu0
    %v3032 = vpop.f32.mrb[0].mxu0
    %3033 = vdwg.mxu0
    %3034 = vmatprep.subr.bf16.mxu0 %v2361
    %3035 = vmatpush1.bf16.msra.mxu0 %v2360
    %3036 = vmatprep.subr.bf16.mxu0 %v2365
    %3037 = vmatpush1.bf16.msra.mxu0 %v2364
    %3038 = vmatprep.subr.bf16.mxu0 %v2369
    %3039 = vmatpush1.bf16.msra.mxu0 %v2368
    %3040 = vmatprep.subr.bf16.mxu0 %v2373
    %3041 = vmatpush1.bf16.msra.mxu0 %v2372
    %3042 = vmatprep.subr.bf16.mxu0 %v2377
    %3043 = vmatpush1.bf16.msra.mxu0 %v2376
    %3044 = vmatprep.subr.bf16.mxu0 %v2381
    %3045 = vmatpush1.bf16.msra.mxu0 %v2380
    %3046 = vmatprep.subr.bf16.mxu0 %v2385
    %3047 = vmatpush1.bf16.msra.mxu0 %v2384
    %3048 = vmatprep.subr.bf16.mxu0 %v2389
    %3049 = vmatpush1.bf16.msra.mxu0 %v2388
    %3050 = vmatprep.subr.bf16.mxu0 %v2393
    %3051 = vmatpush1.bf16.msra.mxu0 %v2392
    %3052 = vmatprep.subr.bf16.mxu0 %v2397
    %3053 = vmatpush1.bf16.msra.mxu0 %v2396
    %3054 = vmatprep.subr.bf16.mxu0 %v2401
    %3055 = vmatpush1.bf16.msra.mxu0 %v2400
    %3056 = vmatprep.subr.bf16.mxu0 %v2405
    %3057 = vmatpush1.bf16.msra.mxu0 %v2404
    %3058 = vmatprep.subr.bf16.mxu0 %v2409
    %3059 = vmatpush1.bf16.msra.mxu0 %v2408
    %3060 = vmatprep.subr.bf16.mxu0 %v2413
    %3061 = vmatpush1.bf16.msra.mxu0 %v2412
    %3062 = vmatprep.subr.bf16.mxu0 %v2417
    %3063 = vmatpush1.bf16.msra.mxu0 %v2416
    %3064 = vmatprep.subr.bf16.mxu0 %v2421
    %3065 = vmatpush1.bf16.msra.mxu0 %v2420
    %3066 = vmatprep.mubr.bf16.mxu0 %v1305
    %3067 = vmatmul.mubr.bf16.gmra.mrb[0].mxu0 %v1304
    %v3068 = vpop.f32.mrb[0].mxu0
    %v3069 = vadd.f32 %v1581, %v3068
    %v3070 = vpop.f32.mrb[0].mxu0
    %v3071 = vadd.f32 %v1585, %v3070
    %v3072 = vpop.f32.mrb[0].mxu0
    %v3073 = vpop.f32.mrb[0].mxu0
    %3074 = vdwg.mxu0
    %3075 = vmatprep.subr.bf16.mxu0 %v2425
    %3076 = vmatpush1.bf16.msra.mxu0 %v2424
    %3077 = vmatprep.subr.bf16.mxu0 %v2429
    %3078 = vmatpush1.bf16.msra.mxu0 %v2428
    %3079 = vmatprep.subr.bf16.mxu0 %v2433
    %3080 = vmatpush1.bf16.msra.mxu0 %v2432
    %3081 = vmatprep.subr.bf16.mxu0 %v2437
    %3082 = vmatpush1.bf16.msra.mxu0 %v2436
    %3083 = vmatprep.subr.bf16.mxu0 %v2441
    %3084 = vmatpush1.bf16.msra.mxu0 %v2440
    %3085 = vmatprep.subr.bf16.mxu0 %v2445
    %3086 = vmatpush1.bf16.msra.mxu0 %v2444
    %3087 = vmatprep.subr.bf16.mxu0 %v2449
    %3088 = vmatpush1.bf16.msra.mxu0 %v2448
    %3089 = vmatprep.subr.bf16.mxu0 %v2453
    %3090 = vmatpush1.bf16.msra.mxu0 %v2452
    %3091 = vmatprep.subr.bf16.mxu0 %v2457
    %3092 = vmatpush1.bf16.msra.mxu0 %v2456
    %3093 = vmatprep.subr.bf16.mxu0 %v2461
    %3094 = vmatpush1.bf16.msra.mxu0 %v2460
    %3095 = vmatprep.subr.bf16.mxu0 %v2465
    %3096 = vmatpush1.bf16.msra.mxu0 %v2464
    %3097 = vmatprep.subr.bf16.mxu0 %v2469
    %3098 = vmatpush1.bf16.msra.mxu0 %v2468
    %3099 = vmatprep.subr.bf16.mxu0 %v2473
    %3100 = vmatpush1.bf16.msra.mxu0 %v2472
    %3101 = vmatprep.subr.bf16.mxu0 %v2477
    %3102 = vmatpush1.bf16.msra.mxu0 %v2476
    %3103 = vmatprep.subr.bf16.mxu0 %v2481
    %3104 = vmatpush1.bf16.msra.mxu0 %v2480
    %3105 = vmatprep.subr.bf16.mxu0 %v2485
    %3106 = vmatpush1.bf16.msra.mxu0 %v2484
    %3107 = vmatprep.mubr.bf16.mxu0 %v1307
    %3108 = vmatmul.mubr.bf16.gmra.mrb[0].mxu0 %v1306
    %v3109 = vpop.f32.mrb[0].mxu0
    %v3110 = vadd.f32 %v3069, %v3109
    %v3111 = vpop.f32.mrb[0].mxu0
    %v3112 = vadd.f32 %v3071, %v3111
    %v3113 = vpop.f32.mrb[0].mxu0
    %v3114 = vpop.f32.mrb[0].mxu0
    %3115 = vdwg.mxu0
    %3116 = vmatprep.subr.bf16.mxu0 %v2489
    %3117 = vmatpush1.bf16.msra.mxu0 %v2488
    %3118 = vmatprep.subr.bf16.mxu0 %v2493
    %3119 = vmatpush1.bf16.msra.mxu0 %v2492
    %3120 = vmatprep.subr.bf16.mxu0 %v2497
    %3121 = vmatpush1.bf16.msra.mxu0 %v2496
    %3122 = vmatprep.subr.bf16.mxu0 %v2501
    %3123 = vmatpush1.bf16.msra.mxu0 %v2500
    %3124 = vmatprep.subr.bf16.mxu0 %v2505
    %3125 = vmatpush1.bf16.msra.mxu0 %v2504
    %3126 = vmatprep.subr.bf16.mxu0 %v2509
    %3127 = vmatpush1.bf16.msra.mxu0 %v2508
    %3128 = vmatprep.subr.bf16.mxu0 %v2513
    %3129 = vmatpush1.bf16.msra.mxu0 %v2512
    %3130 = vmatprep.subr.bf16.mxu0 %v2517
    %3131 = vmatpush1.bf16.msra.mxu0 %v2516
    %3132 = vmatprep.subr.bf16.mxu0 %v2521
    %3133 = vmatpush1.bf16.msra.mxu0 %v2520
    %3134 = vmatprep.subr.bf16.mxu0 %v2525
    %3135 = vmatpush1.bf16.msra.mxu0 %v2524
    %3136 = vmatprep.subr.bf16.mxu0 %v2529
    %3137 = vmatpush1.bf16.msra.mxu0 %v2528
    %3138 = vmatprep.subr.bf16.mxu0 %v2533
    %3139 = vmatpush1.bf16.msra.mxu0 %v2532
    %3140 = vmatprep.subr.bf16.mxu0 %v2537
    %3141 = vmatpush1.bf16.msra.mxu0 %v2536
    %3142 = vmatprep.subr.bf16.mxu0 %v2541
    %3143 = vmatpush1.bf16.msra.mxu0 %v2540
    %3144 = vmatprep.subr.bf16.mxu0 %v2545
    %3145 = vmatpush1.bf16.msra.mxu0 %v2544
    %3146 = vmatprep.subr.bf16.mxu0 %v2549
    %3147 = vmatpush1.bf16.msra.mxu0 %v2548
    %3148 = vmatprep.mubr.bf16.mxu0 %v1309
    %3149 = vmatmul.mubr.bf16.gmra.mrb[0].mxu0 %v1308
    %v3150 = vpop.f32.mrb[0].mxu0
    %v3151 = vadd.f32 %v3110, %v3150
    %v3152 = vpop.f32.mrb[0].mxu0
    %v3153 = vadd.f32 %v3112, %v3152
    %v3154 = vpop.f32.mrb[0].mxu0
    %v3155 = vpop.f32.mrb[0].mxu0
    %3156 = vdwg.mxu0
    %3157 = vmatprep.subr.bf16.mxu0 %v2553
    %3158 = vmatpush1.bf16.msra.mxu0 %v2552
    %3159 = vmatprep.subr.bf16.mxu0 %v2557
    %3160 = vmatpush1.bf16.msra.mxu0 %v2556
    %3161 = vmatprep.subr.bf16.mxu0 %v2561
    %3162 = vmatpush1.bf16.msra.mxu0 %v2560
    %3163 = vmatprep.subr.bf16.mxu0 %v2565
    %3164 = vmatpush1.bf16.msra.mxu0 %v2564
    %3165 = vmatprep.subr.bf16.mxu0 %v2569
    %3166 = vmatpush1.bf16.msra.mxu0 %v2568
    %3167 = vmatprep.subr.bf16.mxu0 %v2573
    %3168 = vmatpush1.bf16.msra.mxu0 %v2572
    %3169 = vmatprep.subr.bf16.mxu0 %v2577
    %3170 = vmatpush1.bf16.msra.mxu0 %v2576
    %3171 = vmatprep.subr.bf16.mxu0 %v2581
    %3172 = vmatpush1.bf16.msra.mxu0 %v2580
    %3173 = vmatprep.subr.bf16.mxu0 %v2585
    %3174 = vmatpush1.bf16.msra.mxu0 %v2584
    %3175 = vmatprep.subr.bf16.mxu0 %v2589
    %3176 = vmatpush1.bf16.msra.mxu0 %v2588
    %3177 = vmatprep.subr.bf16.mxu0 %v2593
    %3178 = vmatpush1.bf16.msra.mxu0 %v2592
    %3179 = vmatprep.subr.bf16.mxu0 %v2597
    %3180 = vmatpush1.bf16.msra.mxu0 %v2596
    %3181 = vmatprep.subr.bf16.mxu0 %v2601
    %3182 = vmatpush1.bf16.msra.mxu0 %v2600
    %3183 = vmatprep.subr.bf16.mxu0 %v2605
    %3184 = vmatpush1.bf16.msra.mxu0 %v2604
    %3185 = vmatprep.subr.bf16.mxu0 %v2609
    %3186 = vmatpush1.bf16.msra.mxu0 %v2608
    %3187 = vmatprep.subr.bf16.mxu0 %v2613
    %3188 = vmatpush1.bf16.msra.mxu0 %v2612
    %3189 = vmatprep.mubr.bf16.mxu0 %v1311
    %3190 = vmatmul.mubr.bf16.gmra.mrb[0].mxu0 %v1310
    %v3191 = vpop.f32.mrb[0].mxu0
    %v3192 = vadd.f32 %v3151, %v3191
    %v3193 = vpop.f32.mrb[0].mxu0
    %v3194 = vadd.f32 %v3153, %v3193
    %v3195 = vpop.f32.mrb[0].mxu0
    %v3196 = vpop.f32.mrb[0].mxu0
    %3197 = vdwg.mxu0
    %3198 = vst [vmem:[#allocation12] sm:$0xff] %v3028
    %3199 = vst [vmem:[#allocation12 + $0x8] sm:$0xff] %v3030
    %3200 = vst [vmem:[#allocation12 + $0x10] sm:$0xff] %v3192
    %3201 = vst [vmem:[#allocation12 + $0x18] sm:$0xff] %v3194
    // Predicated region
    $region54: #{tpu_custom_call.1} parent=1 // pred_check
      _
    $region55: #{tpu_custom_call.1} parent=1 // pred_check_branch
      %3203 = sbr.rel (0) target = $region57
    $region56: #{tpu_custom_call.1} parent=1 // pred_region
      %s3205 = ssub.s32 512, 512
      %3206 = vsyncadd [#allocation6], %s3205
      %s3208 = sshll.u32 [#allocation12], 4
      %s3209 = int_to_ptr.vmem [resolvable:$true] %s3208
      %3211 = dma.vmem_to_hbm [thread:$0]  %s3209, 512, %s9, [#allocation6]
    $region57: #{tpu_custom_call.1} parent=1 // pred_fallthru
      _
    // Predicated region
    $region58: #{tpu_custom_call.1} parent=1 // pred_check
      _
    $region59: #{tpu_custom_call.1} parent=1 // pred_check_branch
      %3213 = sbr.rel (0) target = $region61
    $region60: #{tpu_custom_call.1} parent=1 // pred_region
      %3214 = dma.done [#allocation6], 512
    $region61: #{tpu_custom_call.1} parent=1 // pred_fallthru
      _
    %3215 = vsyncpa [#allocation5], 1
    %3216 = vsyncpa [#allocation8], 1
    %3217 = vsyncpa [#allocation11], 1
    %3218 = vsyncpa [#allocation6], 1

</llo_original>
